<compile_context>
chip_gen: v6e
topology: v6e:2x2x1
jax: 0.10.0
libtpu: 0.0.40
codegen_flags: <defaults>
</compile_context>

<pallas_src>
import functools
import math

import jax
import jax.numpy as jnp
from jax.experimental import pallas as pl
from jax.experimental.pallas import tpu as pltpu

_LANE = 128
_MIB = 1024 * 1024


# ----------------------------------------------------------------------------
# Small helpers
# ----------------------------------------------------------------------------
def _round_up(n, m):
    return ((n + m - 1) // m) * m


def _pick_time_block(t, batch, max_tt=32):
    """Timesteps per grid step.

    tt is a multiple of 8//gcd(B,8) so the (tt*B, .) blocks are sublane-clean,
    tt <= max_tt, and tt is chosen to minimize padding of T (prefer larger tt
    on ties).  Returns (tt, padded_T)."""
    m = 8 // math.gcd(batch, 8)
    cap = max(m, min(max_tt, _round_up(t, m)))
    best_tt = m
    best_pad = _round_up(t, m) - t
    tt = m
    while tt <= cap:
        pad = _round_up(t, tt) - t
        if pad < best_pad or (pad == best_pad and tt > best_tt):
            best_tt, best_pad = tt, pad
        tt += m
    return best_tt, _round_up(t, best_tt)


def _vmem_limit(required_bytes):
    """Generation-aware scoped-VMEM limit: ~85% of physical VMEM, >=32 MiB floor."""
    try:
        cap = int(pltpu.get_tpu_info().vmem_capacity_bytes)
    except Exception:
        cap = 64 * _MIB  # conservative (v7x-sized) fallback
    budget = max(32 * _MIB, int(cap * 0.85))
    return int(min(max(2 * required_bytes, 32 * _MIB), budget))


# ----------------------------------------------------------------------------
# Fused LSTM layer kernel: per grid step (tt timesteps)
#   1) gx = x_block @ W_ih^T + (b_ih + b_hh)   -> VMEM scratch (never hits HBM)
#   2) serial recurrence over the tt timesteps using persistent h/c scratch
#   x_seq layout: time-major rows, flattened to (T_pad*B, In)
# ----------------------------------------------------------------------------
def _run_recurrence(x_ref, wih_ref, whh_ref, b_ref, gx_scr, h_scr, c_scr,
                    hseq_ref, *, bsz, hp, t_real, time_block, need_mask):
    t_blk = pl.program_id(0)

    @pl.when(t_blk == 0)
    def _():
        h_scr[...] = jnp.zeros_like(h_scr)
        c_scr[...] = jnp.zeros_like(c_scr)

    # Hoisted, fused input projection for this time block; bias folded in here
    # (off the per-timestep serial chain, hidden under the block matmul).
    gx_scr[...] = (
        jnp.dot(x_ref[...], wih_ref[...], preferred_element_type=jnp.float32)
        + b_ref[...])

    whh = whh_ref[...]          # recurrent weight loaded once per grid step
    h = h_scr[...]              # (B, Hp) f32
    c = c_scr[...]              # (B, Hp) f32

    for s in range(time_block):  # static unroll (small tt)
        gates = (gx_scr[pl.ds(s * bsz, bsz), :]
                 + jnp.dot(h.astype(jnp.bfloat16), whh,
                           preferred_element_type=jnp.float32))   # (B, 4Hp) f32
        # Gate slices are lane-tile aligned because Hp % 128 == 0.
        i_g = jax.nn.sigmoid(gates[:, 0 * hp:1 * hp])
        f_g = jax.nn.sigmoid(gates[:, 1 * hp:2 * hp])
        g_g = jnp.tanh(gates[:, 2 * hp:3 * hp])
        o_g = jax.nn.sigmoid(gates[:, 3 * hp:4 * hp])
        c_new = f_g * c + i_g * g_g
        h_new = o_g * jnp.tanh(c_new)
        if need_mask:
            # Only emitted when T was padded: hold state on padded tail steps.
            valid = (t_blk * time_block + s) < t_real
            c = jnp.where(valid, c_new, c)
            h = jnp.where(valid, h_new, h)
        else:
            c, h = c_new, h_new
        if hseq_ref is not None:
            hseq_ref[pl.ds(s * bsz, bsz), :] = h.astype(hseq_ref.dtype)

    h_scr[...] = h
    c_scr[...] = c
    return h


def _lstm_seq_kernel(x_ref, wih_ref, whh_ref, b_ref, hseq_ref,
                     gx_scr, h_scr, c_scr, *, bsz, hp, t_real, time_block,
                     need_mask):
    _run_recurrence(x_ref, wih_ref, whh_ref, b_ref, gx_scr, h_scr, c_scr,
                    hseq_ref, bsz=bsz, hp=hp, t_real=t_real,
                    time_block=time_block, need_mask=need_mask)


def _lstm_last_kernel(x_ref, wih_ref, whh_ref, b_ref, fcw_ref, fcb_ref, y_ref,
                      gx_scr, h_scr, c_scr, *, bsz, hp, t_real, time_block,
                      need_mask):
    h_fin = _run_recurrence(x_ref, wih_ref, whh_ref, b_ref, gx_scr, h_scr,
                            c_scr, None, bsz=bsz, hp=hp, t_real=t_real,
                            time_block=time_block, need_mask=need_mask)

    # Fused fc: y = hn[-1] @ W_fc^T + b_fc, written only at the last time block
    # (constant-index output block -> resident accumulator).
    @pl.when(pl.program_id(0) == pl.num_programs(0) - 1)
    def _():
        y_ref[...] = (
            jnp.dot(h_fin.astype(jnp.bfloat16), fcw_ref[...],
                    preferred_element_type=jnp.float32)
            + fcb_ref[...]).astype(y_ref.dtype)


def lstm_layer_seq(x_seq, w_ih_t, w_hh_t, b, *, batch, t_real, time_block):
    """Intermediate layer: (T_pad*B, In) bf16 -> hidden sequence (T_pad*B, Hp) bf16."""
    rows, in_dim = x_seq.shape
    g = w_hh_t.shape[1]
    hp = g // 4
    t_pad = rows // batch
    grid = (t_pad // time_block,)
    blk_rows = time_block * batch
    need_mask = (t_pad != t_real)
    req = (2 * blk_rows * in_dim * 2      # x blocks (bf16, double-buffered)
           + 2 * in_dim * g * 2           # W_ih (bf16, constant index)
           + 2 * hp * g * 2               # W_hh (bf16, constant index)
           + 2 * g * 4                    # bias
           + 2 * blk_rows * hp * 2        # hseq out blocks (bf16)
           + blk_rows * g * 4             # gx scratch (f32)
           + 2 * batch * hp * 4)          # h/c scratch
    kernel = functools.partial(_lstm_seq_kernel, bsz=batch, hp=hp,
                               t_real=t_real, time_block=time_block,
                               need_mask=need_mask)
    return pl.pallas_call(
        kernel,
        out_shape=jax.ShapeDtypeStruct((rows, hp), jnp.bfloat16),
        grid_spec=pltpu.PrefetchScalarGridSpec(
            num_scalar_prefetch=0,
            grid=grid,
            in_specs=[
                pl.BlockSpec((blk_rows, in_dim), lambda i: (i, 0)),
                # Constant-index weight/bias blocks: DMA'd only once by the pipeline.
                pl.BlockSpec((in_dim, g), lambda i: (0, 0)),
                pl.BlockSpec((hp, g), lambda i: (0, 0)),
                pl.BlockSpec((1, g), lambda i: (0, 0)),
            ],
            out_specs=pl.BlockSpec((blk_rows, hp), lambda i: (i, 0)),
            scratch_shapes=[
                pltpu.VMEM((blk_rows, g), jnp.float32),   # gx block
                pltpu.VMEM((batch, hp), jnp.float32),     # h state
                pltpu.VMEM((batch, hp), jnp.float32),     # c state
            ],
        ),
        compiler_params=pltpu.CompilerParams(
            dimension_semantics=("arbitrary",),           # serial time recurrence
            vmem_limit_bytes=_vmem_limit(req),
        ),
    )(x_seq, w_ih_t, w_hh_t, b)


def lstm_layer_last(x_seq, w_ih_t, w_hh_t, b, fc_w_t, fc_b, *, batch, t_real,
                    time_block):
    """Last layer with fused fc: returns y = fc(hn[-1]) of shape (B, O) f32."""
    rows, in_dim = x_seq.shape
    g = w_hh_t.shape[1]
    hp = g // 4
    odim = fc_w_t.shape[1]
    t_pad = rows // batch
    grid = (t_pad // time_block,)
    blk_rows = time_block * batch
    need_mask = (t_pad != t_real)
    req = (2 * blk_rows * in_dim * 2
           + 2 * in_dim * g * 2
           + 2 * hp * g * 2
           + 2 * g * 4
           + 2 * hp * odim * 2
           + 2 * odim * 4
           + 2 * batch * odim * 4
           + blk_rows * g * 4
           + 2 * batch * hp * 4)
    kernel = functools.partial(_lstm_last_kernel, bsz=batch, hp=hp,
                               t_real=t_real, time_block=time_block,
                               need_mask=need_mask)
    return pl.pallas_call(
        kernel,
        out_shape=jax.ShapeDtypeStruct((batch, odim), jnp.float32),
        grid_spec=pltpu.PrefetchScalarGridSpec(
            num_scalar_prefetch=0,
            grid=grid,
            in_specs=[
                pl.BlockSpec((blk_rows, in_dim), lambda i: (i, 0)),
                pl.BlockSpec((in_dim, g), lambda i: (0, 0)),
                pl.BlockSpec((hp, g), lambda i: (0, 0)),
                pl.BlockSpec((1, g), lambda i: (0, 0)),
                pl.BlockSpec((hp, odim), lambda i: (0, 0)),
                pl.BlockSpec((1, odim), lambda i: (0, 0)),
            ],
            out_specs=pl.BlockSpec((batch, odim), lambda i: (0, 0)),
            scratch_shapes=[
                pltpu.VMEM((blk_rows, g), jnp.float32),
                pltpu.VMEM((batch, hp), jnp.float32),
                pltpu.VMEM((batch, hp), jnp.float32),
            ],
        ),
        compiler_params=pltpu.CompilerParams(
            dimension_semantics=("arbitrary",),
            vmem_limit_bytes=_vmem_limit(req),
        ),
    )(x_seq, w_ih_t, w_hh_t, b, fc_w_t, fc_b)


# ----------------------------------------------------------------------------
# Parameters: raw PyTorch-layout init + prep (pad H -> Hp, transpose, bf16)
# ----------------------------------------------------------------------------
def init_lstm_model_params(key, input_dim, hidden_dim, num_layers, output_dim):
    """Raw params in PyTorch layout, U(-1/sqrt(H), 1/sqrt(H)) init."""
    bound = 1.0 / (hidden_dim ** 0.5)
    layers = []
    for layer in range(num_layers):
        in_dim = input_dim if layer == 0 else hidden_dim
        key, k1, k2, k3, k4 = jax.random.split(key, 5)
        layers.append({
            "w_ih": jax.random.uniform(k1, (4 * hidden_dim, in_dim), jnp.float32, -bound, bound),
            "w_hh": jax.random.uniform(k2, (4 * hidden_dim, hidden_dim), jnp.float32, -bound, bound),
            "b_ih": jax.random.uniform(k3, (4 * hidden_dim,), jnp.float32, -bound, bound),
            "b_hh": jax.random.uniform(k4, (4 * hidden_dim,), jnp.float32, -bound, bound),
        })
    key, k5, k6 = jax.random.split(key, 3)
    fc_w = jax.random.uniform(k5, (output_dim, hidden_dim), jnp.float32, -bound, bound)
    fc_b = jax.random.uniform(k6, (output_dim,), jnp.float32, -bound, bound)
    return {"layers": layers, "fc_w": fc_w, "fc_b": fc_b}


def _pad_gate_rows(w, h, hp):
    """w: (4H, In), gate order [i|f|g|o]; zero-pad each gate block H->Hp rows."""
    if hp == h:
        return w
    blocks = [jnp.pad(w[k * h:(k + 1) * h], ((0, hp - h), (0, 0))) for k in range(4)]
    return jnp.concatenate(blocks, axis=0)


def _pad_gate_vec(v, h, hp):
    if hp == h:
        return v
    blocks = [jnp.pad(v[k * h:(k + 1) * h], (0, hp - h)) for k in range(4)]
    return jnp.concatenate(blocks, axis=0)


def prepare_params(raw, hidden_dim):
    """Pad hidden to a multiple of 128, transpose for (in, 4Hp) matmuls, bf16 weights.

    Padding is exact: padded gate columns have zero weights/bias -> padded h/c stay 0."""
    h = hidden_dim
    hp = _round_up(h, _LANE)
    layers = []
    for li, lp in enumerate(raw["layers"]):
        w_ih = _pad_gate_rows(lp["w_ih"], h, hp)                  # (4Hp, In)
        if li > 0:  # input of layers >= 1 is the padded hidden state
            w_ih = jnp.pad(w_ih, ((0, 0), (0, hp - h)))           # (4Hp, Hp)
        w_hh = _pad_gate_rows(lp["w_hh"], h, hp)                  # (4Hp, H)
        w_hh = jnp.pad(w_hh, ((0, 0), (0, hp - h)))               # (4Hp, Hp)
        bias = _pad_gate_vec(lp["b_ih"] + lp["b_hh"], h, hp)      # (4Hp,)
        layers.append({
            "w_ih_t": w_ih.T.astype(jnp.bfloat16),                # (In|Hp, 4Hp)
            "w_hh_t": w_hh.T.astype(jnp.bfloat16),                # (Hp, 4Hp)
            "b": bias.reshape(1, -1).astype(jnp.float32),         # (1, 4Hp)
        })
    fc_w = jnp.pad(raw["fc_w"], ((0, 0), (0, hp - h)))            # (O, Hp)
    return {
        "layers": layers,
        "fc_w_t": fc_w.T.astype(jnp.bfloat16),                    # (Hp, O)
        "fc_b": raw["fc_b"].reshape(1, -1).astype(jnp.float32),   # (1, O)
    }


# ----------------------------------------------------------------------------
# Forward pass
# ----------------------------------------------------------------------------
@jax.jit
def lstm_model_forward(params, x):
    """x: (B, T, D) batch_first f32 -> (B, output_dim) f32."""
    layers = params["layers"]
    n_layers = len(layers)
    bsz, t, d = x.shape
    tt, t_pad = _pick_time_block(t, bsz)

    # Layer-0 input to time-major bf16, padded to t_pad, flattened to rows.
    # (Only x itself -- T*B*D elements -- is relaid out; the big (T,B,4Hp) gate
    # tensor never exists in HBM because the projection is fused in-kernel.)
    x_tm = jnp.transpose(x, (1, 0, 2)).astype(jnp.bfloat16)       # (T, B, D)
    if t_pad > t:
        x_tm = jnp.pad(x_tm, ((0, t_pad - t), (0, 0), (0, 0)))
    seq = x_tm.reshape(t_pad * bsz, d)                            # time-major rows

    y = None
    for li, lp in enumerate(layers):
        if li < n_layers - 1:
            seq = lstm_layer_seq(seq, lp["w_ih_t"], lp["w_hh_t"], lp["b"],
                                 batch=bsz, t_real=t, time_block=tt)
        else:
            y = lstm_layer_last(seq, lp["w_ih_t"], lp["w_hh_t"], lp["b"],
                                params["fc_w_t"], params["fc_b"],
                                batch=bsz, t_real=t, time_block=tt)
    return y


# ----------------------------------------------------------------------------
# Pure-JAX reference (PyTorch eval semantics) for a numerical sanity check
# ----------------------------------------------------------------------------
def lstm_model_reference(raw, x):
    bsz, t, _ = x.shape
    h_in = x
    h = None
    for lp in raw["layers"]:
        hdim = lp["w_hh"].shape[1]
        h = jnp.zeros((bsz, hdim), jnp.float32)
        c = jnp.zeros((bsz, hdim), jnp.float32)
        outs = []
        for s in range(t):
            g = (h_in[:, s, :] @ lp["w_ih"].T + h @ lp["w_hh"].T
                 + lp["b_ih"] + lp["b_hh"])
            i_g = jax.nn.sigmoid(g[:, 0 * hdim:1 * hdim])
            f_g = jax.nn.sigmoid(g[:, 1 * hdim:2 * hdim])
            g_g = jnp.tanh(g[:, 2 * hdim:3 * hdim])
            o_g = jax.nn.sigmoid(g[:, 3 * hdim:4 * hdim])
            c = f_g * c + i_g * g_g
            h = o_g * jnp.tanh(c)
            outs.append(h)
        h_in = jnp.stack(outs, axis=1)
    return h @ raw["fc_w"].T + raw["fc_b"]


if __name__ == "__main__":
    # Small shapes consistent with the module.
    B, T = 2, 8
    input_dim, hidden_dim, num_layers, output_dim = 16, 32, 2, 4
    dropout_rate = 0.0  # eval-mode forward: dropout is identity

    key = jax.random.PRNGKey(0)
    key, pkey, xkey = jax.random.split(key, 3)

    raw_params = init_lstm_model_params(pkey, input_dim, hidden_dim, num_layers, output_dim)
    params = prepare_params(raw_params, hidden_dim)
    x = jax.random.normal(xkey, (B, T, input_dim), jnp.float32)

    y = lstm_model_forward(params, x)
    jax.block_until_ready(y)
    assert y.shape == (B, output_dim), y.shape

    # Numerical sanity check vs. pure-JAX f32 reference (bf16 matmul tolerance).
    y_ref = lstm_model_reference(raw_params, x)
    assert bool(jnp.allclose(y, y_ref, atol=7e-2, rtol=7e-2)), (y, y_ref)

    print("KERNEL_OK")
</pallas_src>

<mosaic_0001>
module attributes {stable_mosaic.version = 11 : i64} {
  func.func @_lstm_seq_kernel(%arg0: i32, %arg1: memref<16x16xbf16, #tpu.memory_space<vmem>>, %arg2: memref<16x512xbf16, #tpu.memory_space<vmem>>, %arg3: memref<128x512xbf16, #tpu.memory_space<vmem>>, %arg4: memref<1x512xf32, #tpu.memory_space<vmem>>, %arg5: memref<16x128xbf16, #tpu.memory_space<vmem>>, %arg6: memref<16x512xf32, #tpu.memory_space<vmem>>, %arg7: memref<2x128xf32, #tpu.memory_space<vmem>>, %arg8: memref<2x128xf32, #tpu.memory_space<vmem>>) attributes {dimension_semantics = [#tpu.dimension_semantics<arbitrary>], iteration_bounds = array<i64: 1>, scalar_prefetch = 0 : i64, scratch_operands = 3 : i64, tpu.core_type = #tpu.core_type<tc>, window_params = [{transform_indices = @transform_0, window_bounds = array<i64: 16, 16>}, {pipeline_mode = #tpu.pipeline_mode<synchronous>, transform_indices = @transform_1, window_bounds = array<i64: 16, 512>}, {pipeline_mode = #tpu.pipeline_mode<synchronous>, transform_indices = @transform_2, window_bounds = array<i64: 128, 512>}, {pipeline_mode = #tpu.pipeline_mode<synchronous>, transform_indices = @transform_3, window_bounds = array<i64: 1, 512>}, {transform_indices = @transform_4, window_bounds = array<i64: 16, 128>}]} {
    %c0_i32 = arith.constant 0 : i32
    %0 = arith.cmpi eq, %arg0, %c0_i32 : i32
    %1 = arith.extui %0 : i1 to i32
    %c0_i32_0 = arith.constant 0 : i32
    %2 = arith.cmpi ne, %1, %c0_i32_0 : i32
    scf.if %2 {
      %cst_75 = arith.constant 0.000000e+00 : f32
      %263 = vector.broadcast %cst_75 : f32 to vector<2x128xf32>
      %c0_76 = arith.constant 0 : index
      %c0_77 = arith.constant 0 : index
      %264 = vector.load %arg7[%c0_76, %c0_77] : memref<2x128xf32, #tpu.memory_space<vmem>>, vector<2x128xf32>
      tpu.vector_store %arg7[%c0_76, %c0_77], %263 {strides = array<i32>} : memref<2x128xf32, #tpu.memory_space<vmem>>, vector<2x128xf32>,
      %cst_78 = arith.constant 0.000000e+00 : f32
      %265 = vector.broadcast %cst_78 : f32 to vector<2x128xf32>
      %c0_79 = arith.constant 0 : index
      %c0_80 = arith.constant 0 : index
      %266 = vector.load %arg8[%c0_79, %c0_80] : memref<2x128xf32, #tpu.memory_space<vmem>>, vector<2x128xf32>
      tpu.vector_store %arg8[%c0_79, %c0_80], %265 {strides = array<i32>} : memref<2x128xf32, #tpu.memory_space<vmem>>, vector<2x128xf32>,
    } else {
    }
    %c0 = arith.constant 0 : index
    %c0_1 = arith.constant 0 : index
    %3 = vector.load %arg1[%c0, %c0_1] : memref<16x16xbf16, #tpu.memory_space<vmem>>, vector<16x16xbf16>
    %c0_2 = arith.constant 0 : index
    %c0_3 = arith.constant 0 : index
    %4 = vector.load %arg2[%c0_2, %c0_3] : memref<16x512xbf16, #tpu.memory_space<vmem>>, vector<16x512xbf16>
    %cst = arith.constant dense<0.000000e+00> : vector<16x512xf32>
    %5 = tpu.matmul %3, %4, %cst {dimension_numbers = #tpu.dot_dimension_numbers<[1], [0], [0], [1], [0, 0, 1, 1], [], []>} : vector<16x16xbf16>, vector<16x512xbf16>, vector<16x512xf32> -> vector<16x512xf32>
    %c0_4 = arith.constant 0 : index
    %c0_5 = arith.constant 0 : index
    %6 = vector.load %arg4[%c0_4, %c0_5] : memref<1x512xf32, #tpu.memory_space<vmem>>, vector<1x512xf32>
    %7 = vector.broadcast %6 : vector<1x512xf32> to vector<16x512xf32>
    %8 = arith.addf %5, %7 : vector<16x512xf32>
    %c0_6 = arith.constant 0 : index
    %c0_7 = arith.constant 0 : index
    %9 = vector.load %arg6[%c0_6, %c0_7] : memref<16x512xf32, #tpu.memory_space<vmem>>, vector<16x512xf32>
    tpu.vector_store %arg6[%c0_6, %c0_7], %8 {strides = array<i32>} : memref<16x512xf32, #tpu.memory_space<vmem>>, vector<16x512xf32>,
    %c0_8 = arith.constant 0 : index
    %c0_9 = arith.constant 0 : index
    %10 = vector.load %arg3[%c0_8, %c0_9] : memref<128x512xbf16, #tpu.memory_space<vmem>>, vector<128x512xbf16>
    %c0_10 = arith.constant 0 : index
    %c0_11 = arith.constant 0 : index
    %11 = vector.load %arg7[%c0_10, %c0_11] : memref<2x128xf32, #tpu.memory_space<vmem>>, vector<2x128xf32>
    %c0_12 = arith.constant 0 : index
    %c0_13 = arith.constant 0 : index
    %12 = vector.load %arg8[%c0_12, %c0_13] : memref<2x128xf32, #tpu.memory_space<vmem>>, vector<2x128xf32>
    %c0_14 = arith.constant 0 : index
    %c0_15 = arith.constant 0 : index
    %13 = vector.load %arg6[%c0_14, %c0_15] : memref<16x512xf32, #tpu.memory_space<vmem>>, vector<2x512xf32>
    %14 = arith.truncf %11 : vector<2x128xf32> to vector<2x128xbf16>
    %cst_16 = arith.constant dense<0.000000e+00> : vector<2x512xf32>
    %15 = tpu.matmul %14, %10, %cst_16 {dimension_numbers = #tpu.dot_dimension_numbers<[1], [0], [0], [1], [0, 0, 1, 1], [], []>} : vector<2x128xbf16>, vector<128x512xbf16>, vector<2x512xf32> -> vector<2x512xf32>
    %16 = arith.addf %13, %15 : vector<2x512xf32>
    %17 = vector.extract_strided_slice %16 {offsets = [0, 0], sizes = [2, 128], strides = [1, 1]} : vector<2x512xf32> to vector<2x128xf32>
    %18 = arith.negf %17 : vector<2x128xf32>
    %19 = math.exp %18 : vector<2x128xf32>
    %cst_17 = arith.constant 1.000000e+00 : f32
    %20 = vector.broadcast %cst_17 : f32 to vector<2x128xf32>
    %21 = arith.addf %20, %19 : vector<2x128xf32>
    %22 = arith.divf %20, %21 : vector<2x128xf32>
    %23 = vector.extract_strided_slice %16 {offsets = [0, 128], sizes = [2, 128], strides = [1, 1]} : vector<2x512xf32> to vector<2x128xf32>
    %24 = arith.negf %23 : vector<2x128xf32>
    %25 = math.exp %24 : vector<2x128xf32>
    %cst_18 = arith.constant 1.000000e+00 : f32
    %26 = vector.broadcast %cst_18 : f32 to vector<2x128xf32>
    %27 = arith.addf %26, %25 : vector<2x128xf32>
    %28 = arith.divf %26, %27 : vector<2x128xf32>
    %29 = vector.extract_strided_slice %16 {offsets = [0, 256], sizes = [2, 128], strides = [1, 1]} : vector<2x512xf32> to vector<2x128xf32>
    %30 = math.tanh %29 : vector<2x128xf32>
    %31 = vector.extract_strided_slice %16 {offsets = [0, 384], sizes = [2, 128], strides = [1, 1]} : vector<2x512xf32> to vector<2x128xf32>
    %32 = arith.negf %31 : vector<2x128xf32>
    %33 = math.exp %32 : vector<2x128xf32>
    %cst_19 = arith.constant 1.000000e+00 : f32
    %34 = vector.broadcast %cst_19 : f32 to vector<2x128xf32>
    %35 = arith.addf %34, %33 : vector<2x128xf32>
    %36 = arith.divf %34, %35 : vector<2x128xf32>
    %37 = arith.mulf %28, %12 : vector<2x128xf32>
    %38 = arith.mulf %22, %30 : vector<2x128xf32>
    %39 = arith.addf %37, %38 : vector<2x128xf32>
    %40 = math.tanh %39 : vector<2x128xf32>
    %41 = arith.mulf %36, %40 : vector<2x128xf32>
    %42 = arith.truncf %41 : vector<2x128xf32> to vector<2x128xbf16>
    %c0_20 = arith.constant 0 : index
    %c0_21 = arith.constant 0 : index
    %43 = vector.load %arg5[%c0_20, %c0_21] : memref<16x128xbf16, #tpu.memory_space<vmem>>, vector<2x128xbf16>
    tpu.vector_store %arg5[%c0_20, %c0_21], %42 {strides = array<i32>} : memref<16x128xbf16, #tpu.memory_space<vmem>>, vector<2x128xbf16>,
    %c2 = arith.constant 2 : index
    %c0_22 = arith.constant 0 : index
    %44 = vector.load %arg6[%c2, %c0_22] : memref<16x512xf32, #tpu.memory_space<vmem>>, vector<2x512xf32>
    %45 = arith.truncf %41 : vector<2x128xf32> to vector<2x128xbf16>
    %cst_23 = arith.constant dense<0.000000e+00> : vector<2x512xf32>
    %46 = tpu.matmul %45, %10, %cst_23 {dimension_numbers = #tpu.dot_dimension_numbers<[1], [0], [0], [1], [0, 0, 1, 1], [], []>} : vector<2x128xbf16>, vector<128x512xbf16>, vector<2x512xf32> -> vector<2x512xf32>
    %47 = arith.addf %44, %46 : vector<2x512xf32>
    %48 = vector.extract_strided_slice %47 {offsets = [0, 0], sizes = [2, 128], strides = [1, 1]} : vector<2x512xf32> to vector<2x128xf32>
    %49 = arith.negf %48 : vector<2x128xf32>
    %50 = math.exp %49 : vector<2x128xf32>
    %cst_24 = arith.constant 1.000000e+00 : f32
    %51 = vector.broadcast %cst_24 : f32 to vector<2x128xf32>
    %52 = arith.addf %51, %50 : vector<2x128xf32>
    %53 = arith.divf %51, %52 : vector<2x128xf32>
    %54 = vector.extract_strided_slice %47 {offsets = [0, 128], sizes = [2, 128], strides = [1, 1]} : vector<2x512xf32> to vector<2x128xf32>
    %55 = arith.negf %54 : vector<2x128xf32>
    %56 = math.exp %55 : vector<2x128xf32>
    %cst_25 = arith.constant 1.000000e+00 : f32
    %57 = vector.broadcast %cst_25 : f32 to vector<2x128xf32>
    %58 = arith.addf %57, %56 : vector<2x128xf32>
    %59 = arith.divf %57, %58 : vector<2x128xf32>
    %60 = vector.extract_strided_slice %47 {offsets = [0, 256], sizes = [2, 128], strides = [1, 1]} : vector<2x512xf32> to vector<2x128xf32>
    %61 = math.tanh %60 : vector<2x128xf32>
    %62 = vector.extract_strided_slice %47 {offsets = [0, 384], sizes = [2, 128], strides = [1, 1]} : vector<2x512xf32> to vector<2x128xf32>
    %63 = arith.negf %62 : vector<2x128xf32>
    %64 = math.exp %63 : vector<2x128xf32>
    %cst_26 = arith.constant 1.000000e+00 : f32
    %65 = vector.broadcast %cst_26 : f32 to vector<2x128xf32>
    %66 = arith.addf %65, %64 : vector<2x128xf32>
    %67 = arith.divf %65, %66 : vector<2x128xf32>
    %68 = arith.mulf %59, %39 : vector<2x128xf32>
    %69 = arith.mulf %53, %61 : vector<2x128xf32>
    %70 = arith.addf %68, %69 : vector<2x128xf32>
    %71 = math.tanh %70 : vector<2x128xf32>
    %72 = arith.mulf %67, %71 : vector<2x128xf32>
    %73 = arith.truncf %72 : vector<2x128xf32> to vector<2x128xbf16>
    %c2_27 = arith.constant 2 : index
    %c0_28 = arith.constant 0 : index
    %74 = vector.load %arg5[%c2_27, %c0_28] : memref<16x128xbf16, #tpu.memory_space<vmem>>, vector<2x128xbf16>
    tpu.vector_store %arg5[%c2_27, %c0_28], %73 {strides = array<i32>} : memref<16x128xbf16, #tpu.memory_space<vmem>>, vector<2x128xbf16>,
    %c4 = arith.constant 4 : index
    %c0_29 = arith.constant 0 : index
    %75 = vector.load %arg6[%c4, %c0_29] : memref<16x512xf32, #tpu.memory_space<vmem>>, vector<2x512xf32>
    %76 = arith.truncf %72 : vector<2x128xf32> to vector<2x128xbf16>
    %cst_30 = arith.constant dense<0.000000e+00> : vector<2x512xf32>
    %77 = tpu.matmul %76, %10, %cst_30 {dimension_numbers = #tpu.dot_dimension_numbers<[1], [0], [0], [1], [0, 0, 1, 1], [], []>} : vector<2x128xbf16>, vector<128x512xbf16>, vector<2x512xf32> -> vector<2x512xf32>
    %78 = arith.addf %75, %77 : vector<2x512xf32>
    %79 = vector.extract_strided_slice %78 {offsets = [0, 0], sizes = [2, 128], strides = [1, 1]} : vector<2x512xf32> to vector<2x128xf32>
    %80 = arith.negf %79 : vector<2x128xf32>
    %81 = math.exp %80 : vector<2x128xf32>
    %cst_31 = arith.constant 1.000000e+00 : f32
    %82 = vector.broadcast %cst_31 : f32 to vector<2x128xf32>
    %83 = arith.addf %82, %81 : vector<2x128xf32>
    %84 = arith.divf %82, %83 : vector<2x128xf32>
    %85 = vector.extract_strided_slice %78 {offsets = [0, 128], sizes = [2, 128], strides = [1, 1]} : vector<2x512xf32> to vector<2x128xf32>
    %86 = arith.negf %85 : vector<2x128xf32>
    %87 = math.exp %86 : vector<2x128xf32>
    %cst_32 = arith.constant 1.000000e+00 : f32
    %88 = vector.broadcast %cst_32 : f32 to vector<2x128xf32>
    %89 = arith.addf %88, %87 : vector<2x128xf32>
    %90 = arith.divf %88, %89 : vector<2x128xf32>
    %91 = vector.extract_strided_slice %78 {offsets = [0, 256], sizes = [2, 128], strides = [1, 1]} : vector<2x512xf32> to vector<2x128xf32>
    %92 = math.tanh %91 : vector<2x128xf32>
    %93 = vector.extract_strided_slice %78 {offsets = [0, 384], sizes = [2, 128], strides = [1, 1]} : vector<2x512xf32> to vector<2x128xf32>
    %94 = arith.negf %93 : vector<2x128xf32>
    %95 = math.exp %94 : vector<2x128xf32>
    %cst_33 = arith.constant 1.000000e+00 : f32
    %96 = vector.broadcast %cst_33 : f32 to vector<2x128xf32>
    %97 = arith.addf %96, %95 : vector<2x128xf32>
    %98 = arith.divf %96, %97 : vector<2x128xf32>
    %99 = arith.mulf %90, %70 : vector<2x128xf32>
    %100 = arith.mulf %84, %92 : vector<2x128xf32>
    %101 = arith.addf %99, %100 : vector<2x128xf32>
    %102 = math.tanh %101 : vector<2x128xf32>
    %103 = arith.mulf %98, %102 : vector<2x128xf32>
    %104 = arith.truncf %103 : vector<2x128xf32> to vector<2x128xbf16>
    %c4_34 = arith.constant 4 : index
    %c0_35 = arith.constant 0 : index
    %105 = vector.load %arg5[%c4_34, %c0_35] : memref<16x128xbf16, #tpu.memory_space<vmem>>, vector<2x128xbf16>
    tpu.vector_store %arg5[%c4_34, %c0_35], %104 {strides = array<i32>} : memref<16x128xbf16, #tpu.memory_space<vmem>>, vector<2x128xbf16>,
    %c6 = arith.constant 6 : index
    %c0_36 = arith.constant 0 : index
    %106 = vector.load %arg6[%c6, %c0_36] : memref<16x512xf32, #tpu.memory_space<vmem>>, vector<2x512xf32>
    %107 = arith.truncf %103 : vector<2x128xf32> to vector<2x128xbf16>
    %cst_37 = arith.constant dense<0.000000e+00> : vector<2x512xf32>
    %108 = tpu.matmul %107, %10, %cst_37 {dimension_numbers = #tpu.dot_dimension_numbers<[1], [0], [0], [1], [0, 0, 1, 1], [], []>} : vector<2x128xbf16>, vector<128x512xbf16>, vector<2x512xf32> -> vector<2x512xf32>
    %109 = arith.addf %106, %108 : vector<2x512xf32>
    %110 = vector.extract_strided_slice %109 {offsets = [0, 0], sizes = [2, 128], strides = [1, 1]} : vector<2x512xf32> to vector<2x128xf32>
    %111 = arith.negf %110 : vector<2x128xf32>
    %112 = math.exp %111 : vector<2x128xf32>
    %cst_38 = arith.constant 1.000000e+00 : f32
    %113 = vector.broadcast %cst_38 : f32 to vector<2x128xf32>
    %114 = arith.addf %113, %112 : vector<2x128xf32>
    %115 = arith.divf %113, %114 : vector<2x128xf32>
    %116 = vector.extract_strided_slice %109 {offsets = [0, 128], sizes = [2, 128], strides = [1, 1]} : vector<2x512xf32> to vector<2x128xf32>
    %117 = arith.negf %116 : vector<2x128xf32>
    %118 = math.exp %117 : vector<2x128xf32>
    %cst_39 = arith.constant 1.000000e+00 : f32
    %119 = vector.broadcast %cst_39 : f32 to vector<2x128xf32>
    %120 = arith.addf %119, %118 : vector<2x128xf32>
    %121 = arith.divf %119, %120 : vector<2x128xf32>
    %122 = vector.extract_strided_slice %109 {offsets = [0, 256], sizes = [2, 128], strides = [1, 1]} : vector<2x512xf32> to vector<2x128xf32>
    %123 = math.tanh %122 : vector<2x128xf32>
    %124 = vector.extract_strided_slice %109 {offsets = [0, 384], sizes = [2, 128], strides = [1, 1]} : vector<2x512xf32> to vector<2x128xf32>
    %125 = arith.negf %124 : vector<2x128xf32>
    %126 = math.exp %125 : vector<2x128xf32>
    %cst_40 = arith.constant 1.000000e+00 : f32
    %127 = vector.broadcast %cst_40 : f32 to vector<2x128xf32>
    %128 = arith.addf %127, %126 : vector<2x128xf32>
    %129 = arith.divf %127, %128 : vector<2x128xf32>
    %130 = arith.mulf %121, %101 : vector<2x128xf32>
    %131 = arith.mulf %115, %123 : vector<2x128xf32>
    %132 = arith.addf %130, %131 : vector<2x128xf32>
    %133 = math.tanh %132 : vector<2x128xf32>
    %134 = arith.mulf %129, %133 : vector<2x128xf32>
    %135 = arith.truncf %134 : vector<2x128xf32> to vector<2x128xbf16>
    %c6_41 = arith.constant 6 : index
    %c0_42 = arith.constant 0 : index
    %136 = vector.load %arg5[%c6_41, %c0_42] : memref<16x128xbf16, #tpu.memory_space<vmem>>, vector<2x128xbf16>
    tpu.vector_store %arg5[%c6_41, %c0_42], %135 {strides = array<i32>} : memref<16x128xbf16, #tpu.memory_space<vmem>>, vector<2x128xbf16>,
    %c8 = arith.constant 8 : index
    %c0_43 = arith.constant 0 : index
    %137 = vector.load %arg6[%c8, %c0_43] : memref<16x512xf32, #tpu.memory_space<vmem>>, vector<2x512xf32>
    %138 = arith.truncf %134 : vector<2x128xf32> to vector<2x128xbf16>
    %cst_44 = arith.constant dense<0.000000e+00> : vector<2x512xf32>
    %139 = tpu.matmul %138, %10, %cst_44 {dimension_numbers = #tpu.dot_dimension_numbers<[1], [0], [0], [1], [0, 0, 1, 1], [], []>} : vector<2x128xbf16>, vector<128x512xbf16>, vector<2x512xf32> -> vector<2x512xf32>
    %140 = arith.addf %137, %139 : vector<2x512xf32>
    %141 = vector.extract_strided_slice %140 {offsets = [0, 0], sizes = [2, 128], strides = [1, 1]} : vector<2x512xf32> to vector<2x128xf32>
    %142 = arith.negf %141 : vector<2x128xf32>
    %143 = math.exp %142 : vector<2x128xf32>
    %cst_45 = arith.constant 1.000000e+00 : f32
    %144 = vector.broadcast %cst_45 : f32 to vector<2x128xf32>
    %145 = arith.addf %144, %143 : vector<2x128xf32>
    %146 = arith.divf %144, %145 : vector<2x128xf32>
    %147 = vector.extract_strided_slice %140 {offsets = [0, 128], sizes = [2, 128], strides = [1, 1]} : vector<2x512xf32> to vector<2x128xf32>
    %148 = arith.negf %147 : vector<2x128xf32>
    %149 = math.exp %148 : vector<2x128xf32>
    %cst_46 = arith.constant 1.000000e+00 : f32
    %150 = vector.broadcast %cst_46 : f32 to vector<2x128xf32>
    %151 = arith.addf %150, %149 : vector<2x128xf32>
    %152 = arith.divf %150, %151 : vector<2x128xf32>
    %153 = vector.extract_strided_slice %140 {offsets = [0, 256], sizes = [2, 128], strides = [1, 1]} : vector<2x512xf32> to vector<2x128xf32>
    %154 = math.tanh %153 : vector<2x128xf32>
    %155 = vector.extract_strided_slice %140 {offsets = [0, 384], sizes = [2, 128], strides = [1, 1]} : vector<2x512xf32> to vector<2x128xf32>
    %156 = arith.negf %155 : vector<2x128xf32>
    %157 = math.exp %156 : vector<2x128xf32>
    %cst_47 = arith.constant 1.000000e+00 : f32
    %158 = vector.broadcast %cst_47 : f32 to vector<2x128xf32>
    %159 = arith.addf %158, %157 : vector<2x128xf32>
    %160 = arith.divf %158, %159 : vector<2x128xf32>
    %161 = arith.mulf %152, %132 : vector<2x128xf32>
    %162 = arith.mulf %146, %154 : vector<2x128xf32>
    %163 = arith.addf %161, %162 : vector<2x128xf32>
    %164 = math.tanh %163 : vector<2x128xf32>
    %165 = arith.mulf %160, %164 : vector<2x128xf32>
    %166 = arith.truncf %165 : vector<2x128xf32> to vector<2x128xbf16>
    %c8_48 = arith.constant 8 : index
    %c0_49 = arith.constant 0 : index
    %167 = vector.load %arg5[%c8_48, %c0_49] : memref<16x128xbf16, #tpu.memory_space<vmem>>, vector<2x128xbf16>
    tpu.vector_store %arg5[%c8_48, %c0_49], %166 {strides = array<i32>} : memref<16x128xbf16, #tpu.memory_space<vmem>>, vector<2x128xbf16>,
    %c10 = arith.constant 10 : index
    %c0_50 = arith.constant 0 : index
    %168 = vector.load %arg6[%c10, %c0_50] : memref<16x512xf32, #tpu.memory_space<vmem>>, vector<2x512xf32>
    %169 = arith.truncf %165 : vector<2x128xf32> to vector<2x128xbf16>
    %cst_51 = arith.constant dense<0.000000e+00> : vector<2x512xf32>
    %170 = tpu.matmul %169, %10, %cst_51 {dimension_numbers = #tpu.dot_dimension_numbers<[1], [0], [0], [1], [0, 0, 1, 1], [], []>} : vector<2x128xbf16>, vector<128x512xbf16>, vector<2x512xf32> -> vector<2x512xf32>
    %171 = arith.addf %168, %170 : vector<2x512xf32>
    %172 = vector.extract_strided_slice %171 {offsets = [0, 0], sizes = [2, 128], strides = [1, 1]} : vector<2x512xf32> to vector<2x128xf32>
    %173 = arith.negf %172 : vector<2x128xf32>
    %174 = math.exp %173 : vector<2x128xf32>
    %cst_52 = arith.constant 1.000000e+00 : f32
    %175 = vector.broadcast %cst_52 : f32 to vector<2x128xf32>
    %176 = arith.addf %175, %174 : vector<2x128xf32>
    %177 = arith.divf %175, %176 : vector<2x128xf32>
    %178 = vector.extract_strided_slice %171 {offsets = [0, 128], sizes = [2, 128], strides = [1, 1]} : vector<2x512xf32> to vector<2x128xf32>
    %179 = arith.negf %178 : vector<2x128xf32>
    %180 = math.exp %179 : vector<2x128xf32>
    %cst_53 = arith.constant 1.000000e+00 : f32
    %181 = vector.broadcast %cst_53 : f32 to vector<2x128xf32>
    %182 = arith.addf %181, %180 : vector<2x128xf32>
    %183 = arith.divf %181, %182 : vector<2x128xf32>
    %184 = vector.extract_strided_slice %171 {offsets = [0, 256], sizes = [2, 128], strides = [1, 1]} : vector<2x512xf32> to vector<2x128xf32>
    %185 = math.tanh %184 : vector<2x128xf32>
    %186 = vector.extract_strided_slice %171 {offsets = [0, 384], sizes = [2, 128], strides = [1, 1]} : vector<2x512xf32> to vector<2x128xf32>
    %187 = arith.negf %186 : vector<2x128xf32>
    %188 = math.exp %187 : vector<2x128xf32>
    %cst_54 = arith.constant 1.000000e+00 : f32
    %189 = vector.broadcast %cst_54 : f32 to vector<2x128xf32>
    %190 = arith.addf %189, %188 : vector<2x128xf32>
    %191 = arith.divf %189, %190 : vector<2x128xf32>
    %192 = arith.mulf %183, %163 : vector<2x128xf32>
    %193 = arith.mulf %177, %185 : vector<2x128xf32>
    %194 = arith.addf %192, %193 : vector<2x128xf32>
    %195 = math.tanh %194 : vector<2x128xf32>
    %196 = arith.mulf %191, %195 : vector<2x128xf32>
    %197 = arith.truncf %196 : vector<2x128xf32> to vector<2x128xbf16>
    %c10_55 = arith.constant 10 : index
    %c0_56 = arith.constant 0 : index
    %198 = vector.load %arg5[%c10_55, %c0_56] : memref<16x128xbf16, #tpu.memory_space<vmem>>, vector<2x128xbf16>
    tpu.vector_store %arg5[%c10_55, %c0_56], %197 {strides = array<i32>} : memref<16x128xbf16, #tpu.memory_space<vmem>>, vector<2x128xbf16>,
    %c12 = arith.constant 12 : index
    %c0_57 = arith.constant 0 : index
    %199 = vector.load %arg6[%c12, %c0_57] : memref<16x512xf32, #tpu.memory_space<vmem>>, vector<2x512xf32>
    %200 = arith.truncf %196 : vector<2x128xf32> to vector<2x128xbf16>
    %cst_58 = arith.constant dense<0.000000e+00> : vector<2x512xf32>
    %201 = tpu.matmul %200, %10, %cst_58 {dimension_numbers = #tpu.dot_dimension_numbers<[1], [0], [0], [1], [0, 0, 1, 1], [], []>} : vector<2x128xbf16>, vector<128x512xbf16>, vector<2x512xf32> -> vector<2x512xf32>
    %202 = arith.addf %199, %201 : vector<2x512xf32>
    %203 = vector.extract_strided_slice %202 {offsets = [0, 0], sizes = [2, 128], strides = [1, 1]} : vector<2x512xf32> to vector<2x128xf32>
    %204 = arith.negf %203 : vector<2x128xf32>
    %205 = math.exp %204 : vector<2x128xf32>
    %cst_59 = arith.constant 1.000000e+00 : f32
    %206 = vector.broadcast %cst_59 : f32 to vector<2x128xf32>
    %207 = arith.addf %206, %205 : vector<2x128xf32>
    %208 = arith.divf %206, %207 : vector<2x128xf32>
    %209 = vector.extract_strided_slice %202 {offsets = [0, 128], sizes = [2, 128], strides = [1, 1]} : vector<2x512xf32> to vector<2x128xf32>
    %210 = arith.negf %209 : vector<2x128xf32>
    %211 = math.exp %210 : vector<2x128xf32>
    %cst_60 = arith.constant 1.000000e+00 : f32
    %212 = vector.broadcast %cst_60 : f32 to vector<2x128xf32>
    %213 = arith.addf %212, %211 : vector<2x128xf32>
    %214 = arith.divf %212, %213 : vector<2x128xf32>
    %215 = vector.extract_strided_slice %202 {offsets = [0, 256], sizes = [2, 128], strides = [1, 1]} : vector<2x512xf32> to vector<2x128xf32>
    %216 = math.tanh %215 : vector<2x128xf32>
    %217 = vector.extract_strided_slice %202 {offsets = [0, 384], sizes = [2, 128], strides = [1, 1]} : vector<2x512xf32> to vector<2x128xf32>
    %218 = arith.negf %217 : vector<2x128xf32>
    %219 = math.exp %218 : vector<2x128xf32>
    %cst_61 = arith.constant 1.000000e+00 : f32
    %220 = vector.broadcast %cst_61 : f32 to vector<2x128xf32>
    %221 = arith.addf %220, %219 : vector<2x128xf32>
    %222 = arith.divf %220, %221 : vector<2x128xf32>
    %223 = arith.mulf %214, %194 : vector<2x128xf32>
    %224 = arith.mulf %208, %216 : vector<2x128xf32>
    %225 = arith.addf %223, %224 : vector<2x128xf32>
    %226 = math.tanh %225 : vector<2x128xf32>
    %227 = arith.mulf %222, %226 : vector<2x128xf32>
    %228 = arith.truncf %227 : vector<2x128xf32> to vector<2x128xbf16>
    %c12_62 = arith.constant 12 : index
    %c0_63 = arith.constant 0 : index
    %229 = vector.load %arg5[%c12_62, %c0_63] : memref<16x128xbf16, #tpu.memory_space<vmem>>, vector<2x128xbf16>
    tpu.vector_store %arg5[%c12_62, %c0_63], %228 {strides = array<i32>} : memref<16x128xbf16, #tpu.memory_space<vmem>>, vector<2x128xbf16>,
    %c14 = arith.constant 14 : index
    %c0_64 = arith.constant 0 : index
    %230 = vector.load %arg6[%c14, %c0_64] : memref<16x512xf32, #tpu.memory_space<vmem>>, vector<2x512xf32>
    %231 = arith.truncf %227 : vector<2x128xf32> to vector<2x128xbf16>
    %cst_65 = arith.constant dense<0.000000e+00> : vector<2x512xf32>
    %232 = tpu.matmul %231, %10, %cst_65 {dimension_numbers = #tpu.dot_dimension_numbers<[1], [0], [0], [1], [0, 0, 1, 1], [], []>} : vector<2x128xbf16>, vector<128x512xbf16>, vector<2x512xf32> -> vector<2x512xf32>
    %233 = arith.addf %230, %232 : vector<2x512xf32>
    %234 = vector.extract_strided_slice %233 {offsets = [0, 0], sizes = [2, 128], strides = [1, 1]} : vector<2x512xf32> to vector<2x128xf32>
    %235 = arith.negf %234 : vector<2x128xf32>
    %236 = math.exp %235 : vector<2x128xf32>
    %cst_66 = arith.constant 1.000000e+00 : f32
    %237 = vector.broadcast %cst_66 : f32 to vector<2x128xf32>
    %238 = arith.addf %237, %236 : vector<2x128xf32>
    %239 = arith.divf %237, %238 : vector<2x128xf32>
    %240 = vector.extract_strided_slice %233 {offsets = [0, 128], sizes = [2, 128], strides = [1, 1]} : vector<2x512xf32> to vector<2x128xf32>
    %241 = arith.negf %240 : vector<2x128xf32>
    %242 = math.exp %241 : vector<2x128xf32>
    %cst_67 = arith.constant 1.000000e+00 : f32
    %243 = vector.broadcast %cst_67 : f32 to vector<2x128xf32>
    %244 = arith.addf %243, %242 : vector<2x128xf32>
    %245 = arith.divf %243, %244 : vector<2x128xf32>
    %246 = vector.extract_strided_slice %233 {offsets = [0, 256], sizes = [2, 128], strides = [1, 1]} : vector<2x512xf32> to vector<2x128xf32>
    %247 = math.tanh %246 : vector<2x128xf32>
    %248 = vector.extract_strided_slice %233 {offsets = [0, 384], sizes = [2, 128], strides = [1, 1]} : vector<2x512xf32> to vector<2x128xf32>
    %249 = arith.negf %248 : vector<2x128xf32>
    %250 = math.exp %249 : vector<2x128xf32>
    %cst_68 = arith.constant 1.000000e+00 : f32
    %251 = vector.broadcast %cst_68 : f32 to vector<2x128xf32>
    %252 = arith.addf %251, %250 : vector<2x128xf32>
    %253 = arith.divf %251, %252 : vector<2x128xf32>
    %254 = arith.mulf %245, %225 : vector<2x128xf32>
    %255 = arith.mulf %239, %247 : vector<2x128xf32>
    %256 = arith.addf %254, %255 : vector<2x128xf32>
    %257 = math.tanh %256 : vector<2x128xf32>
    %258 = arith.mulf %253, %257 : vector<2x128xf32>
    %259 = arith.truncf %258 : vector<2x128xf32> to vector<2x128xbf16>
    %c14_69 = arith.constant 14 : index
    %c0_70 = arith.constant 0 : index
    %260 = vector.load %arg5[%c14_69, %c0_70] : memref<16x128xbf16, #tpu.memory_space<vmem>>, vector<2x128xbf16>
    tpu.vector_store %arg5[%c14_69, %c0_70], %259 {strides = array<i32>} : memref<16x128xbf16, #tpu.memory_space<vmem>>, vector<2x128xbf16>,
    %c0_71 = arith.constant 0 : index
    %c0_72 = arith.constant 0 : index
    %261 = vector.load %arg7[%c0_71, %c0_72] : memref<2x128xf32, #tpu.memory_space<vmem>>, vector<2x128xf32>
    tpu.vector_store %arg7[%c0_71, %c0_72], %258 {strides = array<i32>} : memref<2x128xf32, #tpu.memory_space<vmem>>, vector<2x128xf32>,
    %c0_73 = arith.constant 0 : index
    %c0_74 = arith.constant 0 : index
    %262 = vector.load %arg8[%c0_73, %c0_74] : memref<2x128xf32, #tpu.memory_space<vmem>>, vector<2x128xf32>
    tpu.vector_store %arg8[%c0_73, %c0_74], %256 {strides = array<i32>} : memref<2x128xf32, #tpu.memory_space<vmem>>, vector<2x128xf32>,
    return
  }
  func.func @transform_0(%arg0: i32) -> (i32, i32) {
    %c0_i32 = arith.constant 0 : i32
    %c0_i32_0 = arith.constant 0 : i32
    return %arg0, %c0_i32 : i32, i32
  }
  func.func @transform_1(%arg0: i32) -> (i32, i32) {
    %c0_i32 = arith.constant 0 : i32
    %c0_i32_0 = arith.constant 0 : i32
    %c0_i32_1 = arith.constant 0 : i32
    return %c0_i32, %c0_i32_0 : i32, i32
  }
  func.func @transform_2(%arg0: i32) -> (i32, i32) {
    %c0_i32 = arith.constant 0 : i32
    %c0_i32_0 = arith.constant 0 : i32
    %c0_i32_1 = arith.constant 0 : i32
    return %c0_i32, %c0_i32_0 : i32, i32
  }
  func.func @transform_3(%arg0: i32) -> (i32, i32) {
    %c0_i32 = arith.constant 0 : i32
    %c0_i32_0 = arith.constant 0 : i32
    %c0_i32_1 = arith.constant 0 : i32
    return %c0_i32, %c0_i32_0 : i32, i32
  }
  func.func @transform_4(%arg0: i32) -> (i32, i32) {
    %c0_i32 = arith.constant 0 : i32
    %c0_i32_0 = arith.constant 0 : i32
    return %arg0, %c0_i32 : i32, i32
  }
}

module attributes {stable_mosaic.version = 11 : i64} {
  func.func @_lstm_last_kernel(%arg0: i32, %arg1: memref<16x128xbf16, #tpu.memory_space<vmem>>, %arg2: memref<128x512xbf16, #tpu.memory_space<vmem>>, %arg3: memref<128x512xbf16, #tpu.memory_space<vmem>>, %arg4: memref<1x512xf32, #tpu.memory_space<vmem>>, %arg5: memref<128x4xbf16, #tpu.memory_space<vmem>>, %arg6: memref<1x4xf32, #tpu.memory_space<vmem>>, %arg7: memref<2x4xf32, #tpu.memory_space<vmem>>, %arg8: memref<16x512xf32, #tpu.memory_space<vmem>>, %arg9: memref<2x128xf32, #tpu.memory_space<vmem>>, %arg10: memref<2x128xf32, #tpu.memory_space<vmem>>) attributes {dimension_semantics = [#tpu.dimension_semantics<arbitrary>], iteration_bounds = array<i64: 1>, scalar_prefetch = 0 : i64, scratch_operands = 3 : i64, tpu.core_type = #tpu.core_type<tc>, window_params = [{transform_indices = @transform_0, window_bounds = array<i64: 16, 128>}, {pipeline_mode = #tpu.pipeline_mode<synchronous>, transform_indices = @transform_1, window_bounds = array<i64: 128, 512>}, {pipeline_mode = #tpu.pipeline_mode<synchronous>, transform_indices = @transform_2, window_bounds = array<i64: 128, 512>}, {pipeline_mode = #tpu.pipeline_mode<synchronous>, transform_indices = @transform_3, window_bounds = array<i64: 1, 512>}, {pipeline_mode = #tpu.pipeline_mode<synchronous>, transform_indices = @transform_4, window_bounds = array<i64: 128, 4>}, {pipeline_mode = #tpu.pipeline_mode<synchronous>, transform_indices = @transform_5, window_bounds = array<i64: 1, 4>}, {pipeline_mode = #tpu.pipeline_mode<synchronous>, transform_indices = @transform_6, window_bounds = array<i64: 2, 4>}]} {
    %c0_i32 = arith.constant 0 : i32
    %0 = arith.cmpi eq, %arg0, %c0_i32 : i32
    %1 = arith.extui %0 : i1 to i32
    %c0_i32_0 = arith.constant 0 : i32
    %2 = arith.cmpi ne, %1, %c0_i32_0 : i32
    scf.if %2 {
      %cst_61 = arith.constant 0.000000e+00 : f32
      %250 = vector.broadcast %cst_61 : f32 to vector<2x128xf32>
      %c0_62 = arith.constant 0 : index
      %c0_63 = arith.constant 0 : index
      %251 = vector.load %arg9[%c0_62, %c0_63] : memref<2x128xf32, #tpu.memory_space<vmem>>, vector<2x128xf32>
      tpu.vector_store %arg9[%c0_62, %c0_63], %250 {strides = array<i32>} : memref<2x128xf32, #tpu.memory_space<vmem>>, vector<2x128xf32>,
      %cst_64 = arith.constant 0.000000e+00 : f32
      %252 = vector.broadcast %cst_64 : f32 to vector<2x128xf32>
      %c0_65 = arith.constant 0 : index
      %c0_66 = arith.constant 0 : index
      %253 = vector.load %arg10[%c0_65, %c0_66] : memref<2x128xf32, #tpu.memory_space<vmem>>, vector<2x128xf32>
      tpu.vector_store %arg10[%c0_65, %c0_66], %252 {strides = array<i32>} : memref<2x128xf32, #tpu.memory_space<vmem>>, vector<2x128xf32>,
    } else {
    }
    %c0 = arith.constant 0 : index
    %c0_1 = arith.constant 0 : index
    %3 = vector.load %arg1[%c0, %c0_1] : memref<16x128xbf16, #tpu.memory_space<vmem>>, vector<16x128xbf16>
    %c0_2 = arith.constant 0 : index
    %c0_3 = arith.constant 0 : index
    %4 = vector.load %arg2[%c0_2, %c0_3] : memref<128x512xbf16, #tpu.memory_space<vmem>>, vector<128x512xbf16>
    %cst = arith.constant dense<0.000000e+00> : vector<16x512xf32>
    %5 = tpu.matmul %3, %4, %cst {dimension_numbers = #tpu.dot_dimension_numbers<[1], [0], [0], [1], [0, 0, 1, 1], [], []>} : vector<16x128xbf16>, vector<128x512xbf16>, vector<16x512xf32> -> vector<16x512xf32>
    %c0_4 = arith.constant 0 : index
    %c0_5 = arith.constant 0 : index
    %6 = vector.load %arg4[%c0_4, %c0_5] : memref<1x512xf32, #tpu.memory_space<vmem>>, vector<1x512xf32>
    %7 = vector.broadcast %6 : vector<1x512xf32> to vector<16x512xf32>
    %8 = arith.addf %5, %7 : vector<16x512xf32>
    %c0_6 = arith.constant 0 : index
    %c0_7 = arith.constant 0 : index
    %9 = vector.load %arg8[%c0_6, %c0_7] : memref<16x512xf32, #tpu.memory_space<vmem>>, vector<16x512xf32>
    tpu.vector_store %arg8[%c0_6, %c0_7], %8 {strides = array<i32>} : memref<16x512xf32, #tpu.memory_space<vmem>>, vector<16x512xf32>,
    %c0_8 = arith.constant 0 : index
    %c0_9 = arith.constant 0 : index
    %10 = vector.load %arg3[%c0_8, %c0_9] : memref<128x512xbf16, #tpu.memory_space<vmem>>, vector<128x512xbf16>
    %c0_10 = arith.constant 0 : index
    %c0_11 = arith.constant 0 : index
    %11 = vector.load %arg9[%c0_10, %c0_11] : memref<2x128xf32, #tpu.memory_space<vmem>>, vector<2x128xf32>
    %c0_12 = arith.constant 0 : index
    %c0_13 = arith.constant 0 : index
    %12 = vector.load %arg10[%c0_12, %c0_13] : memref<2x128xf32, #tpu.memory_space<vmem>>, vector<2x128xf32>
    %c0_14 = arith.constant 0 : index
    %c0_15 = arith.constant 0 : index
    %13 = vector.load %arg8[%c0_14, %c0_15] : memref<16x512xf32, #tpu.memory_space<vmem>>, vector<2x512xf32>
    %14 = arith.truncf %11 : vector<2x128xf32> to vector<2x128xbf16>
    %cst_16 = arith.constant dense<0.000000e+00> : vector<2x512xf32>
    %15 = tpu.matmul %14, %10, %cst_16 {dimension_numbers = #tpu.dot_dimension_numbers<[1], [0], [0], [1], [0, 0, 1, 1], [], []>} : vector<2x128xbf16>, vector<128x512xbf16>, vector<2x512xf32> -> vector<2x512xf32>
    %16 = arith.addf %13, %15 : vector<2x512xf32>
    %17 = vector.extract_strided_slice %16 {offsets = [0, 0], sizes = [2, 128], strides = [1, 1]} : vector<2x512xf32> to vector<2x128xf32>
    %18 = arith.negf %17 : vector<2x128xf32>
    %19 = math.exp %18 : vector<2x128xf32>
    %cst_17 = arith.constant 1.000000e+00 : f32
    %20 = vector.broadcast %cst_17 : f32 to vector<2x128xf32>
    %21 = arith.addf %20, %19 : vector<2x128xf32>
    %22 = arith.divf %20, %21 : vector<2x128xf32>
    %23 = vector.extract_strided_slice %16 {offsets = [0, 128], sizes = [2, 128], strides = [1, 1]} : vector<2x512xf32> to vector<2x128xf32>
    %24 = arith.negf %23 : vector<2x128xf32>
    %25 = math.exp %24 : vector<2x128xf32>
    %cst_18 = arith.constant 1.000000e+00 : f32
    %26 = vector.broadcast %cst_18 : f32 to vector<2x128xf32>
    %27 = arith.addf %26, %25 : vector<2x128xf32>
    %28 = arith.divf %26, %27 : vector<2x128xf32>
    %29 = vector.extract_strided_slice %16 {offsets = [0, 256], sizes = [2, 128], strides = [1, 1]} : vector<2x512xf32> to vector<2x128xf32>
    %30 = math.tanh %29 : vector<2x128xf32>
    %31 = vector.extract_strided_slice %16 {offsets = [0, 384], sizes = [2, 128], strides = [1, 1]} : vector<2x512xf32> to vector<2x128xf32>
    %32 = arith.negf %31 : vector<2x128xf32>
    %33 = math.exp %32 : vector<2x128xf32>
    %cst_19 = arith.constant 1.000000e+00 : f32
    %34 = vector.broadcast %cst_19 : f32 to vector<2x128xf32>
    %35 = arith.addf %34, %33 : vector<2x128xf32>
    %36 = arith.divf %34, %35 : vector<2x128xf32>
    %37 = arith.mulf %28, %12 : vector<2x128xf32>
    %38 = arith.mulf %22, %30 : vector<2x128xf32>
    %39 = arith.addf %37, %38 : vector<2x128xf32>
    %40 = math.tanh %39 : vector<2x128xf32>
    %41 = arith.mulf %36, %40 : vector<2x128xf32>
    %c2 = arith.constant 2 : index
    %c0_20 = arith.constant 0 : index
    %42 = vector.load %arg8[%c2, %c0_20] : memref<16x512xf32, #tpu.memory_space<vmem>>, vector<2x512xf32>
    %43 = arith.truncf %41 : vector<2x128xf32> to vector<2x128xbf16>
    %cst_21 = arith.constant dense<0.000000e+00> : vector<2x512xf32>
    %44 = tpu.matmul %43, %10, %cst_21 {dimension_numbers = #tpu.dot_dimension_numbers<[1], [0], [0], [1], [0, 0, 1, 1], [], []>} : vector<2x128xbf16>, vector<128x512xbf16>, vector<2x512xf32> -> vector<2x512xf32>
    %45 = arith.addf %42, %44 : vector<2x512xf32>
    %46 = vector.extract_strided_slice %45 {offsets = [0, 0], sizes = [2, 128], strides = [1, 1]} : vector<2x512xf32> to vector<2x128xf32>
    %47 = arith.negf %46 : vector<2x128xf32>
    %48 = math.exp %47 : vector<2x128xf32>
    %cst_22 = arith.constant 1.000000e+00 : f32
    %49 = vector.broadcast %cst_22 : f32 to vector<2x128xf32>
    %50 = arith.addf %49, %48 : vector<2x128xf32>
    %51 = arith.divf %49, %50 : vector<2x128xf32>
    %52 = vector.extract_strided_slice %45 {offsets = [0, 128], sizes = [2, 128], strides = [1, 1]} : vector<2x512xf32> to vector<2x128xf32>
    %53 = arith.negf %52 : vector<2x128xf32>
    %54 = math.exp %53 : vector<2x128xf32>
    %cst_23 = arith.constant 1.000000e+00 : f32
    %55 = vector.broadcast %cst_23 : f32 to vector<2x128xf32>
    %56 = arith.addf %55, %54 : vector<2x128xf32>
    %57 = arith.divf %55, %56 : vector<2x128xf32>
    %58 = vector.extract_strided_slice %45 {offsets = [0, 256], sizes = [2, 128], strides = [1, 1]} : vector<2x512xf32> to vector<2x128xf32>
    %59 = math.tanh %58 : vector<2x128xf32>
    %60 = vector.extract_strided_slice %45 {offsets = [0, 384], sizes = [2, 128], strides = [1, 1]} : vector<2x512xf32> to vector<2x128xf32>
    %61 = arith.negf %60 : vector<2x128xf32>
    %62 = math.exp %61 : vector<2x128xf32>
    %cst_24 = arith.constant 1.000000e+00 : f32
    %63 = vector.broadcast %cst_24 : f32 to vector<2x128xf32>
    %64 = arith.addf %63, %62 : vector<2x128xf32>
    %65 = arith.divf %63, %64 : vector<2x128xf32>
    %66 = arith.mulf %57, %39 : vector<2x128xf32>
    %67 = arith.mulf %51, %59 : vector<2x128xf32>
    %68 = arith.addf %66, %67 : vector<2x128xf32>
    %69 = math.tanh %68 : vector<2x128xf32>
    %70 = arith.mulf %65, %69 : vector<2x128xf32>
    %c4 = arith.constant 4 : index
    %c0_25 = arith.constant 0 : index
    %71 = vector.load %arg8[%c4, %c0_25] : memref<16x512xf32, #tpu.memory_space<vmem>>, vector<2x512xf32>
    %72 = arith.truncf %70 : vector<2x128xf32> to vector<2x128xbf16>
    %cst_26 = arith.constant dense<0.000000e+00> : vector<2x512xf32>
    %73 = tpu.matmul %72, %10, %cst_26 {dimension_numbers = #tpu.dot_dimension_numbers<[1], [0], [0], [1], [0, 0, 1, 1], [], []>} : vector<2x128xbf16>, vector<128x512xbf16>, vector<2x512xf32> -> vector<2x512xf32>
    %74 = arith.addf %71, %73 : vector<2x512xf32>
    %75 = vector.extract_strided_slice %74 {offsets = [0, 0], sizes = [2, 128], strides = [1, 1]} : vector<2x512xf32> to vector<2x128xf32>
    %76 = arith.negf %75 : vector<2x128xf32>
    %77 = math.exp %76 : vector<2x128xf32>
    %cst_27 = arith.constant 1.000000e+00 : f32
    %78 = vector.broadcast %cst_27 : f32 to vector<2x128xf32>
    %79 = arith.addf %78, %77 : vector<2x128xf32>
    %80 = arith.divf %78, %79 : vector<2x128xf32>
    %81 = vector.extract_strided_slice %74 {offsets = [0, 128], sizes = [2, 128], strides = [1, 1]} : vector<2x512xf32> to vector<2x128xf32>
    %82 = arith.negf %81 : vector<2x128xf32>
    %83 = math.exp %82 : vector<2x128xf32>
    %cst_28 = arith.constant 1.000000e+00 : f32
    %84 = vector.broadcast %cst_28 : f32 to vector<2x128xf32>
    %85 = arith.addf %84, %83 : vector<2x128xf32>
    %86 = arith.divf %84, %85 : vector<2x128xf32>
    %87 = vector.extract_strided_slice %74 {offsets = [0, 256], sizes = [2, 128], strides = [1, 1]} : vector<2x512xf32> to vector<2x128xf32>
    %88 = math.tanh %87 : vector<2x128xf32>
    %89 = vector.extract_strided_slice %74 {offsets = [0, 384], sizes = [2, 128], strides = [1, 1]} : vector<2x512xf32> to vector<2x128xf32>
    %90 = arith.negf %89 : vector<2x128xf32>
    %91 = math.exp %90 : vector<2x128xf32>
    %cst_29 = arith.constant 1.000000e+00 : f32
    %92 = vector.broadcast %cst_29 : f32 to vector<2x128xf32>
    %93 = arith.addf %92, %91 : vector<2x128xf32>
    %94 = arith.divf %92, %93 : vector<2x128xf32>
    %95 = arith.mulf %86, %68 : vector<2x128xf32>
    %96 = arith.mulf %80, %88 : vector<2x128xf32>
    %97 = arith.addf %95, %96 : vector<2x128xf32>
    %98 = math.tanh %97 : vector<2x128xf32>
    %99 = arith.mulf %94, %98 : vector<2x128xf32>
    %c6 = arith.constant 6 : index
    %c0_30 = arith.constant 0 : index
    %100 = vector.load %arg8[%c6, %c0_30] : memref<16x512xf32, #tpu.memory_space<vmem>>, vector<2x512xf32>
    %101 = arith.truncf %99 : vector<2x128xf32> to vector<2x128xbf16>
    %cst_31 = arith.constant dense<0.000000e+00> : vector<2x512xf32>
    %102 = tpu.matmul %101, %10, %cst_31 {dimension_numbers = #tpu.dot_dimension_numbers<[1], [0], [0], [1], [0, 0, 1, 1], [], []>} : vector<2x128xbf16>, vector<128x512xbf16>, vector<2x512xf32> -> vector<2x512xf32>
    %103 = arith.addf %100, %102 : vector<2x512xf32>
    %104 = vector.extract_strided_slice %103 {offsets = [0, 0], sizes = [2, 128], strides = [1, 1]} : vector<2x512xf32> to vector<2x128xf32>
    %105 = arith.negf %104 : vector<2x128xf32>
    %106 = math.exp %105 : vector<2x128xf32>
    %cst_32 = arith.constant 1.000000e+00 : f32
    %107 = vector.broadcast %cst_32 : f32 to vector<2x128xf32>
    %108 = arith.addf %107, %106 : vector<2x128xf32>
    %109 = arith.divf %107, %108 : vector<2x128xf32>
    %110 = vector.extract_strided_slice %103 {offsets = [0, 128], sizes = [2, 128], strides = [1, 1]} : vector<2x512xf32> to vector<2x128xf32>
    %111 = arith.negf %110 : vector<2x128xf32>
    %112 = math.exp %111 : vector<2x128xf32>
    %cst_33 = arith.constant 1.000000e+00 : f32
    %113 = vector.broadcast %cst_33 : f32 to vector<2x128xf32>
    %114 = arith.addf %113, %112 : vector<2x128xf32>
    %115 = arith.divf %113, %114 : vector<2x128xf32>
    %116 = vector.extract_strided_slice %103 {offsets = [0, 256], sizes = [2, 128], strides = [1, 1]} : vector<2x512xf32> to vector<2x128xf32>
    %117 = math.tanh %116 : vector<2x128xf32>
    %118 = vector.extract_strided_slice %103 {offsets = [0, 384], sizes = [2, 128], strides = [1, 1]} : vector<2x512xf32> to vector<2x128xf32>
    %119 = arith.negf %118 : vector<2x128xf32>
    %120 = math.exp %119 : vector<2x128xf32>
    %cst_34 = arith.constant 1.000000e+00 : f32
    %121 = vector.broadcast %cst_34 : f32 to vector<2x128xf32>
    %122 = arith.addf %121, %120 : vector<2x128xf32>
    %123 = arith.divf %121, %122 : vector<2x128xf32>
    %124 = arith.mulf %115, %97 : vector<2x128xf32>
    %125 = arith.mulf %109, %117 : vector<2x128xf32>
    %126 = arith.addf %124, %125 : vector<2x128xf32>
    %127 = math.tanh %126 : vector<2x128xf32>
    %128 = arith.mulf %123, %127 : vector<2x128xf32>
    %c8 = arith.constant 8 : index
    %c0_35 = arith.constant 0 : index
    %129 = vector.load %arg8[%c8, %c0_35] : memref<16x512xf32, #tpu.memory_space<vmem>>, vector<2x512xf32>
    %130 = arith.truncf %128 : vector<2x128xf32> to vector<2x128xbf16>
    %cst_36 = arith.constant dense<0.000000e+00> : vector<2x512xf32>
    %131 = tpu.matmul %130, %10, %cst_36 {dimension_numbers = #tpu.dot_dimension_numbers<[1], [0], [0], [1], [0, 0, 1, 1], [], []>} : vector<2x128xbf16>, vector<128x512xbf16>, vector<2x512xf32> -> vector<2x512xf32>
    %132 = arith.addf %129, %131 : vector<2x512xf32>
    %133 = vector.extract_strided_slice %132 {offsets = [0, 0], sizes = [2, 128], strides = [1, 1]} : vector<2x512xf32> to vector<2x128xf32>
    %134 = arith.negf %133 : vector<2x128xf32>
    %135 = math.exp %134 : vector<2x128xf32>
    %cst_37 = arith.constant 1.000000e+00 : f32
    %136 = vector.broadcast %cst_37 : f32 to vector<2x128xf32>
    %137 = arith.addf %136, %135 : vector<2x128xf32>
    %138 = arith.divf %136, %137 : vector<2x128xf32>
    %139 = vector.extract_strided_slice %132 {offsets = [0, 128], sizes = [2, 128], strides = [1, 1]} : vector<2x512xf32> to vector<2x128xf32>
    %140 = arith.negf %139 : vector<2x128xf32>
    %141 = math.exp %140 : vector<2x128xf32>
    %cst_38 = arith.constant 1.000000e+00 : f32
    %142 = vector.broadcast %cst_38 : f32 to vector<2x128xf32>
    %143 = arith.addf %142, %141 : vector<2x128xf32>
    %144 = arith.divf %142, %143 : vector<2x128xf32>
    %145 = vector.extract_strided_slice %132 {offsets = [0, 256], sizes = [2, 128], strides = [1, 1]} : vector<2x512xf32> to vector<2x128xf32>
    %146 = math.tanh %145 : vector<2x128xf32>
    %147 = vector.extract_strided_slice %132 {offsets = [0, 384], sizes = [2, 128], strides = [1, 1]} : vector<2x512xf32> to vector<2x128xf32>
    %148 = arith.negf %147 : vector<2x128xf32>
    %149 = math.exp %148 : vector<2x128xf32>
    %cst_39 = arith.constant 1.000000e+00 : f32
    %150 = vector.broadcast %cst_39 : f32 to vector<2x128xf32>
    %151 = arith.addf %150, %149 : vector<2x128xf32>
    %152 = arith.divf %150, %151 : vector<2x128xf32>
    %153 = arith.mulf %144, %126 : vector<2x128xf32>
    %154 = arith.mulf %138, %146 : vector<2x128xf32>
    %155 = arith.addf %153, %154 : vector<2x128xf32>
    %156 = math.tanh %155 : vector<2x128xf32>
    %157 = arith.mulf %152, %156 : vector<2x128xf32>
    %c10 = arith.constant 10 : index
    %c0_40 = arith.constant 0 : index
    %158 = vector.load %arg8[%c10, %c0_40] : memref<16x512xf32, #tpu.memory_space<vmem>>, vector<2x512xf32>
    %159 = arith.truncf %157 : vector<2x128xf32> to vector<2x128xbf16>
    %cst_41 = arith.constant dense<0.000000e+00> : vector<2x512xf32>
    %160 = tpu.matmul %159, %10, %cst_41 {dimension_numbers = #tpu.dot_dimension_numbers<[1], [0], [0], [1], [0, 0, 1, 1], [], []>} : vector<2x128xbf16>, vector<128x512xbf16>, vector<2x512xf32> -> vector<2x512xf32>
    %161 = arith.addf %158, %160 : vector<2x512xf32>
    %162 = vector.extract_strided_slice %161 {offsets = [0, 0], sizes = [2, 128], strides = [1, 1]} : vector<2x512xf32> to vector<2x128xf32>
    %163 = arith.negf %162 : vector<2x128xf32>
    %164 = math.exp %163 : vector<2x128xf32>
    %cst_42 = arith.constant 1.000000e+00 : f32
    %165 = vector.broadcast %cst_42 : f32 to vector<2x128xf32>
    %166 = arith.addf %165, %164 : vector<2x128xf32>
    %167 = arith.divf %165, %166 : vector<2x128xf32>
    %168 = vector.extract_strided_slice %161 {offsets = [0, 128], sizes = [2, 128], strides = [1, 1]} : vector<2x512xf32> to vector<2x128xf32>
    %169 = arith.negf %168 : vector<2x128xf32>
    %170 = math.exp %169 : vector<2x128xf32>
    %cst_43 = arith.constant 1.000000e+00 : f32
    %171 = vector.broadcast %cst_43 : f32 to vector<2x128xf32>
    %172 = arith.addf %171, %170 : vector<2x128xf32>
    %173 = arith.divf %171, %172 : vector<2x128xf32>
    %174 = vector.extract_strided_slice %161 {offsets = [0, 256], sizes = [2, 128], strides = [1, 1]} : vector<2x512xf32> to vector<2x128xf32>
    %175 = math.tanh %174 : vector<2x128xf32>
    %176 = vector.extract_strided_slice %161 {offsets = [0, 384], sizes = [2, 128], strides = [1, 1]} : vector<2x512xf32> to vector<2x128xf32>
    %177 = arith.negf %176 : vector<2x128xf32>
    %178 = math.exp %177 : vector<2x128xf32>
    %cst_44 = arith.constant 1.000000e+00 : f32
    %179 = vector.broadcast %cst_44 : f32 to vector<2x128xf32>
    %180 = arith.addf %179, %178 : vector<2x128xf32>
    %181 = arith.divf %179, %180 : vector<2x128xf32>
    %182 = arith.mulf %173, %155 : vector<2x128xf32>
    %183 = arith.mulf %167, %175 : vector<2x128xf32>
    %184 = arith.addf %182, %183 : vector<2x128xf32>
    %185 = math.tanh %184 : vector<2x128xf32>
    %186 = arith.mulf %181, %185 : vector<2x128xf32>
    %c12 = arith.constant 12 : index
    %c0_45 = arith.constant 0 : index
    %187 = vector.load %arg8[%c12, %c0_45] : memref<16x512xf32, #tpu.memory_space<vmem>>, vector<2x512xf32>
    %188 = arith.truncf %186 : vector<2x128xf32> to vector<2x128xbf16>
    %cst_46 = arith.constant dense<0.000000e+00> : vector<2x512xf32>
    %189 = tpu.matmul %188, %10, %cst_46 {dimension_numbers = #tpu.dot_dimension_numbers<[1], [0], [0], [1], [0, 0, 1, 1], [], []>} : vector<2x128xbf16>, vector<128x512xbf16>, vector<2x512xf32> -> vector<2x512xf32>
    %190 = arith.addf %187, %189 : vector<2x512xf32>
    %191 = vector.extract_strided_slice %190 {offsets = [0, 0], sizes = [2, 128], strides = [1, 1]} : vector<2x512xf32> to vector<2x128xf32>
    %192 = arith.negf %191 : vector<2x128xf32>
    %193 = math.exp %192 : vector<2x128xf32>
    %cst_47 = arith.constant 1.000000e+00 : f32
    %194 = vector.broadcast %cst_47 : f32 to vector<2x128xf32>
    %195 = arith.addf %194, %193 : vector<2x128xf32>
    %196 = arith.divf %194, %195 : vector<2x128xf32>
    %197 = vector.extract_strided_slice %190 {offsets = [0, 128], sizes = [2, 128], strides = [1, 1]} : vector<2x512xf32> to vector<2x128xf32>
    %198 = arith.negf %197 : vector<2x128xf32>
    %199 = math.exp %198 : vector<2x128xf32>
    %cst_48 = arith.constant 1.000000e+00 : f32
    %200 = vector.broadcast %cst_48 : f32 to vector<2x128xf32>
    %201 = arith.addf %200, %199 : vector<2x128xf32>
    %202 = arith.divf %200, %201 : vector<2x128xf32>
    %203 = vector.extract_strided_slice %190 {offsets = [0, 256], sizes = [2, 128], strides = [1, 1]} : vector<2x512xf32> to vector<2x128xf32>
    %204 = math.tanh %203 : vector<2x128xf32>
    %205 = vector.extract_strided_slice %190 {offsets = [0, 384], sizes = [2, 128], strides = [1, 1]} : vector<2x512xf32> to vector<2x128xf32>
    %206 = arith.negf %205 : vector<2x128xf32>
    %207 = math.exp %206 : vector<2x128xf32>
    %cst_49 = arith.constant 1.000000e+00 : f32
    %208 = vector.broadcast %cst_49 : f32 to vector<2x128xf32>
    %209 = arith.addf %208, %207 : vector<2x128xf32>
    %210 = arith.divf %208, %209 : vector<2x128xf32>
    %211 = arith.mulf %202, %184 : vector<2x128xf32>
    %212 = arith.mulf %196, %204 : vector<2x128xf32>
    %213 = arith.addf %211, %212 : vector<2x128xf32>
    %214 = math.tanh %213 : vector<2x128xf32>
    %215 = arith.mulf %210, %214 : vector<2x128xf32>
    %c14 = arith.constant 14 : index
    %c0_50 = arith.constant 0 : index
    %216 = vector.load %arg8[%c14, %c0_50] : memref<16x512xf32, #tpu.memory_space<vmem>>, vector<2x512xf32>
    %217 = arith.truncf %215 : vector<2x128xf32> to vector<2x128xbf16>
    %cst_51 = arith.constant dense<0.000000e+00> : vector<2x512xf32>
    %218 = tpu.matmul %217, %10, %cst_51 {dimension_numbers = #tpu.dot_dimension_numbers<[1], [0], [0], [1], [0, 0, 1, 1], [], []>} : vector<2x128xbf16>, vector<128x512xbf16>, vector<2x512xf32> -> vector<2x512xf32>
    %219 = arith.addf %216, %218 : vector<2x512xf32>
    %220 = vector.extract_strided_slice %219 {offsets = [0, 0], sizes = [2, 128], strides = [1, 1]} : vector<2x512xf32> to vector<2x128xf32>
    %221 = arith.negf %220 : vector<2x128xf32>
    %222 = math.exp %221 : vector<2x128xf32>
    %cst_52 = arith.constant 1.000000e+00 : f32
    %223 = vector.broadcast %cst_52 : f32 to vector<2x128xf32>
    %224 = arith.addf %223, %222 : vector<2x128xf32>
    %225 = arith.divf %223, %224 : vector<2x128xf32>
    %226 = vector.extract_strided_slice %219 {offsets = [0, 128], sizes = [2, 128], strides = [1, 1]} : vector<2x512xf32> to vector<2x128xf32>
    %227 = arith.negf %226 : vector<2x128xf32>
    %228 = math.exp %227 : vector<2x128xf32>
    %cst_53 = arith.constant 1.000000e+00 : f32
    %229 = vector.broadcast %cst_53 : f32 to vector<2x128xf32>
    %230 = arith.addf %229, %228 : vector<2x128xf32>
    %231 = arith.divf %229, %230 : vector<2x128xf32>
    %232 = vector.extract_strided_slice %219 {offsets = [0, 256], sizes = [2, 128], strides = [1, 1]} : vector<2x512xf32> to vector<2x128xf32>
    %233 = math.tanh %232 : vector<2x128xf32>
    %234 = vector.extract_strided_slice %219 {offsets = [0, 384], sizes = [2, 128], strides = [1, 1]} : vector<2x512xf32> to vector<2x128xf32>
    %235 = arith.negf %234 : vector<2x128xf32>
    %236 = math.exp %235 : vector<2x128xf32>
    %cst_54 = arith.constant 1.000000e+00 : f32
    %237 = vector.broadcast %cst_54 : f32 to vector<2x128xf32>
    %238 = arith.addf %237, %236 : vector<2x128xf32>
    %239 = arith.divf %237, %238 : vector<2x128xf32>
    %240 = arith.mulf %231, %213 : vector<2x128xf32>
    %241 = arith.mulf %225, %233 : vector<2x128xf32>
    %242 = arith.addf %240, %241 : vector<2x128xf32>
    %243 = math.tanh %242 : vector<2x128xf32>
    %244 = arith.mulf %239, %243 : vector<2x128xf32>
    %c0_55 = arith.constant 0 : index
    %c0_56 = arith.constant 0 : index
    %245 = vector.load %arg9[%c0_55, %c0_56] : memref<2x128xf32, #tpu.memory_space<vmem>>, vector<2x128xf32>
    tpu.vector_store %arg9[%c0_55, %c0_56], %244 {strides = array<i32>} : memref<2x128xf32, #tpu.memory_space<vmem>>, vector<2x128xf32>,
    %c0_57 = arith.constant 0 : index
    %c0_58 = arith.constant 0 : index
    %246 = vector.load %arg10[%c0_57, %c0_58] : memref<2x128xf32, #tpu.memory_space<vmem>>, vector<2x128xf32>
    tpu.vector_store %arg10[%c0_57, %c0_58], %242 {strides = array<i32>} : memref<2x128xf32, #tpu.memory_space<vmem>>, vector<2x128xf32>,
    %c0_i32_59 = arith.constant 0 : i32
    %247 = arith.cmpi eq, %arg0, %c0_i32_59 : i32
    %248 = arith.extui %247 : i1 to i32
    %c0_i32_60 = arith.constant 0 : i32
    %249 = arith.cmpi ne, %248, %c0_i32_60 : i32
    scf.if %249 {
      %250 = arith.truncf %244 : vector<2x128xf32> to vector<2x128xbf16>
      %c0_61 = arith.constant 0 : index
      %c0_62 = arith.constant 0 : index
      %251 = vector.load %arg5[%c0_61, %c0_62] : memref<128x4xbf16, #tpu.memory_space<vmem>>, vector<128x4xbf16>
      %cst_63 = arith.constant dense<0.000000e+00> : vector<2x4xf32>
      %252 = tpu.matmul %250, %251, %cst_63 {dimension_numbers = #tpu.dot_dimension_numbers<[1], [0], [0], [1], [0, 0, 1, 1], [], []>} : vector<2x128xbf16>, vector<128x4xbf16>, vector<2x4xf32> -> vector<2x4xf32>
      %c0_64 = arith.constant 0 : index
      %c0_65 = arith.constant 0 : index
      %253 = vector.load %arg6[%c0_64, %c0_65] : memref<1x4xf32, #tpu.memory_space<vmem>>, vector<1x4xf32>
      %254 = vector.broadcast %253 : vector<1x4xf32> to vector<2x4xf32>
      %255 = arith.addf %252, %254 : vector<2x4xf32>
      %c0_66 = arith.constant 0 : index
      %c0_67 = arith.constant 0 : index
      %256 = vector.load %arg7[%c0_66, %c0_67] : memref<2x4xf32, #tpu.memory_space<vmem>>, vector<2x4xf32>
      tpu.vector_store %arg7[%c0_66, %c0_67], %255 {strides = array<i32>} : memref<2x4xf32, #tpu.memory_space<vmem>>, vector<2x4xf32>,
    } else {
    }
    return
  }
  func.func @transform_0(%arg0: i32) -> (i32, i32) {
    %c0_i32 = arith.constant 0 : i32
    %c0_i32_0 = arith.constant 0 : i32
    return %arg0, %c0_i32 : i32, i32
  }
  func.func @transform_1(%arg0: i32) -> (i32, i32) {
    %c0_i32 = arith.constant 0 : i32
    %c0_i32_0 = arith.constant 0 : i32
    %c0_i32_1 = arith.constant 0 : i32
    return %c0_i32, %c0_i32_0 : i32, i32
  }
  func.func @transform_2(%arg0: i32) -> (i32, i32) {
    %c0_i32 = arith.constant 0 : i32
    %c0_i32_0 = arith.constant 0 : i32
    %c0_i32_1 = arith.constant 0 : i32
    return %c0_i32, %c0_i32_0 : i32, i32
  }
  func.func @transform_3(%arg0: i32) -> (i32, i32) {
    %c0_i32 = arith.constant 0 : i32
    %c0_i32_0 = arith.constant 0 : i32
    %c0_i32_1 = arith.constant 0 : i32
    return %c0_i32, %c0_i32_0 : i32, i32
  }
  func.func @transform_4(%arg0: i32) -> (i32, i32) {
    %c0_i32 = arith.constant 0 : i32
    %c0_i32_0 = arith.constant 0 : i32
    %c0_i32_1 = arith.constant 0 : i32
    return %c0_i32, %c0_i32_0 : i32, i32
  }
  func.func @transform_5(%arg0: i32) -> (i32, i32) {
    %c0_i32 = arith.constant 0 : i32
    %c0_i32_0 = arith.constant 0 : i32
    %c0_i32_1 = arith.constant 0 : i32
    return %c0_i32, %c0_i32_0 : i32, i32
  }
  func.func @transform_6(%arg0: i32) -> (i32, i32) {
    %c0_i32 = arith.constant 0 : i32
    %c0_i32_0 = arith.constant 0 : i32
    %c0_i32_1 = arith.constant 0 : i32
    return %c0_i32, %c0_i32_0 : i32, i32
  }
}

</mosaic_0001>

<llo_original>
// kernel: lstm_model_forward.2
$region0: #{lstm_model_forward.2}
  #allocation0 [shape = 'u32[]', space=smem, size = 0x4, offset = 0x4, fixed_abs, tag = 'smem constant byte address 0x4 - core index']
  #allocation1 [shape = 'u32[144,128]{1,0:T(1,128)}', space=vmem, size = 0x12000, scoped, tag = 'internal scratch']
  #allocation2 [shape = 'f32[16,512]{1,0:T(8,128)}', space=vmem, size = 0x8000, scoped, tag = 'scratch operand']
  #allocation3 [shape = 'f32[2,128]{1,0:T(2,128)}', space=vmem, size = 0x400, scoped, tag = 'scratch operand']
  #allocation4 [shape = 'f32[2,128]{1,0:T(2,128)}', space=vmem, size = 0x400, scoped, tag = 'scratch operand']
  %s0 = inlined_call_operand.vmem [shape: bf16[16,16], index: 0, kind: input, shape index: {}]
  %s1 = inlined_call_operand.hbm [shape: bf16[16,512], index: 1, kind: input, shape index: {}]
  %s2 = inlined_call_operand.hbm [shape: bf16[128,512], index: 2, kind: input, shape index: {}]
  %s3 = inlined_call_operand.hbm [shape: f32[1,512], index: 3, kind: input, shape index: {}]
  %s4 = inlined_call_operand.vmem [shape: bf16[16,128], index: 4, kind: output, shape index: {}]
  %s5 = sld [smem:[#allocation0]]
  $region42: #{lstm_model_forward.2} parent=0
    _
  %s7 = ssub.s32 1, %s5
  %s8 = scalar_select 0, %s7, %s5
  $region1: #{lstm_model_forward.2} parent=0
    #allocation5 [shape = 'u8[16384]{0}', space=vmem, size = 0x4000, scoped, tag = 'input window, operand 1, single buffered']
    #allocation6 [shape = 's32[1]{0}', space=sflag, size = 0x4, scoped, tag = 'scoped memory for lstm_model_forward.2']
    #allocation7 [shape = 'u8[131072]{0}', space=vmem, size = 0x20000, scoped, tag = 'input window, operand 2, single buffered']
    #allocation8 [shape = 's32[1]{0}', space=sflag, size = 0x4, scoped, tag = 'scoped memory for lstm_model_forward.2']
    #allocation9 [shape = 'u8[2048]{0}', space=vmem, size = 0x800, scoped, tag = 'input window, operand 3, single buffered']
    %9 = vsyncpa [#allocation6], 0
    %10 = vsyncpa [#allocation8], 0
    // Predicated region
    $region2: #{lstm_model_forward.2} parent=1 // pred_check
      _
    $region3: #{lstm_model_forward.2} parent=1 // pred_check_branch
      %12 = sbr.rel (0) target = $region5
    $region4: #{lstm_model_forward.2} parent=1 // pred_region
      _
    $region5: #{lstm_model_forward.2} parent=1 // pred_fallthru
      _
    // Predicated region
    $region6: #{lstm_model_forward.2} parent=1 // pred_check
      _
    $region7: #{lstm_model_forward.2} parent=1 // pred_check_branch
      %14 = sbr.rel (0) target = $region9
    $region8: #{lstm_model_forward.2} parent=1 // pred_region
      %s16 = ssub.s32 512, 512
      %17 = vsyncadd [#allocation6], %s16
      %s18 = sshll.u32 [#allocation5], 4
      %s19 = int_to_ptr.vmem [resolvable:$true] %s18
      %24 = dma.hbm_to_vmem [thread:$0]  %s1, 512, %s19, [#allocation6], 256, 256, 16
    $region9: #{lstm_model_forward.2} parent=1 // pred_fallthru
      _
    // Predicated region
    $region10: #{lstm_model_forward.2} parent=1 // pred_check
      _
    $region11: #{lstm_model_forward.2} parent=1 // pred_check_branch
      %26 = sbr.rel (0) target = $region13
    $region12: #{lstm_model_forward.2} parent=1 // pred_region
      %s28 = ssub.s32 4096, 4096
      %29 = vsyncadd [#allocation8], %s28
      %s30 = sshll.u32 [#allocation7], 4
      %s31 = int_to_ptr.vmem [resolvable:$true] %s30
      %36 = dma.hbm_to_vmem [thread:$0]  %s2, 4096, %s31, [#allocation8], 256, 256, 16
    $region13: #{lstm_model_forward.2} parent=1 // pred_fallthru
      _
    // Predicated region
    $region14: #{lstm_model_forward.2} parent=1 // pred_check
      _
    $region15: #{lstm_model_forward.2} parent=1 // pred_check_branch
      %38 = sbr.rel (0) target = $region17
    $region16: #{lstm_model_forward.2} parent=1 // pred_region
      %s40 = ssub.s32 64, 64
      %41 = vsyncadd [#allocation8], %s40
      %s43 = sshll.u32 [#allocation9], 4
      %s44 = int_to_ptr.vmem [resolvable:$true] %s43
      %46 = dma.hbm_to_vmem [thread:$0]  %s3, 64, %s44, [#allocation8]
    $region17: #{lstm_model_forward.2} parent=1 // pred_fallthru
      _
    // Predicated region
    $region18: #{lstm_model_forward.2} parent=1 // pred_check
      _
    $region19: #{lstm_model_forward.2} parent=1 // pred_check_branch
      %48 = sbr.rel (0) target = $region21
    $region20: #{lstm_model_forward.2} parent=1 // pred_region
      %49 = dma.done [#allocation6], 512
    $region21: #{lstm_model_forward.2} parent=1 // pred_fallthru
      _
    // Predicated region
    $region22: #{lstm_model_forward.2} parent=1 // pred_check
      _
    $region23: #{lstm_model_forward.2} parent=1 // pred_check_branch
      %51 = sbr.rel (0) target = $region25
    $region24: #{lstm_model_forward.2} parent=1 // pred_region
      %52 = dma.done [#allocation8], 4096
    $region25: #{lstm_model_forward.2} parent=1 // pred_fallthru
      _
    // Predicated region
    $region26: #{lstm_model_forward.2} parent=1 // pred_check
      _
    $region27: #{lstm_model_forward.2} parent=1 // pred_check_branch
      %54 = sbr.rel (0) target = $region29
    $region28: #{lstm_model_forward.2} parent=1 // pred_region
      %55 = dma.done [#allocation8], 64
    $region29: #{lstm_model_forward.2} parent=1 // pred_fallthru
      _
    %p57 = scmp.eq.s32.totalorder 0, 0
    // Predicated region
    $region30: #{lstm_model_forward.2} parent=1 // pred_check
      %p58 = pneg %p57
    $region31: #{lstm_model_forward.2} parent=1 // pred_check_branch
      %60 = sbr.rel (%p58) target = $region33
    $region32: #{lstm_model_forward.2} parent=1 // pred_region
      %61 = vst [vmem:[#allocation3] sm:$0x3] 0.0
      %62 = vst [vmem:[#allocation4] sm:$0x3] 0.0
    $region33: #{lstm_model_forward.2} parent=1 // pred_fallthru
      _
    %v63 = vld [vmem:[%s0] sm:$0xf]
    %v64 = vld [vmem:[%s0 + $0x4] sm:$0xf]
    %v65 = vld [vmem:[#allocation5] sm:$0xff]
    %v66 = vld [vmem:[#allocation5 + $0x8] sm:$0xff]
    %v67 = vld [vmem:[#allocation5 + $0x10] sm:$0xff]
    %v68 = vld [vmem:[#allocation5 + $0x18] sm:$0xff]
    %v69 = vld [vmem:[#allocation9] sm:$0xf]
    %v71 = vlaneseq
    %v72 = vshrl.u32 %v71, 7
    %v73 = vsub.s32 0, %v72
    %v74 = vrot.slane %v69, %v73
    %v75 = vlaneseq
    %v76 = vshrl.u32 %v75, 7
    %v77 = vsub.s32 1, %v76
    %v78 = vrot.slane %v69, %v77
    %v79 = vlaneseq
    %v80 = vshrl.u32 %v79, 7
    %v81 = vsub.s32 2, %v80
    %v82 = vrot.slane %v69, %v81
    %v83 = vlaneseq
    %v84 = vshrl.u32 %v83, 7
    %v85 = vsub.s32 3, %v84
    %v86 = vrot.slane %v69, %v85
    %v93 = vunpack.c.l.b16 %v63
    %v94 = vunpack.c.l.b16 %v64
    %v95 = vpack.c.b16 %v94, %v93
    %v100 = vunpack.c.l.b16 %v65
    %v101 = vunpack.c.h.b16 %v65
    %v102 = vunpack.c.l.b16 %v66
    %v103 = vunpack.c.h.b16 %v66
    %v104 = vunpack.c.l.b16 %v67
    %v105 = vunpack.c.h.b16 %v67
    %v106 = vunpack.c.l.b16 %v68
    %v107 = vunpack.c.h.b16 %v68
    %v108 = vpack.c.b16 %v104, %v100
    %v109 = vpack.c.b16 %v105, %v101
    %v110 = vpack.c.b16 %v106, %v102
    %v111 = vpack.c.b16 %v107, %v103
    %vm116 = vcmask 130048
    %v118 = vsel %vm116, %v95, 0
    %120 = vmatprep.subr.bf16.mxu0 0
    %121 = vmatpush1.bf16.msra.mxu0 0
    %122 = vmatprep.subr.bf16.mxu0 0
    %123 = vmatpush1.bf16.msra.mxu0 0
    %124 = vmatprep.subr.bf16.mxu0 0
    %125 = vmatpush1.bf16.msra.mxu0 0
    %126 = vmatprep.subr.bf16.mxu0 0
    %127 = vmatpush1.bf16.msra.mxu0 0
    %128 = vmatprep.subr.bf16.mxu0 0
    %129 = vmatpush1.bf16.msra.mxu0 0
    %130 = vmatprep.subr.bf16.mxu0 0
    %131 = vmatpush1.bf16.msra.mxu0 0
    %132 = vmatprep.subr.bf16.mxu0 0
    %133 = vmatpush1.bf16.msra.mxu0 0
    %134 = vmatprep.subr.bf16.mxu0 %v109
    %135 = vmatpush1.bf16.msra.mxu0 %v108
    %136 = vmatprep.subr.bf16.mxu0 0
    %137 = vmatpush2.bf16.msra.mxu0 0
    %138 = vmatprep.subr.bf16.mxu0 0
    %139 = vmatpush2.bf16.msra.mxu0 0
    %140 = vmatprep.subr.bf16.mxu0 0
    %141 = vmatpush2.bf16.msra.mxu0 0
    %142 = vmatprep.subr.bf16.mxu0 0
    %143 = vmatpush2.bf16.msra.mxu0 0
    %144 = vmatprep.subr.bf16.mxu0 0
    %145 = vmatpush2.bf16.msra.mxu0 0
    %146 = vmatprep.subr.bf16.mxu0 0
    %147 = vmatpush2.bf16.msra.mxu0 0
    %148 = vmatprep.subr.bf16.mxu0 0
    %149 = vmatpush2.bf16.msra.mxu0 0
    %150 = vmatprep.subr.bf16.mxu0 0
    %151 = vmatpush2.bf16.msra.mxu0 0
    %152 = vmatprep.mubr.bf16.mxu0 0
    %153 = vmatmul.mubr.bf16.gmra.mxu0 %v118
    %v154 = vpop.f32.mrf.mxu0
    %v155 = vadd.f32 %v74, %v154
    %v156 = vpop.f32.mrf.mxu0
    %v157 = vadd.f32 %v78, %v156
    %v158 = vpop.f32.mrf.mxu0
    %v159 = vadd.f32 %v74, %v158
    %v160 = vpop.f32.mrf.mxu0
    %v161 = vadd.f32 %v78, %v160
    %162 = vdwg.mxu0
    %163 = vmatprep.subr.bf16.mxu0 0
    %164 = vmatpush1.bf16.msra.mxu0 0
    %165 = vmatprep.subr.bf16.mxu0 0
    %166 = vmatpush1.bf16.msra.mxu0 0
    %167 = vmatprep.subr.bf16.mxu0 0
    %168 = vmatpush1.bf16.msra.mxu0 0
    %169 = vmatprep.subr.bf16.mxu0 0
    %170 = vmatpush1.bf16.msra.mxu0 0
    %171 = vmatprep.subr.bf16.mxu0 0
    %172 = vmatpush1.bf16.msra.mxu0 0
    %173 = vmatprep.subr.bf16.mxu0 0
    %174 = vmatpush1.bf16.msra.mxu0 0
    %175 = vmatprep.subr.bf16.mxu0 0
    %176 = vmatpush1.bf16.msra.mxu0 0
    %177 = vmatprep.subr.bf16.mxu0 %v111
    %178 = vmatpush1.bf16.msra.mxu0 %v110
    %179 = vmatprep.subr.bf16.mxu0 0
    %180 = vmatpush2.bf16.msra.mxu0 0
    %181 = vmatprep.subr.bf16.mxu0 0
    %182 = vmatpush2.bf16.msra.mxu0 0
    %183 = vmatprep.subr.bf16.mxu0 0
    %184 = vmatpush2.bf16.msra.mxu0 0
    %185 = vmatprep.subr.bf16.mxu0 0
    %186 = vmatpush2.bf16.msra.mxu0 0
    %187 = vmatprep.subr.bf16.mxu0 0
    %188 = vmatpush2.bf16.msra.mxu0 0
    %189 = vmatprep.subr.bf16.mxu0 0
    %190 = vmatpush2.bf16.msra.mxu0 0
    %191 = vmatprep.subr.bf16.mxu0 0
    %192 = vmatpush2.bf16.msra.mxu0 0
    %193 = vmatprep.subr.bf16.mxu0 0
    %194 = vmatpush2.bf16.msra.mxu0 0
    %195 = vmatprep.mubr.bf16.mxu0 0
    %196 = vmatmul.mubr.bf16.gmra.mxu0 %v118
    %v197 = vpop.f32.mrf.mxu0
    %v198 = vadd.f32 %v82, %v197
    %v199 = vpop.f32.mrf.mxu0
    %v200 = vadd.f32 %v86, %v199
    %v201 = vpop.f32.mrf.mxu0
    %v202 = vadd.f32 %v82, %v201
    %v203 = vpop.f32.mrf.mxu0
    %v204 = vadd.f32 %v86, %v203
    %205 = vdwg.mxu0
    %206 = vst [vmem:[#allocation2] sm:$0xff] %v155
    %207 = vst [vmem:[#allocation2 + $0x8] sm:$0xff] %v157
    %208 = vst [vmem:[#allocation2 + $0x10] sm:$0xff] %v198
    %209 = vst [vmem:[#allocation2 + $0x18] sm:$0xff] %v200
    %210 = vst [vmem:[#allocation2 + $0x20] sm:$0xff] %v159
    %211 = vst [vmem:[#allocation2 + $0x28] sm:$0xff] %v161
    %212 = vst [vmem:[#allocation2 + $0x30] sm:$0xff] %v202
    %213 = vst [vmem:[#allocation2 + $0x38] sm:$0xff] %v204
    %v214 = vld [vmem:[#allocation7] sm:$0xff]
    %v215 = vld [vmem:[#allocation7 + $0x8] sm:$0xff]
    %v216 = vld [vmem:[#allocation7 + $0x10] sm:$0xff]
    %v217 = vld [vmem:[#allocation7 + $0x18] sm:$0xff]
    %v218 = vld [vmem:[#allocation7 + $0x20] sm:$0xff]
    %v219 = vld [vmem:[#allocation7 + $0x28] sm:$0xff]
    %v220 = vld [vmem:[#allocation7 + $0x30] sm:$0xff]
    %v221 = vld [vmem:[#allocation7 + $0x38] sm:$0xff]
    %v222 = vld [vmem:[#allocation7 + $0x40] sm:$0xff]
    %v223 = vld [vmem:[#allocation7 + $0x48] sm:$0xff]
    %v224 = vld [vmem:[#allocation7 + $0x50] sm:$0xff]
    %v225 = vld [vmem:[#allocation7 + $0x58] sm:$0xff]
    %v226 = vld [vmem:[#allocation7 + $0x60] sm:$0xff]
    %v227 = vld [vmem:[#allocation7 + $0x68] sm:$0xff]
    %v228 = vld [vmem:[#allocation7 + $0x70] sm:$0xff]
    %v229 = vld [vmem:[#allocation7 + $0x78] sm:$0xff]
    %v230 = vld [vmem:[#allocation7 + $0x80] sm:$0xff]
    %v231 = vld [vmem:[#allocation7 + $0x88] sm:$0xff]
    %v232 = vld [vmem:[#allocation7 + $0x90] sm:$0xff]
    %v233 = vld [vmem:[#allocation7 + $0x98] sm:$0xff]
    %v234 = vld [vmem:[#allocation7 + $0xa0] sm:$0xff]
    %v235 = vld [vmem:[#allocation7 + $0xa8] sm:$0xff]
    %v236 = vld [vmem:[#allocation7 + $0xb0] sm:$0xff]
    %v237 = vld [vmem:[#allocation7 + $0xb8] sm:$0xff]
    %v238 = vld [vmem:[#allocation7 + $0xc0] sm:$0xff]
    %v239 = vld [vmem:[#allocation7 + $0xc8] sm:$0xff]
    %v240 = vld [vmem:[#allocation7 + $0xd0] sm:$0xff]
    %v241 = vld [vmem:[#allocation7 + $0xd8] sm:$0xff]
    %v242 = vld [vmem:[#allocation7 + $0xe0] sm:$0xff]
    %v243 = vld [vmem:[#allocation7 + $0xe8] sm:$0xff]
    %v244 = vld [vmem:[#allocation7 + $0xf0] sm:$0xff]
    %v245 = vld [vmem:[#allocation7 + $0xf8] sm:$0xff]
    %v246 = vld [vmem:[#allocation3] sm:$0x3]
    %v247 = vld [vmem:[#allocation4] sm:$0x3]
    %v248 = vld [vmem:[#allocation2] sm:$0x3]
    %v249 = vld [vmem:[#allocation2 + $0x8] sm:$0x3]
    %v250 = vld [vmem:[#allocation2 + $0x10] sm:$0x3]
    %v251 = vld [vmem:[#allocation2 + $0x18] sm:$0x3]
    %v252 = vpack.c.bf16 %v246, %v246
    %v285 = vunpack.c.l.b16 %v214
    %v286 = vunpack.c.h.b16 %v214
    %v287 = vunpack.c.l.b16 %v215
    %v288 = vunpack.c.h.b16 %v215
    %v289 = vunpack.c.l.b16 %v216
    %v290 = vunpack.c.h.b16 %v216
    %v291 = vunpack.c.l.b16 %v217
    %v292 = vunpack.c.h.b16 %v217
    %v293 = vunpack.c.l.b16 %v218
    %v294 = vunpack.c.h.b16 %v218
    %v295 = vunpack.c.l.b16 %v219
    %v296 = vunpack.c.h.b16 %v219
    %v297 = vunpack.c.l.b16 %v220
    %v298 = vunpack.c.h.b16 %v220
    %v299 = vunpack.c.l.b16 %v221
    %v300 = vunpack.c.h.b16 %v221
    %v301 = vunpack.c.l.b16 %v222
    %v302 = vunpack.c.h.b16 %v222
    %v303 = vunpack.c.l.b16 %v223
    %v304 = vunpack.c.h.b16 %v223
    %v305 = vunpack.c.l.b16 %v224
    %v306 = vunpack.c.h.b16 %v224
    %v307 = vunpack.c.l.b16 %v225
    %v308 = vunpack.c.h.b16 %v225
    %v309 = vunpack.c.l.b16 %v226
    %v310 = vunpack.c.h.b16 %v226
    %v311 = vunpack.c.l.b16 %v227
    %v312 = vunpack.c.h.b16 %v227
    %v313 = vunpack.c.l.b16 %v228
    %v314 = vunpack.c.h.b16 %v228
    %v315 = vunpack.c.l.b16 %v229
    %v316 = vunpack.c.h.b16 %v229
    %v317 = vunpack.c.l.b16 %v230
    %v318 = vunpack.c.h.b16 %v230
    %v319 = vunpack.c.l.b16 %v231
    %v320 = vunpack.c.h.b16 %v231
    %v321 = vunpack.c.l.b16 %v232
    %v322 = vunpack.c.h.b16 %v232
    %v323 = vunpack.c.l.b16 %v233
    %v324 = vunpack.c.h.b16 %v233
    %v325 = vunpack.c.l.b16 %v234
    %v326 = vunpack.c.h.b16 %v234
    %v327 = vunpack.c.l.b16 %v235
    %v328 = vunpack.c.h.b16 %v235
    %v329 = vunpack.c.l.b16 %v236
    %v330 = vunpack.c.h.b16 %v236
    %v331 = vunpack.c.l.b16 %v237
    %v332 = vunpack.c.h.b16 %v237
    %v333 = vunpack.c.l.b16 %v238
    %v334 = vunpack.c.h.b16 %v238
    %v335 = vunpack.c.l.b16 %v239
    %v336 = vunpack.c.h.b16 %v239
    %v337 = vunpack.c.l.b16 %v240
    %v338 = vunpack.c.h.b16 %v240
    %v339 = vunpack.c.l.b16 %v241
    %v340 = vunpack.c.h.b16 %v241
    %v341 = vunpack.c.l.b16 %v242
    %v342 = vunpack.c.h.b16 %v242
    %v343 = vunpack.c.l.b16 %v243
    %v344 = vunpack.c.h.b16 %v243
    %v345 = vunpack.c.l.b16 %v244
    %v346 = vunpack.c.h.b16 %v244
    %v347 = vunpack.c.l.b16 %v245
    %v348 = vunpack.c.h.b16 %v245
    %v349 = vpack.c.b16 %v289, %v285
    %v350 = vpack.c.b16 %v290, %v286
    %v351 = vpack.c.b16 %v291, %v287
    %v352 = vpack.c.b16 %v292, %v288
    %v353 = vpack.c.b16 %v297, %v293
    %v354 = vpack.c.b16 %v298, %v294
    %v355 = vpack.c.b16 %v299, %v295
    %v356 = vpack.c.b16 %v300, %v296
    %v357 = vpack.c.b16 %v305, %v301
    %v358 = vpack.c.b16 %v306, %v302
    %v359 = vpack.c.b16 %v307, %v303
    %v360 = vpack.c.b16 %v308, %v304
    %v361 = vpack.c.b16 %v313, %v309
    %v362 = vpack.c.b16 %v314, %v310
    %v363 = vpack.c.b16 %v315, %v311
    %v364 = vpack.c.b16 %v316, %v312
    %v365 = vpack.c.b16 %v321, %v317
    %v366 = vpack.c.b16 %v322, %v318
    %v367 = vpack.c.b16 %v323, %v319
    %v368 = vpack.c.b16 %v324, %v320
    %v369 = vpack.c.b16 %v329, %v325
    %v370 = vpack.c.b16 %v330, %v326
    %v371 = vpack.c.b16 %v331, %v327
    %v372 = vpack.c.b16 %v332, %v328
    %v373 = vpack.c.b16 %v337, %v333
    %v374 = vpack.c.b16 %v338, %v334
    %v375 = vpack.c.b16 %v339, %v335
    %v376 = vpack.c.b16 %v340, %v336
    %v377 = vpack.c.b16 %v345, %v341
    %v378 = vpack.c.b16 %v346, %v342
    %v379 = vpack.c.b16 %v347, %v343
    %v380 = vpack.c.b16 %v348, %v344
    %413 = vmatprep.subr.bf16.mxu0 %v378
    %414 = vmatpush1.bf16.msra.mxu0 %v377
    %415 = vmatprep.subr.bf16.mxu0 %v374
    %416 = vmatpush1.bf16.msra.mxu0 %v373
    %417 = vmatprep.subr.bf16.mxu0 %v370
    %418 = vmatpush1.bf16.msra.mxu0 %v369
    %419 = vmatprep.subr.bf16.mxu0 %v366
    %420 = vmatpush1.bf16.msra.mxu0 %v365
    %421 = vmatprep.subr.bf16.mxu0 %v362
    %422 = vmatpush1.bf16.msra.mxu0 %v361
    %423 = vmatprep.subr.bf16.mxu0 %v358
    %424 = vmatpush1.bf16.msra.mxu0 %v357
    %425 = vmatprep.subr.bf16.mxu0 %v354
    %426 = vmatpush1.bf16.msra.mxu0 %v353
    %427 = vmatprep.subr.bf16.mxu0 %v350
    %428 = vmatpush1.bf16.msra.mxu0 %v349
    %429 = vmatprep.subr.bf16.mxu0 0
    %430 = vmatpush2.bf16.msra.mxu0 0
    %431 = vmatprep.subr.bf16.mxu0 0
    %432 = vmatpush2.bf16.msra.mxu0 0
    %433 = vmatprep.subr.bf16.mxu0 0
    %434 = vmatpush2.bf16.msra.mxu0 0
    %435 = vmatprep.subr.bf16.mxu0 0
    %436 = vmatpush2.bf16.msra.mxu0 0
    %437 = vmatprep.subr.bf16.mxu0 0
    %438 = vmatpush2.bf16.msra.mxu0 0
    %439 = vmatprep.subr.bf16.mxu0 0
    %440 = vmatpush2.bf16.msra.mxu0 0
    %441 = vmatprep.subr.bf16.mxu0 0
    %442 = vmatpush2.bf16.msra.mxu0 0
    %443 = vmatprep.subr.bf16.mxu0 0
    %444 = vmatpush2.bf16.msra.mxu0 0
    %445 = vmatprep.mubr.bf16.mxu0 0
    %446 = vmatmul.mubr.bf16.gmra.mxu0 %v252
    %v447 = vpop.f32.mrf.mxu0
    %v448 = vadd.f32 0.0, %v447
    %v449 = vpop.f32.mrf.mxu0
    %v450 = vadd.f32 0.0, %v449
    %v451 = vpop.f32.mrf.mxu0
    %v452 = vpop.f32.mrf.mxu0
    %453 = vdwg.mxu0
    %454 = vmatprep.subr.bf16.mxu0 %v380
    %455 = vmatpush1.bf16.msra.mxu0 %v379
    %456 = vmatprep.subr.bf16.mxu0 %v376
    %457 = vmatpush1.bf16.msra.mxu0 %v375
    %458 = vmatprep.subr.bf16.mxu0 %v372
    %459 = vmatpush1.bf16.msra.mxu0 %v371
    %460 = vmatprep.subr.bf16.mxu0 %v368
    %461 = vmatpush1.bf16.msra.mxu0 %v367
    %462 = vmatprep.subr.bf16.mxu0 %v364
    %463 = vmatpush1.bf16.msra.mxu0 %v363
    %464 = vmatprep.subr.bf16.mxu0 %v360
    %465 = vmatpush1.bf16.msra.mxu0 %v359
    %466 = vmatprep.subr.bf16.mxu0 %v356
    %467 = vmatpush1.bf16.msra.mxu0 %v355
    %468 = vmatprep.subr.bf16.mxu0 %v352
    %469 = vmatpush1.bf16.msra.mxu0 %v351
    %470 = vmatprep.subr.bf16.mxu0 0
    %471 = vmatpush2.bf16.msra.mxu0 0
    %472 = vmatprep.subr.bf16.mxu0 0
    %473 = vmatpush2.bf16.msra.mxu0 0
    %474 = vmatprep.subr.bf16.mxu0 0
    %475 = vmatpush2.bf16.msra.mxu0 0
    %476 = vmatprep.subr.bf16.mxu0 0
    %477 = vmatpush2.bf16.msra.mxu0 0
    %478 = vmatprep.subr.bf16.mxu0 0
    %479 = vmatpush2.bf16.msra.mxu0 0
    %480 = vmatprep.subr.bf16.mxu0 0
    %481 = vmatpush2.bf16.msra.mxu0 0
    %482 = vmatprep.subr.bf16.mxu0 0
    %483 = vmatpush2.bf16.msra.mxu0 0
    %484 = vmatprep.subr.bf16.mxu0 0
    %485 = vmatpush2.bf16.msra.mxu0 0
    %486 = vmatprep.mubr.bf16.mxu0 0
    %487 = vmatmul.mubr.bf16.gmra.mxu0 %v252
    %v488 = vpop.f32.mrf.mxu0
    %v489 = vadd.f32 0.0, %v488
    %v490 = vpop.f32.mrf.mxu0
    %v491 = vadd.f32 0.0, %v490
    %v492 = vpop.f32.mrf.mxu0
    %v493 = vpop.f32.mrf.mxu0
    %494 = vdwg.mxu0
    %v495 = vadd.f32 %v248, %v448
    %v496 = vadd.f32 %v249, %v450
    %v497 = vadd.f32 %v250, %v489
    %v498 = vadd.f32 %v251, %v491
    %v499 = vxor.u32 %v495, 2147483648
    %v500 = vmul.f32 %v499, 1.442695
    %v501 = vpow.pop %v500
    %v502 = vadd.f32 %v501, 1.0
    %v503 = vrcp.pop %v502
    %v504 = vmul.f32 1.0, %v503
    %v505 = vxor.u32 %v496, 2147483648
    %v506 = vmul.f32 %v505, 1.442695
    %v507 = vpow.pop %v506
    %v508 = vadd.f32 %v507, 1.0
    %v509 = vrcp.pop %v508
    %v510 = vmul.f32 1.0, %v509
    %v511 = vtanh.pop %v497
    %v512 = vxor.u32 %v498, 2147483648
    %v513 = vmul.f32 %v512, 1.442695
    %v514 = vpow.pop %v513
    %v515 = vadd.f32 %v514, 1.0
    %v516 = vrcp.pop %v515
    %v517 = vmul.f32 1.0, %v516
    %v518 = vmul.f32 %v510, %v247
    %v519 = vmul.f32 %v504, %v511
    %v520 = vadd.f32 %v518, %v519
    %v521 = vtanh.pop %v520
    %v522 = vmul.f32 %v517, %v521
    %v523 = vpack.c.bf16 %v522, %v522
    %524 = vst [vmem:[%s4] sm:$0x1] %v523
    %v525 = vld [vmem:[#allocation2] sm:$0xc]
    %v526 = vld [vmem:[#allocation2 + $0x8] sm:$0xc]
    %v527 = vld [vmem:[#allocation2 + $0x10] sm:$0xc]
    %v528 = vld [vmem:[#allocation2 + $0x18] sm:$0xc]
    %529 = vmatprep.subr.bf16.mxu0 %v378
    %530 = vmatpush1.bf16.msra.mxu0 %v377
    %531 = vmatprep.subr.bf16.mxu0 %v374
    %532 = vmatpush1.bf16.msra.mxu0 %v373
    %533 = vmatprep.subr.bf16.mxu0 %v370
    %534 = vmatpush1.bf16.msra.mxu0 %v369
    %535 = vmatprep.subr.bf16.mxu0 %v366
    %536 = vmatpush1.bf16.msra.mxu0 %v365
    %537 = vmatprep.subr.bf16.mxu0 %v362
    %538 = vmatpush1.bf16.msra.mxu0 %v361
    %539 = vmatprep.subr.bf16.mxu0 %v358
    %540 = vmatpush1.bf16.msra.mxu0 %v357
    %541 = vmatprep.subr.bf16.mxu0 %v354
    %542 = vmatpush1.bf16.msra.mxu0 %v353
    %543 = vmatprep.subr.bf16.mxu0 %v350
    %544 = vmatpush1.bf16.msra.mxu0 %v349
    %545 = vmatprep.subr.bf16.mxu0 0
    %546 = vmatpush2.bf16.msra.mxu0 0
    %547 = vmatprep.subr.bf16.mxu0 0
    %548 = vmatpush2.bf16.msra.mxu0 0
    %549 = vmatprep.subr.bf16.mxu0 0
    %550 = vmatpush2.bf16.msra.mxu0 0
    %551 = vmatprep.subr.bf16.mxu0 0
    %552 = vmatpush2.bf16.msra.mxu0 0
    %553 = vmatprep.subr.bf16.mxu0 0
    %554 = vmatpush2.bf16.msra.mxu0 0
    %555 = vmatprep.subr.bf16.mxu0 0
    %556 = vmatpush2.bf16.msra.mxu0 0
    %557 = vmatprep.subr.bf16.mxu0 0
    %558 = vmatpush2.bf16.msra.mxu0 0
    %559 = vmatprep.subr.bf16.mxu0 0
    %560 = vmatpush2.bf16.msra.mxu0 0
    %561 = vmatprep.mubr.bf16.mxu0 0
    %562 = vmatmul.mubr.bf16.gmra.mxu0 %v523
    %v563 = vpop.f32.mrf.mxu0
    %v564 = vadd.f32 0.0, %v563
    %v565 = vpop.f32.mrf.mxu0
    %v566 = vadd.f32 0.0, %v565
    %v567 = vpop.f32.mrf.mxu0
    %v568 = vpop.f32.mrf.mxu0
    %569 = vdwg.mxu0
    %570 = vmatprep.subr.bf16.mxu0 %v380
    %571 = vmatpush1.bf16.msra.mxu0 %v379
    %572 = vmatprep.subr.bf16.mxu0 %v376
    %573 = vmatpush1.bf16.msra.mxu0 %v375
    %574 = vmatprep.subr.bf16.mxu0 %v372
    %575 = vmatpush1.bf16.msra.mxu0 %v371
    %576 = vmatprep.subr.bf16.mxu0 %v368
    %577 = vmatpush1.bf16.msra.mxu0 %v367
    %578 = vmatprep.subr.bf16.mxu0 %v364
    %579 = vmatpush1.bf16.msra.mxu0 %v363
    %580 = vmatprep.subr.bf16.mxu0 %v360
    %581 = vmatpush1.bf16.msra.mxu0 %v359
    %582 = vmatprep.subr.bf16.mxu0 %v356
    %583 = vmatpush1.bf16.msra.mxu0 %v355
    %584 = vmatprep.subr.bf16.mxu0 %v352
    %585 = vmatpush1.bf16.msra.mxu0 %v351
    %586 = vmatprep.subr.bf16.mxu0 0
    %587 = vmatpush2.bf16.msra.mxu0 0
    %588 = vmatprep.subr.bf16.mxu0 0
    %589 = vmatpush2.bf16.msra.mxu0 0
    %590 = vmatprep.subr.bf16.mxu0 0
    %591 = vmatpush2.bf16.msra.mxu0 0
    %592 = vmatprep.subr.bf16.mxu0 0
    %593 = vmatpush2.bf16.msra.mxu0 0
    %594 = vmatprep.subr.bf16.mxu0 0
    %595 = vmatpush2.bf16.msra.mxu0 0
    %596 = vmatprep.subr.bf16.mxu0 0
    %597 = vmatpush2.bf16.msra.mxu0 0
    %598 = vmatprep.subr.bf16.mxu0 0
    %599 = vmatpush2.bf16.msra.mxu0 0
    %600 = vmatprep.subr.bf16.mxu0 0
    %601 = vmatpush2.bf16.msra.mxu0 0
    %602 = vmatprep.mubr.bf16.mxu0 0
    %603 = vmatmul.mubr.bf16.gmra.mxu0 %v523
    %v604 = vpop.f32.mrf.mxu0
    %v605 = vadd.f32 0.0, %v604
    %v606 = vpop.f32.mrf.mxu0
    %v607 = vadd.f32 0.0, %v606
    %v608 = vpop.f32.mrf.mxu0
    %v609 = vpop.f32.mrf.mxu0
    %610 = vdwg.mxu0
    %v615 = vrot.slane %v564, 6
    %v616 = vrot.slane %v566, 6
    %v617 = vrot.slane %v605, 6
    %v618 = vrot.slane %v607, 6
    %v623 = vadd.f32 %v525, %v615
    %v624 = vadd.f32 %v526, %v616
    %v625 = vadd.f32 %v527, %v617
    %v626 = vadd.f32 %v528, %v618
    %v627 = vxor.u32 %v623, 2147483648
    %v628 = vmul.f32 %v627, 1.442695
    %v629 = vpow.pop %v628
    %v630 = vadd.f32 %v629, 1.0
    %v631 = vrcp.pop %v630
    %v632 = vmul.f32 1.0, %v631
    %v633 = vxor.u32 %v624, 2147483648
    %v634 = vmul.f32 %v633, 1.442695
    %v635 = vpow.pop %v634
    %v636 = vadd.f32 %v635, 1.0
    %v637 = vrcp.pop %v636
    %v638 = vmul.f32 1.0, %v637
    %v639 = vtanh.pop %v625
    %v640 = vxor.u32 %v626, 2147483648
    %v641 = vmul.f32 %v640, 1.442695
    %v642 = vpow.pop %v641
    %v643 = vadd.f32 %v642, 1.0
    %v644 = vrcp.pop %v643
    %v645 = vmul.f32 1.0, %v644
    %v647 = vrot.slane %v520, 6
    %v649 = vmul.f32 %v638, %v647
    %v650 = vmul.f32 %v632, %v639
    %v651 = vadd.f32 %v649, %v650
    %v652 = vtanh.pop %v651
    %v653 = vmul.f32 %v645, %v652
    %v654 = vpack.c.bf16 %v653, %v653
    %655 = vst [vmem:[%s4] sm:$0x2] %v654
    %v656 = vld [vmem:[#allocation2] sm:$0x30]
    %v657 = vld [vmem:[#allocation2 + $0x8] sm:$0x30]
    %v658 = vld [vmem:[#allocation2 + $0x10] sm:$0x30]
    %v659 = vld [vmem:[#allocation2 + $0x18] sm:$0x30]
    %v661 = vrot.slane %v654, 1
    %663 = vmatprep.subr.bf16.mxu0 %v378
    %664 = vmatpush1.bf16.msra.mxu0 %v377
    %665 = vmatprep.subr.bf16.mxu0 %v374
    %666 = vmatpush1.bf16.msra.mxu0 %v373
    %667 = vmatprep.subr.bf16.mxu0 %v370
    %668 = vmatpush1.bf16.msra.mxu0 %v369
    %669 = vmatprep.subr.bf16.mxu0 %v366
    %670 = vmatpush1.bf16.msra.mxu0 %v365
    %671 = vmatprep.subr.bf16.mxu0 %v362
    %672 = vmatpush1.bf16.msra.mxu0 %v361
    %673 = vmatprep.subr.bf16.mxu0 %v358
    %674 = vmatpush1.bf16.msra.mxu0 %v357
    %675 = vmatprep.subr.bf16.mxu0 %v354
    %676 = vmatpush1.bf16.msra.mxu0 %v353
    %677 = vmatprep.subr.bf16.mxu0 %v350
    %678 = vmatpush1.bf16.msra.mxu0 %v349
    %679 = vmatprep.subr.bf16.mxu0 0
    %680 = vmatpush2.bf16.msra.mxu0 0
    %681 = vmatprep.subr.bf16.mxu0 0
    %682 = vmatpush2.bf16.msra.mxu0 0
    %683 = vmatprep.subr.bf16.mxu0 0
    %684 = vmatpush2.bf16.msra.mxu0 0
    %685 = vmatprep.subr.bf16.mxu0 0
    %686 = vmatpush2.bf16.msra.mxu0 0
    %687 = vmatprep.subr.bf16.mxu0 0
    %688 = vmatpush2.bf16.msra.mxu0 0
    %689 = vmatprep.subr.bf16.mxu0 0
    %690 = vmatpush2.bf16.msra.mxu0 0
    %691 = vmatprep.subr.bf16.mxu0 0
    %692 = vmatpush2.bf16.msra.mxu0 0
    %693 = vmatprep.subr.bf16.mxu0 0
    %694 = vmatpush2.bf16.msra.mxu0 0
    %695 = vmatprep.mubr.bf16.mxu0 0
    %696 = vmatmul.mubr.bf16.gmra.mxu0 %v661
    %v697 = vpop.f32.mrf.mxu0
    %v698 = vadd.f32 0.0, %v697
    %v699 = vpop.f32.mrf.mxu0
    %v700 = vadd.f32 0.0, %v699
    %v701 = vpop.f32.mrf.mxu0
    %v702 = vpop.f32.mrf.mxu0
    %703 = vdwg.mxu0
    %704 = vmatprep.subr.bf16.mxu0 %v380
    %705 = vmatpush1.bf16.msra.mxu0 %v379
    %706 = vmatprep.subr.bf16.mxu0 %v376
    %707 = vmatpush1.bf16.msra.mxu0 %v375
    %708 = vmatprep.subr.bf16.mxu0 %v372
    %709 = vmatpush1.bf16.msra.mxu0 %v371
    %710 = vmatprep.subr.bf16.mxu0 %v368
    %711 = vmatpush1.bf16.msra.mxu0 %v367
    %712 = vmatprep.subr.bf16.mxu0 %v364
    %713 = vmatpush1.bf16.msra.mxu0 %v363
    %714 = vmatprep.subr.bf16.mxu0 %v360
    %715 = vmatpush1.bf16.msra.mxu0 %v359
    %716 = vmatprep.subr.bf16.mxu0 %v356
    %717 = vmatpush1.bf16.msra.mxu0 %v355
    %718 = vmatprep.subr.bf16.mxu0 %v352
    %719 = vmatpush1.bf16.msra.mxu0 %v351
    %720 = vmatprep.subr.bf16.mxu0 0
    %721 = vmatpush2.bf16.msra.mxu0 0
    %722 = vmatprep.subr.bf16.mxu0 0
    %723 = vmatpush2.bf16.msra.mxu0 0
    %724 = vmatprep.subr.bf16.mxu0 0
    %725 = vmatpush2.bf16.msra.mxu0 0
    %726 = vmatprep.subr.bf16.mxu0 0
    %727 = vmatpush2.bf16.msra.mxu0 0
    %728 = vmatprep.subr.bf16.mxu0 0
    %729 = vmatpush2.bf16.msra.mxu0 0
    %730 = vmatprep.subr.bf16.mxu0 0
    %731 = vmatpush2.bf16.msra.mxu0 0
    %732 = vmatprep.subr.bf16.mxu0 0
    %733 = vmatpush2.bf16.msra.mxu0 0
    %734 = vmatprep.subr.bf16.mxu0 0
    %735 = vmatpush2.bf16.msra.mxu0 0
    %736 = vmatprep.mubr.bf16.mxu0 0
    %737 = vmatmul.mubr.bf16.gmra.mxu0 %v661
    %v738 = vpop.f32.mrf.mxu0
    %v739 = vadd.f32 0.0, %v738
    %v740 = vpop.f32.mrf.mxu0
    %v741 = vadd.f32 0.0, %v740
    %v742 = vpop.f32.mrf.mxu0
    %v743 = vpop.f32.mrf.mxu0
    %744 = vdwg.mxu0
    %v749 = vrot.slane %v698, 4
    %v750 = vrot.slane %v700, 4
    %v751 = vrot.slane %v739, 4
    %v752 = vrot.slane %v741, 4
    %v757 = vadd.f32 %v656, %v749
    %v758 = vadd.f32 %v657, %v750
    %v759 = vadd.f32 %v658, %v751
    %v760 = vadd.f32 %v659, %v752
    %v761 = vxor.u32 %v757, 2147483648
    %v762 = vmul.f32 %v761, 1.442695
    %v763 = vpow.pop %v762
    %v764 = vadd.f32 %v763, 1.0
    %v765 = vrcp.pop %v764
    %v766 = vmul.f32 1.0, %v765
    %v767 = vxor.u32 %v758, 2147483648
    %v768 = vmul.f32 %v767, 1.442695
    %v769 = vpow.pop %v768
    %v770 = vadd.f32 %v769, 1.0
    %v771 = vrcp.pop %v770
    %v772 = vmul.f32 1.0, %v771
    %v773 = vtanh.pop %v759
    %v774 = vxor.u32 %v760, 2147483648
    %v775 = vmul.f32 %v774, 1.442695
    %v776 = vpow.pop %v775
    %v777 = vadd.f32 %v776, 1.0
    %v778 = vrcp.pop %v777
    %v779 = vmul.f32 1.0, %v778
    %v781 = vrot.slane %v651, 6
    %v783 = vmul.f32 %v772, %v781
    %v784 = vmul.f32 %v766, %v773
    %v785 = vadd.f32 %v783, %v784
    %v786 = vtanh.pop %v785
    %v787 = vmul.f32 %v779, %v786
    %v788 = vpack.c.bf16 %v787, %v787
    %789 = vst [vmem:[%s4] sm:$0x4] %v788
    %v790 = vld [vmem:[#allocation2] sm:$0xc0]
    %v791 = vld [vmem:[#allocation2 + $0x8] sm:$0xc0]
    %v792 = vld [vmem:[#allocation2 + $0x10] sm:$0xc0]
    %v793 = vld [vmem:[#allocation2 + $0x18] sm:$0xc0]
    %v795 = vrot.slane %v788, 2
    %797 = vmatprep.subr.bf16.mxu0 %v378
    %798 = vmatpush1.bf16.msra.mxu0 %v377
    %799 = vmatprep.subr.bf16.mxu0 %v374
    %800 = vmatpush1.bf16.msra.mxu0 %v373
    %801 = vmatprep.subr.bf16.mxu0 %v370
    %802 = vmatpush1.bf16.msra.mxu0 %v369
    %803 = vmatprep.subr.bf16.mxu0 %v366
    %804 = vmatpush1.bf16.msra.mxu0 %v365
    %805 = vmatprep.subr.bf16.mxu0 %v362
    %806 = vmatpush1.bf16.msra.mxu0 %v361
    %807 = vmatprep.subr.bf16.mxu0 %v358
    %808 = vmatpush1.bf16.msra.mxu0 %v357
    %809 = vmatprep.subr.bf16.mxu0 %v354
    %810 = vmatpush1.bf16.msra.mxu0 %v353
    %811 = vmatprep.subr.bf16.mxu0 %v350
    %812 = vmatpush1.bf16.msra.mxu0 %v349
    %813 = vmatprep.subr.bf16.mxu0 0
    %814 = vmatpush2.bf16.msra.mxu0 0
    %815 = vmatprep.subr.bf16.mxu0 0
    %816 = vmatpush2.bf16.msra.mxu0 0
    %817 = vmatprep.subr.bf16.mxu0 0
    %818 = vmatpush2.bf16.msra.mxu0 0
    %819 = vmatprep.subr.bf16.mxu0 0
    %820 = vmatpush2.bf16.msra.mxu0 0
    %821 = vmatprep.subr.bf16.mxu0 0
    %822 = vmatpush2.bf16.msra.mxu0 0
    %823 = vmatprep.subr.bf16.mxu0 0
    %824 = vmatpush2.bf16.msra.mxu0 0
    %825 = vmatprep.subr.bf16.mxu0 0
    %826 = vmatpush2.bf16.msra.mxu0 0
    %827 = vmatprep.subr.bf16.mxu0 0
    %828 = vmatpush2.bf16.msra.mxu0 0
    %829 = vmatprep.mubr.bf16.mxu0 0
    %830 = vmatmul.mubr.bf16.gmra.mxu0 %v795
    %v831 = vpop.f32.mrf.mxu0
    %v832 = vadd.f32 0.0, %v831
    %v833 = vpop.f32.mrf.mxu0
    %v834 = vadd.f32 0.0, %v833
    %v835 = vpop.f32.mrf.mxu0
    %v836 = vpop.f32.mrf.mxu0
    %837 = vdwg.mxu0
    %838 = vmatprep.subr.bf16.mxu0 %v380
    %839 = vmatpush1.bf16.msra.mxu0 %v379
    %840 = vmatprep.subr.bf16.mxu0 %v376
    %841 = vmatpush1.bf16.msra.mxu0 %v375
    %842 = vmatprep.subr.bf16.mxu0 %v372
    %843 = vmatpush1.bf16.msra.mxu0 %v371
    %844 = vmatprep.subr.bf16.mxu0 %v368
    %845 = vmatpush1.bf16.msra.mxu0 %v367
    %846 = vmatprep.subr.bf16.mxu0 %v364
    %847 = vmatpush1.bf16.msra.mxu0 %v363
    %848 = vmatprep.subr.bf16.mxu0 %v360
    %849 = vmatpush1.bf16.msra.mxu0 %v359
    %850 = vmatprep.subr.bf16.mxu0 %v356
    %851 = vmatpush1.bf16.msra.mxu0 %v355
    %852 = vmatprep.subr.bf16.mxu0 %v352
    %853 = vmatpush1.bf16.msra.mxu0 %v351
    %854 = vmatprep.subr.bf16.mxu0 0
    %855 = vmatpush2.bf16.msra.mxu0 0
    %856 = vmatprep.subr.bf16.mxu0 0
    %857 = vmatpush2.bf16.msra.mxu0 0
    %858 = vmatprep.subr.bf16.mxu0 0
    %859 = vmatpush2.bf16.msra.mxu0 0
    %860 = vmatprep.subr.bf16.mxu0 0
    %861 = vmatpush2.bf16.msra.mxu0 0
    %862 = vmatprep.subr.bf16.mxu0 0
    %863 = vmatpush2.bf16.msra.mxu0 0
    %864 = vmatprep.subr.bf16.mxu0 0
    %865 = vmatpush2.bf16.msra.mxu0 0
    %866 = vmatprep.subr.bf16.mxu0 0
    %867 = vmatpush2.bf16.msra.mxu0 0
    %868 = vmatprep.subr.bf16.mxu0 0
    %869 = vmatpush2.bf16.msra.mxu0 0
    %870 = vmatprep.mubr.bf16.mxu0 0
    %871 = vmatmul.mubr.bf16.gmra.mxu0 %v795
    %v872 = vpop.f32.mrf.mxu0
    %v873 = vadd.f32 0.0, %v872
    %v874 = vpop.f32.mrf.mxu0
    %v875 = vadd.f32 0.0, %v874
    %v876 = vpop.f32.mrf.mxu0
    %v877 = vpop.f32.mrf.mxu0
    %878 = vdwg.mxu0
    %v883 = vrot.slane %v832, 2
    %v884 = vrot.slane %v834, 2
    %v885 = vrot.slane %v873, 2
    %v886 = vrot.slane %v875, 2
    %v891 = vadd.f32 %v790, %v883
    %v892 = vadd.f32 %v791, %v884
    %v893 = vadd.f32 %v792, %v885
    %v894 = vadd.f32 %v793, %v886
    %v895 = vxor.u32 %v891, 2147483648
    %v896 = vmul.f32 %v895, 1.442695
    %v897 = vpow.pop %v896
    %v898 = vadd.f32 %v897, 1.0
    %v899 = vrcp.pop %v898
    %v900 = vmul.f32 1.0, %v899
    %v901 = vxor.u32 %v892, 2147483648
    %v902 = vmul.f32 %v901, 1.442695
    %v903 = vpow.pop %v902
    %v904 = vadd.f32 %v903, 1.0
    %v905 = vrcp.pop %v904
    %v906 = vmul.f32 1.0, %v905
    %v907 = vtanh.pop %v893
    %v908 = vxor.u32 %v894, 2147483648
    %v909 = vmul.f32 %v908, 1.442695
    %v910 = vpow.pop %v909
    %v911 = vadd.f32 %v910, 1.0
    %v912 = vrcp.pop %v911
    %v913 = vmul.f32 1.0, %v912
    %v915 = vrot.slane %v785, 6
    %v917 = vmul.f32 %v906, %v915
    %v918 = vmul.f32 %v900, %v907
    %v919 = vadd.f32 %v917, %v918
    %v920 = vtanh.pop %v919
    %v921 = vmul.f32 %v913, %v920
    %v922 = vpack.c.bf16 %v921, %v921
    %923 = vst [vmem:[%s4] sm:$0x8] %v922
    %v924 = vld [vmem:[#allocation2 + $0x20] sm:$0x3]
    %v925 = vld [vmem:[#allocation2 + $0x28] sm:$0x3]
    %v926 = vld [vmem:[#allocation2 + $0x30] sm:$0x3]
    %v927 = vld [vmem:[#allocation2 + $0x38] sm:$0x3]
    %v929 = vrot.slane %v922, 3
    %931 = vmatprep.subr.bf16.mxu0 %v378
    %932 = vmatpush1.bf16.msra.mxu0 %v377
    %933 = vmatprep.subr.bf16.mxu0 %v374
    %934 = vmatpush1.bf16.msra.mxu0 %v373
    %935 = vmatprep.subr.bf16.mxu0 %v370
    %936 = vmatpush1.bf16.msra.mxu0 %v369
    %937 = vmatprep.subr.bf16.mxu0 %v366
    %938 = vmatpush1.bf16.msra.mxu0 %v365
    %939 = vmatprep.subr.bf16.mxu0 %v362
    %940 = vmatpush1.bf16.msra.mxu0 %v361
    %941 = vmatprep.subr.bf16.mxu0 %v358
    %942 = vmatpush1.bf16.msra.mxu0 %v357
    %943 = vmatprep.subr.bf16.mxu0 %v354
    %944 = vmatpush1.bf16.msra.mxu0 %v353
    %945 = vmatprep.subr.bf16.mxu0 %v350
    %946 = vmatpush1.bf16.msra.mxu0 %v349
    %947 = vmatprep.subr.bf16.mxu0 0
    %948 = vmatpush2.bf16.msra.mxu0 0
    %949 = vmatprep.subr.bf16.mxu0 0
    %950 = vmatpush2.bf16.msra.mxu0 0
    %951 = vmatprep.subr.bf16.mxu0 0
    %952 = vmatpush2.bf16.msra.mxu0 0
    %953 = vmatprep.subr.bf16.mxu0 0
    %954 = vmatpush2.bf16.msra.mxu0 0
    %955 = vmatprep.subr.bf16.mxu0 0
    %956 = vmatpush2.bf16.msra.mxu0 0
    %957 = vmatprep.subr.bf16.mxu0 0
    %958 = vmatpush2.bf16.msra.mxu0 0
    %959 = vmatprep.subr.bf16.mxu0 0
    %960 = vmatpush2.bf16.msra.mxu0 0
    %961 = vmatprep.subr.bf16.mxu0 0
    %962 = vmatpush2.bf16.msra.mxu0 0
    %963 = vmatprep.mubr.bf16.mxu0 0
    %964 = vmatmul.mubr.bf16.gmra.mxu0 %v929
    %v965 = vpop.f32.mrf.mxu0
    %v966 = vadd.f32 0.0, %v965
    %v967 = vpop.f32.mrf.mxu0
    %v968 = vadd.f32 0.0, %v967
    %v969 = vpop.f32.mrf.mxu0
    %v970 = vpop.f32.mrf.mxu0
    %971 = vdwg.mxu0
    %972 = vmatprep.subr.bf16.mxu0 %v380
    %973 = vmatpush1.bf16.msra.mxu0 %v379
    %974 = vmatprep.subr.bf16.mxu0 %v376
    %975 = vmatpush1.bf16.msra.mxu0 %v375
    %976 = vmatprep.subr.bf16.mxu0 %v372
    %977 = vmatpush1.bf16.msra.mxu0 %v371
    %978 = vmatprep.subr.bf16.mxu0 %v368
    %979 = vmatpush1.bf16.msra.mxu0 %v367
    %980 = vmatprep.subr.bf16.mxu0 %v364
    %981 = vmatpush1.bf16.msra.mxu0 %v363
    %982 = vmatprep.subr.bf16.mxu0 %v360
    %983 = vmatpush1.bf16.msra.mxu0 %v359
    %984 = vmatprep.subr.bf16.mxu0 %v356
    %985 = vmatpush1.bf16.msra.mxu0 %v355
    %986 = vmatprep.subr.bf16.mxu0 %v352
    %987 = vmatpush1.bf16.msra.mxu0 %v351
    %988 = vmatprep.subr.bf16.mxu0 0
    %989 = vmatpush2.bf16.msra.mxu0 0
    %990 = vmatprep.subr.bf16.mxu0 0
    %991 = vmatpush2.bf16.msra.mxu0 0
    %992 = vmatprep.subr.bf16.mxu0 0
    %993 = vmatpush2.bf16.msra.mxu0 0
    %994 = vmatprep.subr.bf16.mxu0 0
    %995 = vmatpush2.bf16.msra.mxu0 0
    %996 = vmatprep.subr.bf16.mxu0 0
    %997 = vmatpush2.bf16.msra.mxu0 0
    %998 = vmatprep.subr.bf16.mxu0 0
    %999 = vmatpush2.bf16.msra.mxu0 0
    %1000 = vmatprep.subr.bf16.mxu0 0
    %1001 = vmatpush2.bf16.msra.mxu0 0
    %1002 = vmatprep.subr.bf16.mxu0 0
    %1003 = vmatpush2.bf16.msra.mxu0 0
    %1004 = vmatprep.mubr.bf16.mxu0 0
    %1005 = vmatmul.mubr.bf16.gmra.mxu0 %v929
    %v1006 = vpop.f32.mrf.mxu0
    %v1007 = vadd.f32 0.0, %v1006
    %v1008 = vpop.f32.mrf.mxu0
    %v1009 = vadd.f32 0.0, %v1008
    %v1010 = vpop.f32.mrf.mxu0
    %v1011 = vpop.f32.mrf.mxu0
    %1012 = vdwg.mxu0
    %v1013 = vadd.f32 %v924, %v966
    %v1014 = vadd.f32 %v925, %v968
    %v1015 = vadd.f32 %v926, %v1007
    %v1016 = vadd.f32 %v927, %v1009
    %v1017 = vxor.u32 %v1013, 2147483648
    %v1018 = vmul.f32 %v1017, 1.442695
    %v1019 = vpow.pop %v1018
    %v1020 = vadd.f32 %v1019, 1.0
    %v1021 = vrcp.pop %v1020
    %v1022 = vmul.f32 1.0, %v1021
    %v1023 = vxor.u32 %v1014, 2147483648
    %v1024 = vmul.f32 %v1023, 1.442695
    %v1025 = vpow.pop %v1024
    %v1026 = vadd.f32 %v1025, 1.0
    %v1027 = vrcp.pop %v1026
    %v1028 = vmul.f32 1.0, %v1027
    %v1029 = vtanh.pop %v1015
    %v1030 = vxor.u32 %v1016, 2147483648
    %v1031 = vmul.f32 %v1030, 1.442695
    %v1032 = vpow.pop %v1031
    %v1033 = vadd.f32 %v1032, 1.0
    %v1034 = vrcp.pop %v1033
    %v1035 = vmul.f32 1.0, %v1034
    %v1037 = vrot.slane %v919, 6
    %v1039 = vmul.f32 %v1028, %v1037
    %v1040 = vmul.f32 %v1022, %v1029
    %v1041 = vadd.f32 %v1039, %v1040
    %v1042 = vtanh.pop %v1041
    %v1043 = vmul.f32 %v1035, %v1042
    %v1044 = vpack.c.bf16 %v1043, %v1043
    %1045 = vst [vmem:[%s4 + $0x4] sm:$0x1] %v1044
    %v1046 = vld [vmem:[#allocation2 + $0x20] sm:$0xc]
    %v1047 = vld [vmem:[#allocation2 + $0x28] sm:$0xc]
    %v1048 = vld [vmem:[#allocation2 + $0x30] sm:$0xc]
    %v1049 = vld [vmem:[#allocation2 + $0x38] sm:$0xc]
    %1050 = vmatprep.subr.bf16.mxu0 %v378
    %1051 = vmatpush1.bf16.msra.mxu0 %v377
    %1052 = vmatprep.subr.bf16.mxu0 %v374
    %1053 = vmatpush1.bf16.msra.mxu0 %v373
    %1054 = vmatprep.subr.bf16.mxu0 %v370
    %1055 = vmatpush1.bf16.msra.mxu0 %v369
    %1056 = vmatprep.subr.bf16.mxu0 %v366
    %1057 = vmatpush1.bf16.msra.mxu0 %v365
    %1058 = vmatprep.subr.bf16.mxu0 %v362
    %1059 = vmatpush1.bf16.msra.mxu0 %v361
    %1060 = vmatprep.subr.bf16.mxu0 %v358
    %1061 = vmatpush1.bf16.msra.mxu0 %v357
    %1062 = vmatprep.subr.bf16.mxu0 %v354
    %1063 = vmatpush1.bf16.msra.mxu0 %v353
    %1064 = vmatprep.subr.bf16.mxu0 %v350
    %1065 = vmatpush1.bf16.msra.mxu0 %v349
    %1066 = vmatprep.subr.bf16.mxu0 0
    %1067 = vmatpush2.bf16.msra.mxu0 0
    %1068 = vmatprep.subr.bf16.mxu0 0
    %1069 = vmatpush2.bf16.msra.mxu0 0
    %1070 = vmatprep.subr.bf16.mxu0 0
    %1071 = vmatpush2.bf16.msra.mxu0 0
    %1072 = vmatprep.subr.bf16.mxu0 0
    %1073 = vmatpush2.bf16.msra.mxu0 0
    %1074 = vmatprep.subr.bf16.mxu0 0
    %1075 = vmatpush2.bf16.msra.mxu0 0
    %1076 = vmatprep.subr.bf16.mxu0 0
    %1077 = vmatpush2.bf16.msra.mxu0 0
    %1078 = vmatprep.subr.bf16.mxu0 0
    %1079 = vmatpush2.bf16.msra.mxu0 0
    %1080 = vmatprep.subr.bf16.mxu0 0
    %1081 = vmatpush2.bf16.msra.mxu0 0
    %1082 = vmatprep.mubr.bf16.mxu0 0
    %1083 = vmatmul.mubr.bf16.gmra.mxu0 %v1044
    %v1084 = vpop.f32.mrf.mxu0
    %v1085 = vadd.f32 0.0, %v1084
    %v1086 = vpop.f32.mrf.mxu0
    %v1087 = vadd.f32 0.0, %v1086
    %v1088 = vpop.f32.mrf.mxu0
    %v1089 = vpop.f32.mrf.mxu0
    %1090 = vdwg.mxu0
    %1091 = vmatprep.subr.bf16.mxu0 %v380
    %1092 = vmatpush1.bf16.msra.mxu0 %v379
    %1093 = vmatprep.subr.bf16.mxu0 %v376
    %1094 = vmatpush1.bf16.msra.mxu0 %v375
    %1095 = vmatprep.subr.bf16.mxu0 %v372
    %1096 = vmatpush1.bf16.msra.mxu0 %v371
    %1097 = vmatprep.subr.bf16.mxu0 %v368
    %1098 = vmatpush1.bf16.msra.mxu0 %v367
    %1099 = vmatprep.subr.bf16.mxu0 %v364
    %1100 = vmatpush1.bf16.msra.mxu0 %v363
    %1101 = vmatprep.subr.bf16.mxu0 %v360
    %1102 = vmatpush1.bf16.msra.mxu0 %v359
    %1103 = vmatprep.subr.bf16.mxu0 %v356
    %1104 = vmatpush1.bf16.msra.mxu0 %v355
    %1105 = vmatprep.subr.bf16.mxu0 %v352
    %1106 = vmatpush1.bf16.msra.mxu0 %v351
    %1107 = vmatprep.subr.bf16.mxu0 0
    %1108 = vmatpush2.bf16.msra.mxu0 0
    %1109 = vmatprep.subr.bf16.mxu0 0
    %1110 = vmatpush2.bf16.msra.mxu0 0
    %1111 = vmatprep.subr.bf16.mxu0 0
    %1112 = vmatpush2.bf16.msra.mxu0 0
    %1113 = vmatprep.subr.bf16.mxu0 0
    %1114 = vmatpush2.bf16.msra.mxu0 0
    %1115 = vmatprep.subr.bf16.mxu0 0
    %1116 = vmatpush2.bf16.msra.mxu0 0
    %1117 = vmatprep.subr.bf16.mxu0 0
    %1118 = vmatpush2.bf16.msra.mxu0 0
    %1119 = vmatprep.subr.bf16.mxu0 0
    %1120 = vmatpush2.bf16.msra.mxu0 0
    %1121 = vmatprep.subr.bf16.mxu0 0
    %1122 = vmatpush2.bf16.msra.mxu0 0
    %1123 = vmatprep.mubr.bf16.mxu0 0
    %1124 = vmatmul.mubr.bf16.gmra.mxu0 %v1044
    %v1125 = vpop.f32.mrf.mxu0
    %v1126 = vadd.f32 0.0, %v1125
    %v1127 = vpop.f32.mrf.mxu0
    %v1128 = vadd.f32 0.0, %v1127
    %v1129 = vpop.f32.mrf.mxu0
    %v1130 = vpop.f32.mrf.mxu0
    %1131 = vdwg.mxu0
    %v1136 = vrot.slane %v1085, 6
    %v1137 = vrot.slane %v1087, 6
    %v1138 = vrot.slane %v1126, 6
    %v1139 = vrot.slane %v1128, 6
    %v1144 = vadd.f32 %v1046, %v1136
    %v1145 = vadd.f32 %v1047, %v1137
    %v1146 = vadd.f32 %v1048, %v1138
    %v1147 = vadd.f32 %v1049, %v1139
    %v1148 = vxor.u32 %v1144, 2147483648
    %v1149 = vmul.f32 %v1148, 1.442695
    %v1150 = vpow.pop %v1149
    %v1151 = vadd.f32 %v1150, 1.0
    %v1152 = vrcp.pop %v1151
    %v1153 = vmul.f32 1.0, %v1152
    %v1154 = vxor.u32 %v1145, 2147483648
    %v1155 = vmul.f32 %v1154, 1.442695
    %v1156 = vpow.pop %v1155
    %v1157 = vadd.f32 %v1156, 1.0
    %v1158 = vrcp.pop %v1157
    %v1159 = vmul.f32 1.0, %v1158
    %v1160 = vtanh.pop %v1146
    %v1161 = vxor.u32 %v1147, 2147483648
    %v1162 = vmul.f32 %v1161, 1.442695
    %v1163 = vpow.pop %v1162
    %v1164 = vadd.f32 %v1163, 1.0
    %v1165 = vrcp.pop %v1164
    %v1166 = vmul.f32 1.0, %v1165
    %v1168 = vrot.slane %v1041, 6
    %v1170 = vmul.f32 %v1159, %v1168
    %v1171 = vmul.f32 %v1153, %v1160
    %v1172 = vadd.f32 %v1170, %v1171
    %v1173 = vtanh.pop %v1172
    %v1174 = vmul.f32 %v1166, %v1173
    %v1175 = vpack.c.bf16 %v1174, %v1174
    %1176 = vst [vmem:[%s4 + $0x4] sm:$0x2] %v1175
    %v1177 = vld [vmem:[#allocation2 + $0x20] sm:$0x30]
    %v1178 = vld [vmem:[#allocation2 + $0x28] sm:$0x30]
    %v1179 = vld [vmem:[#allocation2 + $0x30] sm:$0x30]
    %v1180 = vld [vmem:[#allocation2 + $0x38] sm:$0x30]
    %v1182 = vrot.slane %v1175, 1
    %1184 = vmatprep.subr.bf16.mxu0 %v378
    %1185 = vmatpush1.bf16.msra.mxu0 %v377
    %1186 = vmatprep.subr.bf16.mxu0 %v374
    %1187 = vmatpush1.bf16.msra.mxu0 %v373
    %1188 = vmatprep.subr.bf16.mxu0 %v370
    %1189 = vmatpush1.bf16.msra.mxu0 %v369
    %1190 = vmatprep.subr.bf16.mxu0 %v366
    %1191 = vmatpush1.bf16.msra.mxu0 %v365
    %1192 = vmatprep.subr.bf16.mxu0 %v362
    %1193 = vmatpush1.bf16.msra.mxu0 %v361
    %1194 = vmatprep.subr.bf16.mxu0 %v358
    %1195 = vmatpush1.bf16.msra.mxu0 %v357
    %1196 = vmatprep.subr.bf16.mxu0 %v354
    %1197 = vmatpush1.bf16.msra.mxu0 %v353
    %1198 = vmatprep.subr.bf16.mxu0 %v350
    %1199 = vmatpush1.bf16.msra.mxu0 %v349
    %1200 = vmatprep.subr.bf16.mxu0 0
    %1201 = vmatpush2.bf16.msra.mxu0 0
    %1202 = vmatprep.subr.bf16.mxu0 0
    %1203 = vmatpush2.bf16.msra.mxu0 0
    %1204 = vmatprep.subr.bf16.mxu0 0
    %1205 = vmatpush2.bf16.msra.mxu0 0
    %1206 = vmatprep.subr.bf16.mxu0 0
    %1207 = vmatpush2.bf16.msra.mxu0 0
    %1208 = vmatprep.subr.bf16.mxu0 0
    %1209 = vmatpush2.bf16.msra.mxu0 0
    %1210 = vmatprep.subr.bf16.mxu0 0
    %1211 = vmatpush2.bf16.msra.mxu0 0
    %1212 = vmatprep.subr.bf16.mxu0 0
    %1213 = vmatpush2.bf16.msra.mxu0 0
    %1214 = vmatprep.subr.bf16.mxu0 0
    %1215 = vmatpush2.bf16.msra.mxu0 0
    %1216 = vmatprep.mubr.bf16.mxu0 0
    %1217 = vmatmul.mubr.bf16.gmra.mxu0 %v1182
    %v1218 = vpop.f32.mrf.mxu0
    %v1219 = vadd.f32 0.0, %v1218
    %v1220 = vpop.f32.mrf.mxu0
    %v1221 = vadd.f32 0.0, %v1220
    %v1222 = vpop.f32.mrf.mxu0
    %v1223 = vpop.f32.mrf.mxu0
    %1224 = vdwg.mxu0
    %1225 = vmatprep.subr.bf16.mxu0 %v380
    %1226 = vmatpush1.bf16.msra.mxu0 %v379
    %1227 = vmatprep.subr.bf16.mxu0 %v376
    %1228 = vmatpush1.bf16.msra.mxu0 %v375
    %1229 = vmatprep.subr.bf16.mxu0 %v372
    %1230 = vmatpush1.bf16.msra.mxu0 %v371
    %1231 = vmatprep.subr.bf16.mxu0 %v368
    %1232 = vmatpush1.bf16.msra.mxu0 %v367
    %1233 = vmatprep.subr.bf16.mxu0 %v364
    %1234 = vmatpush1.bf16.msra.mxu0 %v363
    %1235 = vmatprep.subr.bf16.mxu0 %v360
    %1236 = vmatpush1.bf16.msra.mxu0 %v359
    %1237 = vmatprep.subr.bf16.mxu0 %v356
    %1238 = vmatpush1.bf16.msra.mxu0 %v355
    %1239 = vmatprep.subr.bf16.mxu0 %v352
    %1240 = vmatpush1.bf16.msra.mxu0 %v351
    %1241 = vmatprep.subr.bf16.mxu0 0
    %1242 = vmatpush2.bf16.msra.mxu0 0
    %1243 = vmatprep.subr.bf16.mxu0 0
    %1244 = vmatpush2.bf16.msra.mxu0 0
    %1245 = vmatprep.subr.bf16.mxu0 0
    %1246 = vmatpush2.bf16.msra.mxu0 0
    %1247 = vmatprep.subr.bf16.mxu0 0
    %1248 = vmatpush2.bf16.msra.mxu0 0
    %1249 = vmatprep.subr.bf16.mxu0 0
    %1250 = vmatpush2.bf16.msra.mxu0 0
    %1251 = vmatprep.subr.bf16.mxu0 0
    %1252 = vmatpush2.bf16.msra.mxu0 0
    %1253 = vmatprep.subr.bf16.mxu0 0
    %1254 = vmatpush2.bf16.msra.mxu0 0
    %1255 = vmatprep.subr.bf16.mxu0 0
    %1256 = vmatpush2.bf16.msra.mxu0 0
    %1257 = vmatprep.mubr.bf16.mxu0 0
    %1258 = vmatmul.mubr.bf16.gmra.mxu0 %v1182
    %v1259 = vpop.f32.mrf.mxu0
    %v1260 = vadd.f32 0.0, %v1259
    %v1261 = vpop.f32.mrf.mxu0
    %v1262 = vadd.f32 0.0, %v1261
    %v1263 = vpop.f32.mrf.mxu0
    %v1264 = vpop.f32.mrf.mxu0
    %1265 = vdwg.mxu0
    %v1270 = vrot.slane %v1219, 4
    %v1271 = vrot.slane %v1221, 4
    %v1272 = vrot.slane %v1260, 4
    %v1273 = vrot.slane %v1262, 4
    %v1278 = vadd.f32 %v1177, %v1270
    %v1279 = vadd.f32 %v1178, %v1271
    %v1280 = vadd.f32 %v1179, %v1272
    %v1281 = vadd.f32 %v1180, %v1273
    %v1282 = vxor.u32 %v1278, 2147483648
    %v1283 = vmul.f32 %v1282, 1.442695
    %v1284 = vpow.pop %v1283
    %v1285 = vadd.f32 %v1284, 1.0
    %v1286 = vrcp.pop %v1285
    %v1287 = vmul.f32 1.0, %v1286
    %v1288 = vxor.u32 %v1279, 2147483648
    %v1289 = vmul.f32 %v1288, 1.442695
    %v1290 = vpow.pop %v1289
    %v1291 = vadd.f32 %v1290, 1.0
    %v1292 = vrcp.pop %v1291
    %v1293 = vmul.f32 1.0, %v1292
    %v1294 = vtanh.pop %v1280
    %v1295 = vxor.u32 %v1281, 2147483648
    %v1296 = vmul.f32 %v1295, 1.442695
    %v1297 = vpow.pop %v1296
    %v1298 = vadd.f32 %v1297, 1.0
    %v1299 = vrcp.pop %v1298
    %v1300 = vmul.f32 1.0, %v1299
    %v1302 = vrot.slane %v1172, 6
    %v1304 = vmul.f32 %v1293, %v1302
    %v1305 = vmul.f32 %v1287, %v1294
    %v1306 = vadd.f32 %v1304, %v1305
    %v1307 = vtanh.pop %v1306
    %v1308 = vmul.f32 %v1300, %v1307
    %v1309 = vpack.c.bf16 %v1308, %v1308
    %1310 = vst [vmem:[%s4 + $0x4] sm:$0x4] %v1309
    %v1311 = vld [vmem:[#allocation2 + $0x20] sm:$0xc0]
    %v1312 = vld [vmem:[#allocation2 + $0x28] sm:$0xc0]
    %v1313 = vld [vmem:[#allocation2 + $0x30] sm:$0xc0]
    %v1314 = vld [vmem:[#allocation2 + $0x38] sm:$0xc0]
    %v1316 = vrot.slane %v1309, 2
    %1318 = vmatprep.subr.bf16.mxu0 %v378
    %1319 = vmatpush1.bf16.msra.mxu0 %v377
    %1320 = vmatprep.subr.bf16.mxu0 %v374
    %1321 = vmatpush1.bf16.msra.mxu0 %v373
    %1322 = vmatprep.subr.bf16.mxu0 %v370
    %1323 = vmatpush1.bf16.msra.mxu0 %v369
    %1324 = vmatprep.subr.bf16.mxu0 %v366
    %1325 = vmatpush1.bf16.msra.mxu0 %v365
    %1326 = vmatprep.subr.bf16.mxu0 %v362
    %1327 = vmatpush1.bf16.msra.mxu0 %v361
    %1328 = vmatprep.subr.bf16.mxu0 %v358
    %1329 = vmatpush1.bf16.msra.mxu0 %v357
    %1330 = vmatprep.subr.bf16.mxu0 %v354
    %1331 = vmatpush1.bf16.msra.mxu0 %v353
    %1332 = vmatprep.subr.bf16.mxu0 %v350
    %1333 = vmatpush1.bf16.msra.mxu0 %v349
    %1334 = vmatprep.subr.bf16.mxu0 0
    %1335 = vmatpush2.bf16.msra.mxu0 0
    %1336 = vmatprep.subr.bf16.mxu0 0
    %1337 = vmatpush2.bf16.msra.mxu0 0
    %1338 = vmatprep.subr.bf16.mxu0 0
    %1339 = vmatpush2.bf16.msra.mxu0 0
    %1340 = vmatprep.subr.bf16.mxu0 0
    %1341 = vmatpush2.bf16.msra.mxu0 0
    %1342 = vmatprep.subr.bf16.mxu0 0
    %1343 = vmatpush2.bf16.msra.mxu0 0
    %1344 = vmatprep.subr.bf16.mxu0 0
    %1345 = vmatpush2.bf16.msra.mxu0 0
    %1346 = vmatprep.subr.bf16.mxu0 0
    %1347 = vmatpush2.bf16.msra.mxu0 0
    %1348 = vmatprep.subr.bf16.mxu0 0
    %1349 = vmatpush2.bf16.msra.mxu0 0
    %1350 = vmatprep.mubr.bf16.mxu0 0
    %1351 = vmatmul.mubr.bf16.gmra.mxu0 %v1316
    %v1352 = vpop.f32.mrf.mxu0
    %v1353 = vadd.f32 0.0, %v1352
    %v1354 = vpop.f32.mrf.mxu0
    %v1355 = vadd.f32 0.0, %v1354
    %v1356 = vpop.f32.mrf.mxu0
    %v1357 = vpop.f32.mrf.mxu0
    %1358 = vdwg.mxu0
    %1359 = vmatprep.subr.bf16.mxu0 %v380
    %1360 = vmatpush1.bf16.msra.mxu0 %v379
    %1361 = vmatprep.subr.bf16.mxu0 %v376
    %1362 = vmatpush1.bf16.msra.mxu0 %v375
    %1363 = vmatprep.subr.bf16.mxu0 %v372
    %1364 = vmatpush1.bf16.msra.mxu0 %v371
    %1365 = vmatprep.subr.bf16.mxu0 %v368
    %1366 = vmatpush1.bf16.msra.mxu0 %v367
    %1367 = vmatprep.subr.bf16.mxu0 %v364
    %1368 = vmatpush1.bf16.msra.mxu0 %v363
    %1369 = vmatprep.subr.bf16.mxu0 %v360
    %1370 = vmatpush1.bf16.msra.mxu0 %v359
    %1371 = vmatprep.subr.bf16.mxu0 %v356
    %1372 = vmatpush1.bf16.msra.mxu0 %v355
    %1373 = vmatprep.subr.bf16.mxu0 %v352
    %1374 = vmatpush1.bf16.msra.mxu0 %v351
    %1375 = vmatprep.subr.bf16.mxu0 0
    %1376 = vmatpush2.bf16.msra.mxu0 0
    %1377 = vmatprep.subr.bf16.mxu0 0
    %1378 = vmatpush2.bf16.msra.mxu0 0
    %1379 = vmatprep.subr.bf16.mxu0 0
    %1380 = vmatpush2.bf16.msra.mxu0 0
    %1381 = vmatprep.subr.bf16.mxu0 0
    %1382 = vmatpush2.bf16.msra.mxu0 0
    %1383 = vmatprep.subr.bf16.mxu0 0
    %1384 = vmatpush2.bf16.msra.mxu0 0
    %1385 = vmatprep.subr.bf16.mxu0 0
    %1386 = vmatpush2.bf16.msra.mxu0 0
    %1387 = vmatprep.subr.bf16.mxu0 0
    %1388 = vmatpush2.bf16.msra.mxu0 0
    %1389 = vmatprep.subr.bf16.mxu0 0
    %1390 = vmatpush2.bf16.msra.mxu0 0
    %1391 = vmatprep.mubr.bf16.mxu0 0
    %1392 = vmatmul.mubr.bf16.gmra.mxu0 %v1316
    %v1393 = vpop.f32.mrf.mxu0
    %v1394 = vadd.f32 0.0, %v1393
    %v1395 = vpop.f32.mrf.mxu0
    %v1396 = vadd.f32 0.0, %v1395
    %v1397 = vpop.f32.mrf.mxu0
    %v1398 = vpop.f32.mrf.mxu0
    %1399 = vdwg.mxu0
    %v1404 = vrot.slane %v1353, 2
    %v1405 = vrot.slane %v1355, 2
    %v1406 = vrot.slane %v1394, 2
    %v1407 = vrot.slane %v1396, 2
    %v1412 = vadd.f32 %v1311, %v1404
    %v1413 = vadd.f32 %v1312, %v1405
    %v1414 = vadd.f32 %v1313, %v1406
    %v1415 = vadd.f32 %v1314, %v1407
    %v1416 = vxor.u32 %v1412, 2147483648
    %v1417 = vmul.f32 %v1416, 1.442695
    %v1418 = vpow.pop %v1417
    %v1419 = vadd.f32 %v1418, 1.0
    %v1420 = vrcp.pop %v1419
    %v1421 = vmul.f32 1.0, %v1420
    %v1422 = vxor.u32 %v1413, 2147483648
    %v1423 = vmul.f32 %v1422, 1.442695
    %v1424 = vpow.pop %v1423
    %v1425 = vadd.f32 %v1424, 1.0
    %v1426 = vrcp.pop %v1425
    %v1427 = vmul.f32 1.0, %v1426
    %v1428 = vtanh.pop %v1414
    %v1429 = vxor.u32 %v1415, 2147483648
    %v1430 = vmul.f32 %v1429, 1.442695
    %v1431 = vpow.pop %v1430
    %v1432 = vadd.f32 %v1431, 1.0
    %v1433 = vrcp.pop %v1432
    %v1434 = vmul.f32 1.0, %v1433
    %v1436 = vrot.slane %v1306, 6
    %v1438 = vmul.f32 %v1427, %v1436
    %v1439 = vmul.f32 %v1421, %v1428
    %v1440 = vadd.f32 %v1438, %v1439
    %v1441 = vtanh.pop %v1440
    %v1442 = vmul.f32 %v1434, %v1441
    %v1443 = vpack.c.bf16 %v1442, %v1442
    %1444 = vst [vmem:[%s4 + $0x4] sm:$0x8] %v1443
    %1445 = vst [vmem:[#allocation3 - $0x6] sm:$0xc0] %v1442
    %1446 = vst [vmem:[#allocation4 - $0x6] sm:$0xc0] %v1440
    // Predicated region
    $region34: #{lstm_model_forward.2} parent=1 // pred_check
      _
    $region35: #{lstm_model_forward.2} parent=1 // pred_check_branch
      %1448 = sbr.rel (0) target = $region37
    $region36: #{lstm_model_forward.2} parent=1 // pred_region
      _
    $region37: #{lstm_model_forward.2} parent=1 // pred_fallthru
      _
    // Predicated region
    $region38: #{lstm_model_forward.2} parent=1 // pred_check
      _
    $region39: #{lstm_model_forward.2} parent=1 // pred_check_branch
      %1450 = sbr.rel (0) target = $region41
    $region40: #{lstm_model_forward.2} parent=1 // pred_region
      _
    $region41: #{lstm_model_forward.2} parent=1 // pred_fallthru
      _
    %1451 = vsyncpa [#allocation6], 1
    %1452 = vsyncpa [#allocation8], 1

// kernel: lstm_model_forward.3
$region0: #{lstm_model_forward.3}
  #allocation0 [shape = 'u32[]', space=smem, size = 0x4, offset = 0x4, fixed_abs, tag = 'smem constant byte address 0x4 - core index']
  #allocation1 [shape = 'u32[144,128]{1,0:T(1,128)}', space=vmem, size = 0x12000, scoped, tag = 'internal scratch']
  #allocation2 [shape = 'f32[16,512]{1,0:T(8,128)}', space=vmem, size = 0x8000, scoped, tag = 'scratch operand']
  #allocation3 [shape = 'f32[2,128]{1,0:T(2,128)}', space=vmem, size = 0x400, scoped, tag = 'scratch operand']
  #allocation4 [shape = 'f32[2,128]{1,0:T(2,128)}', space=vmem, size = 0x400, scoped, tag = 'scratch operand']
  %s0 = inlined_call_operand.vmem [shape: bf16[16,128], index: 0, kind: input, shape index: {}]
  %s1 = inlined_call_operand.vmem [shape: bf16[128,512], index: 1, kind: input, shape index: {}]
  %s2 = inlined_call_operand.hbm [shape: bf16[128,512], index: 2, kind: input, shape index: {}]
  %s3 = inlined_call_operand.vmem [shape: f32[1,512], index: 3, kind: input, shape index: {}]
  %s4 = inlined_call_operand.vmem [shape: bf16[128,4], index: 4, kind: input, shape index: {}]
  %s5 = inlined_call_operand.vmem [shape: f32[1,4], index: 5, kind: input, shape index: {}]
  %s6 = inlined_call_operand.hbm [shape: f32[2,4], index: 6, kind: output, shape index: {}]
  %s7 = sld [smem:[#allocation0]]
  $region46: #{lstm_model_forward.3} parent=0
    _
  %s9 = ssub.s32 1, %s7
  %s10 = scalar_select 0, %s9, %s7
  $region1: #{lstm_model_forward.3} parent=0
    #allocation5 [shape = 'u8[131072]{0}', space=vmem, size = 0x20000, scoped, tag = 'input window, operand 2, single buffered']
    #allocation6 [shape = 's32[1]{0}', space=sflag, size = 0x4, scoped, tag = 'scoped memory for lstm_model_forward.3']
    #allocation7 [shape = 's32[1]{0}', space=sflag, size = 0x4, scoped, tag = 'scoped memory for lstm_model_forward.3']
    #allocation8 [shape = 'u8[1024]{0}', space=vmem, size = 0x400, scoped, tag = 'output window, operand 0, single buffered']
    %11 = vsyncpa [#allocation6], 0
    %12 = vsyncpa [#allocation7], 0
    // Predicated region
    $region2: #{lstm_model_forward.3} parent=1 // pred_check
      _
    $region3: #{lstm_model_forward.3} parent=1 // pred_check_branch
      %14 = sbr.rel (0) target = $region5
    $region4: #{lstm_model_forward.3} parent=1 // pred_region
      _
    $region5: #{lstm_model_forward.3} parent=1 // pred_fallthru
      _
    // Predicated region
    $region6: #{lstm_model_forward.3} parent=1 // pred_check
      _
    $region7: #{lstm_model_forward.3} parent=1 // pred_check_branch
      %16 = sbr.rel (0) target = $region9
    $region8: #{lstm_model_forward.3} parent=1 // pred_region
      _
    $region9: #{lstm_model_forward.3} parent=1 // pred_fallthru
      _
    // Predicated region
    $region10: #{lstm_model_forward.3} parent=1 // pred_check
      _
    $region11: #{lstm_model_forward.3} parent=1 // pred_check_branch
      %18 = sbr.rel (0) target = $region13
    $region12: #{lstm_model_forward.3} parent=1 // pred_region
      %s20 = ssub.s32 4096, 4096
      %21 = vsyncadd [#allocation6], %s20
      %s22 = sshll.u32 [#allocation5], 4
      %s23 = int_to_ptr.vmem [resolvable:$true] %s22
      %28 = dma.hbm_to_vmem [thread:$0]  %s2, 4096, %s23, [#allocation6], 256, 256, 16
    $region13: #{lstm_model_forward.3} parent=1 // pred_fallthru
      _
    // Predicated region
    $region14: #{lstm_model_forward.3} parent=1 // pred_check
      _
    $region15: #{lstm_model_forward.3} parent=1 // pred_check_branch
      %30 = sbr.rel (0) target = $region17
    $region16: #{lstm_model_forward.3} parent=1 // pred_region
      _
    $region17: #{lstm_model_forward.3} parent=1 // pred_fallthru
      _
    // Predicated region
    $region18: #{lstm_model_forward.3} parent=1 // pred_check
      _
    $region19: #{lstm_model_forward.3} parent=1 // pred_check_branch
      %32 = sbr.rel (0) target = $region21
    $region20: #{lstm_model_forward.3} parent=1 // pred_region
      _
    $region21: #{lstm_model_forward.3} parent=1 // pred_fallthru
      _
    // Predicated region
    $region22: #{lstm_model_forward.3} parent=1 // pred_check
      _
    $region23: #{lstm_model_forward.3} parent=1 // pred_check_branch
      %34 = sbr.rel (0) target = $region25
    $region24: #{lstm_model_forward.3} parent=1 // pred_region
      _
    $region25: #{lstm_model_forward.3} parent=1 // pred_fallthru
      _
    // Predicated region
    $region26: #{lstm_model_forward.3} parent=1 // pred_check
      _
    $region27: #{lstm_model_forward.3} parent=1 // pred_check_branch
      %36 = sbr.rel (0) target = $region29
    $region28: #{lstm_model_forward.3} parent=1 // pred_region
      %37 = dma.done [#allocation6], 4096
    $region29: #{lstm_model_forward.3} parent=1 // pred_fallthru
      _
    %p39 = scmp.eq.s32.totalorder 0, 0
    // Predicated region
    $region30: #{lstm_model_forward.3} parent=1 // pred_check
      %p40 = pneg %p39
    $region31: #{lstm_model_forward.3} parent=1 // pred_check_branch
      %42 = sbr.rel (%p40) target = $region33
    $region32: #{lstm_model_forward.3} parent=1 // pred_region
      %43 = vst [vmem:[#allocation3] sm:$0x3] 0.0
      %44 = vst [vmem:[#allocation4] sm:$0x3] 0.0
    $region33: #{lstm_model_forward.3} parent=1 // pred_fallthru
      _
    %v45 = vld [vmem:[%s0] sm:$0xf]
    %v46 = vld [vmem:[%s0 + $0x4] sm:$0xf]
    %v47 = vld [vmem:[%s1] sm:$0xff]
    %v48 = vld [vmem:[%s1 + $0x8] sm:$0xff]
    %v49 = vld [vmem:[%s1 + $0x10] sm:$0xff]
    %v50 = vld [vmem:[%s1 + $0x18] sm:$0xff]
    %v51 = vld [vmem:[%s1 + $0x20] sm:$0xff]
    %v52 = vld [vmem:[%s1 + $0x28] sm:$0xff]
    %v53 = vld [vmem:[%s1 + $0x30] sm:$0xff]
    %v54 = vld [vmem:[%s1 + $0x38] sm:$0xff]
    %v55 = vld [vmem:[%s1 + $0x40] sm:$0xff]
    %v56 = vld [vmem:[%s1 + $0x48] sm:$0xff]
    %v57 = vld [vmem:[%s1 + $0x50] sm:$0xff]
    %v58 = vld [vmem:[%s1 + $0x58] sm:$0xff]
    %v59 = vld [vmem:[%s1 + $0x60] sm:$0xff]
    %v60 = vld [vmem:[%s1 + $0x68] sm:$0xff]
    %v61 = vld [vmem:[%s1 + $0x70] sm:$0xff]
    %v62 = vld [vmem:[%s1 + $0x78] sm:$0xff]
    %v63 = vld [vmem:[%s1 + $0x80] sm:$0xff]
    %v64 = vld [vmem:[%s1 + $0x88] sm:$0xff]
    %v65 = vld [vmem:[%s1 + $0x90] sm:$0xff]
    %v66 = vld [vmem:[%s1 + $0x98] sm:$0xff]
    %v67 = vld [vmem:[%s1 + $0xa0] sm:$0xff]
    %v68 = vld [vmem:[%s1 + $0xa8] sm:$0xff]
    %v69 = vld [vmem:[%s1 + $0xb0] sm:$0xff]
    %v70 = vld [vmem:[%s1 + $0xb8] sm:$0xff]
    %v71 = vld [vmem:[%s1 + $0xc0] sm:$0xff]
    %v72 = vld [vmem:[%s1 + $0xc8] sm:$0xff]
    %v73 = vld [vmem:[%s1 + $0xd0] sm:$0xff]
    %v74 = vld [vmem:[%s1 + $0xd8] sm:$0xff]
    %v75 = vld [vmem:[%s1 + $0xe0] sm:$0xff]
    %v76 = vld [vmem:[%s1 + $0xe8] sm:$0xff]
    %v77 = vld [vmem:[%s1 + $0xf0] sm:$0xff]
    %v78 = vld [vmem:[%s1 + $0xf8] sm:$0xff]
    %v79 = vld [vmem:[%s3] sm:$0xf]
    %v81 = vlaneseq
    %v82 = vshrl.u32 %v81, 7
    %v83 = vsub.s32 0, %v82
    %v84 = vrot.slane %v79, %v83
    %v85 = vlaneseq
    %v86 = vshrl.u32 %v85, 7
    %v87 = vsub.s32 1, %v86
    %v88 = vrot.slane %v79, %v87
    %v89 = vlaneseq
    %v90 = vshrl.u32 %v89, 7
    %v91 = vsub.s32 2, %v90
    %v92 = vrot.slane %v79, %v91
    %v93 = vlaneseq
    %v94 = vshrl.u32 %v93, 7
    %v95 = vsub.s32 3, %v94
    %v96 = vrot.slane %v79, %v95
    %v103 = vunpack.c.l.b16 %v45
    %v104 = vunpack.c.l.b16 %v46
    %v105 = vpack.c.b16 %v104, %v103
    %v139 = vunpack.c.l.b16 %v47
    %v140 = vunpack.c.h.b16 %v47
    %v141 = vunpack.c.l.b16 %v48
    %v142 = vunpack.c.h.b16 %v48
    %v143 = vunpack.c.l.b16 %v49
    %v144 = vunpack.c.h.b16 %v49
    %v145 = vunpack.c.l.b16 %v50
    %v146 = vunpack.c.h.b16 %v50
    %v147 = vunpack.c.l.b16 %v51
    %v148 = vunpack.c.h.b16 %v51
    %v149 = vunpack.c.l.b16 %v52
    %v150 = vunpack.c.h.b16 %v52
    %v151 = vunpack.c.l.b16 %v53
    %v152 = vunpack.c.h.b16 %v53
    %v153 = vunpack.c.l.b16 %v54
    %v154 = vunpack.c.h.b16 %v54
    %v155 = vunpack.c.l.b16 %v55
    %v156 = vunpack.c.h.b16 %v55
    %v157 = vunpack.c.l.b16 %v56
    %v158 = vunpack.c.h.b16 %v56
    %v159 = vunpack.c.l.b16 %v57
    %v160 = vunpack.c.h.b16 %v57
    %v161 = vunpack.c.l.b16 %v58
    %v162 = vunpack.c.h.b16 %v58
    %v163 = vunpack.c.l.b16 %v59
    %v164 = vunpack.c.h.b16 %v59
    %v165 = vunpack.c.l.b16 %v60
    %v166 = vunpack.c.h.b16 %v60
    %v167 = vunpack.c.l.b16 %v61
    %v168 = vunpack.c.h.b16 %v61
    %v169 = vunpack.c.l.b16 %v62
    %v170 = vunpack.c.h.b16 %v62
    %v171 = vunpack.c.l.b16 %v63
    %v172 = vunpack.c.h.b16 %v63
    %v173 = vunpack.c.l.b16 %v64
    %v174 = vunpack.c.h.b16 %v64
    %v175 = vunpack.c.l.b16 %v65
    %v176 = vunpack.c.h.b16 %v65
    %v177 = vunpack.c.l.b16 %v66
    %v178 = vunpack.c.h.b16 %v66
    %v179 = vunpack.c.l.b16 %v67
    %v180 = vunpack.c.h.b16 %v67
    %v181 = vunpack.c.l.b16 %v68
    %v182 = vunpack.c.h.b16 %v68
    %v183 = vunpack.c.l.b16 %v69
    %v184 = vunpack.c.h.b16 %v69
    %v185 = vunpack.c.l.b16 %v70
    %v186 = vunpack.c.h.b16 %v70
    %v187 = vunpack.c.l.b16 %v71
    %v188 = vunpack.c.h.b16 %v71
    %v189 = vunpack.c.l.b16 %v72
    %v190 = vunpack.c.h.b16 %v72
    %v191 = vunpack.c.l.b16 %v73
    %v192 = vunpack.c.h.b16 %v73
    %v193 = vunpack.c.l.b16 %v74
    %v194 = vunpack.c.h.b16 %v74
    %v195 = vunpack.c.l.b16 %v75
    %v196 = vunpack.c.h.b16 %v75
    %v197 = vunpack.c.l.b16 %v76
    %v198 = vunpack.c.h.b16 %v76
    %v199 = vunpack.c.l.b16 %v77
    %v200 = vunpack.c.h.b16 %v77
    %v201 = vunpack.c.l.b16 %v78
    %v202 = vunpack.c.h.b16 %v78
    %v203 = vpack.c.b16 %v143, %v139
    %v204 = vpack.c.b16 %v144, %v140
    %v205 = vpack.c.b16 %v145, %v141
    %v206 = vpack.c.b16 %v146, %v142
    %v207 = vpack.c.b16 %v151, %v147
    %v208 = vpack.c.b16 %v152, %v148
    %v209 = vpack.c.b16 %v153, %v149
    %v210 = vpack.c.b16 %v154, %v150
    %v211 = vpack.c.b16 %v159, %v155
    %v212 = vpack.c.b16 %v160, %v156
    %v213 = vpack.c.b16 %v161, %v157
    %v214 = vpack.c.b16 %v162, %v158
    %v215 = vpack.c.b16 %v167, %v163
    %v216 = vpack.c.b16 %v168, %v164
    %v217 = vpack.c.b16 %v169, %v165
    %v218 = vpack.c.b16 %v170, %v166
    %v219 = vpack.c.b16 %v175, %v171
    %v220 = vpack.c.b16 %v176, %v172
    %v221 = vpack.c.b16 %v177, %v173
    %v222 = vpack.c.b16 %v178, %v174
    %v223 = vpack.c.b16 %v183, %v179
    %v224 = vpack.c.b16 %v184, %v180
    %v225 = vpack.c.b16 %v185, %v181
    %v226 = vpack.c.b16 %v186, %v182
    %v227 = vpack.c.b16 %v191, %v187
    %v228 = vpack.c.b16 %v192, %v188
    %v229 = vpack.c.b16 %v193, %v189
    %v230 = vpack.c.b16 %v194, %v190
    %v231 = vpack.c.b16 %v199, %v195
    %v232 = vpack.c.b16 %v200, %v196
    %v233 = vpack.c.b16 %v201, %v197
    %v234 = vpack.c.b16 %v202, %v198
    %267 = vmatprep.subr.bf16.mxu0 %v232
    %268 = vmatpush1.bf16.msra.mxu0 %v231
    %269 = vmatprep.subr.bf16.mxu0 %v228
    %270 = vmatpush1.bf16.msra.mxu0 %v227
    %271 = vmatprep.subr.bf16.mxu0 %v224
    %272 = vmatpush1.bf16.msra.mxu0 %v223
    %273 = vmatprep.subr.bf16.mxu0 %v220
    %274 = vmatpush1.bf16.msra.mxu0 %v219
    %275 = vmatprep.subr.bf16.mxu0 %v216
    %276 = vmatpush1.bf16.msra.mxu0 %v215
    %277 = vmatprep.subr.bf16.mxu0 %v212
    %278 = vmatpush1.bf16.msra.mxu0 %v211
    %279 = vmatprep.subr.bf16.mxu0 %v208
    %280 = vmatpush1.bf16.msra.mxu0 %v207
    %281 = vmatprep.subr.bf16.mxu0 %v204
    %282 = vmatpush1.bf16.msra.mxu0 %v203
    %283 = vmatprep.subr.bf16.mxu0 0
    %284 = vmatpush2.bf16.msra.mxu0 0
    %285 = vmatprep.subr.bf16.mxu0 0
    %286 = vmatpush2.bf16.msra.mxu0 0
    %287 = vmatprep.subr.bf16.mxu0 0
    %288 = vmatpush2.bf16.msra.mxu0 0
    %289 = vmatprep.subr.bf16.mxu0 0
    %290 = vmatpush2.bf16.msra.mxu0 0
    %291 = vmatprep.subr.bf16.mxu0 0
    %292 = vmatpush2.bf16.msra.mxu0 0
    %293 = vmatprep.subr.bf16.mxu0 0
    %294 = vmatpush2.bf16.msra.mxu0 0
    %295 = vmatprep.subr.bf16.mxu0 0
    %296 = vmatpush2.bf16.msra.mxu0 0
    %297 = vmatprep.subr.bf16.mxu0 0
    %298 = vmatpush2.bf16.msra.mxu0 0
    %299 = vmatprep.mubr.bf16.mxu0 0
    %300 = vmatmul.mubr.bf16.gmra.mxu0 %v105
    %v301 = vpop.f32.mrf.mxu0
    %v302 = vadd.f32 %v84, %v301
    %v303 = vpop.f32.mrf.mxu0
    %v304 = vadd.f32 %v88, %v303
    %v305 = vpop.f32.mrf.mxu0
    %v306 = vadd.f32 %v84, %v305
    %v307 = vpop.f32.mrf.mxu0
    %v308 = vadd.f32 %v88, %v307
    %309 = vdwg.mxu0
    %310 = vmatprep.subr.bf16.mxu0 %v234
    %311 = vmatpush1.bf16.msra.mxu0 %v233
    %312 = vmatprep.subr.bf16.mxu0 %v230
    %313 = vmatpush1.bf16.msra.mxu0 %v229
    %314 = vmatprep.subr.bf16.mxu0 %v226
    %315 = vmatpush1.bf16.msra.mxu0 %v225
    %316 = vmatprep.subr.bf16.mxu0 %v222
    %317 = vmatpush1.bf16.msra.mxu0 %v221
    %318 = vmatprep.subr.bf16.mxu0 %v218
    %319 = vmatpush1.bf16.msra.mxu0 %v217
    %320 = vmatprep.subr.bf16.mxu0 %v214
    %321 = vmatpush1.bf16.msra.mxu0 %v213
    %322 = vmatprep.subr.bf16.mxu0 %v210
    %323 = vmatpush1.bf16.msra.mxu0 %v209
    %324 = vmatprep.subr.bf16.mxu0 %v206
    %325 = vmatpush1.bf16.msra.mxu0 %v205
    %326 = vmatprep.subr.bf16.mxu0 0
    %327 = vmatpush2.bf16.msra.mxu0 0
    %328 = vmatprep.subr.bf16.mxu0 0
    %329 = vmatpush2.bf16.msra.mxu0 0
    %330 = vmatprep.subr.bf16.mxu0 0
    %331 = vmatpush2.bf16.msra.mxu0 0
    %332 = vmatprep.subr.bf16.mxu0 0
    %333 = vmatpush2.bf16.msra.mxu0 0
    %334 = vmatprep.subr.bf16.mxu0 0
    %335 = vmatpush2.bf16.msra.mxu0 0
    %336 = vmatprep.subr.bf16.mxu0 0
    %337 = vmatpush2.bf16.msra.mxu0 0
    %338 = vmatprep.subr.bf16.mxu0 0
    %339 = vmatpush2.bf16.msra.mxu0 0
    %340 = vmatprep.subr.bf16.mxu0 0
    %341 = vmatpush2.bf16.msra.mxu0 0
    %342 = vmatprep.mubr.bf16.mxu0 0
    %343 = vmatmul.mubr.bf16.gmra.mxu0 %v105
    %v344 = vpop.f32.mrf.mxu0
    %v345 = vadd.f32 %v92, %v344
    %v346 = vpop.f32.mrf.mxu0
    %v347 = vadd.f32 %v96, %v346
    %v348 = vpop.f32.mrf.mxu0
    %v349 = vadd.f32 %v92, %v348
    %v350 = vpop.f32.mrf.mxu0
    %v351 = vadd.f32 %v96, %v350
    %352 = vdwg.mxu0
    %353 = vst [vmem:[#allocation2] sm:$0xff] %v302
    %354 = vst [vmem:[#allocation2 + $0x8] sm:$0xff] %v304
    %355 = vst [vmem:[#allocation2 + $0x10] sm:$0xff] %v345
    %356 = vst [vmem:[#allocation2 + $0x18] sm:$0xff] %v347
    %357 = vst [vmem:[#allocation2 + $0x20] sm:$0xff] %v306
    %358 = vst [vmem:[#allocation2 + $0x28] sm:$0xff] %v308
    %359 = vst [vmem:[#allocation2 + $0x30] sm:$0xff] %v349
    %360 = vst [vmem:[#allocation2 + $0x38] sm:$0xff] %v351
    %v361 = vld [vmem:[#allocation5] sm:$0xff]
    %v362 = vld [vmem:[#allocation5 + $0x8] sm:$0xff]
    %v363 = vld [vmem:[#allocation5 + $0x10] sm:$0xff]
    %v364 = vld [vmem:[#allocation5 + $0x18] sm:$0xff]
    %v365 = vld [vmem:[#allocation5 + $0x20] sm:$0xff]
    %v366 = vld [vmem:[#allocation5 + $0x28] sm:$0xff]
    %v367 = vld [vmem:[#allocation5 + $0x30] sm:$0xff]
    %v368 = vld [vmem:[#allocation5 + $0x38] sm:$0xff]
    %v369 = vld [vmem:[#allocation5 + $0x40] sm:$0xff]
    %v370 = vld [vmem:[#allocation5 + $0x48] sm:$0xff]
    %v371 = vld [vmem:[#allocation5 + $0x50] sm:$0xff]
    %v372 = vld [vmem:[#allocation5 + $0x58] sm:$0xff]
    %v373 = vld [vmem:[#allocation5 + $0x60] sm:$0xff]
    %v374 = vld [vmem:[#allocation5 + $0x68] sm:$0xff]
    %v375 = vld [vmem:[#allocation5 + $0x70] sm:$0xff]
    %v376 = vld [vmem:[#allocation5 + $0x78] sm:$0xff]
    %v377 = vld [vmem:[#allocation5 + $0x80] sm:$0xff]
    %v378 = vld [vmem:[#allocation5 + $0x88] sm:$0xff]
    %v379 = vld [vmem:[#allocation5 + $0x90] sm:$0xff]
    %v380 = vld [vmem:[#allocation5 + $0x98] sm:$0xff]
    %v381 = vld [vmem:[#allocation5 + $0xa0] sm:$0xff]
    %v382 = vld [vmem:[#allocation5 + $0xa8] sm:$0xff]
    %v383 = vld [vmem:[#allocation5 + $0xb0] sm:$0xff]
    %v384 = vld [vmem:[#allocation5 + $0xb8] sm:$0xff]
    %v385 = vld [vmem:[#allocation5 + $0xc0] sm:$0xff]
    %v386 = vld [vmem:[#allocation5 + $0xc8] sm:$0xff]
    %v387 = vld [vmem:[#allocation5 + $0xd0] sm:$0xff]
    %v388 = vld [vmem:[#allocation5 + $0xd8] sm:$0xff]
    %v389 = vld [vmem:[#allocation5 + $0xe0] sm:$0xff]
    %v390 = vld [vmem:[#allocation5 + $0xe8] sm:$0xff]
    %v391 = vld [vmem:[#allocation5 + $0xf0] sm:$0xff]
    %v392 = vld [vmem:[#allocation5 + $0xf8] sm:$0xff]
    %v393 = vld [vmem:[#allocation3] sm:$0x3]
    %v394 = vld [vmem:[#allocation4] sm:$0x3]
    %v395 = vld [vmem:[#allocation2] sm:$0x3]
    %v396 = vld [vmem:[#allocation2 + $0x8] sm:$0x3]
    %v397 = vld [vmem:[#allocation2 + $0x10] sm:$0x3]
    %v398 = vld [vmem:[#allocation2 + $0x18] sm:$0x3]
    %v399 = vpack.c.bf16 %v393, %v393
    %v432 = vunpack.c.l.b16 %v361
    %v433 = vunpack.c.h.b16 %v361
    %v434 = vunpack.c.l.b16 %v362
    %v435 = vunpack.c.h.b16 %v362
    %v436 = vunpack.c.l.b16 %v363
    %v437 = vunpack.c.h.b16 %v363
    %v438 = vunpack.c.l.b16 %v364
    %v439 = vunpack.c.h.b16 %v364
    %v440 = vunpack.c.l.b16 %v365
    %v441 = vunpack.c.h.b16 %v365
    %v442 = vunpack.c.l.b16 %v366
    %v443 = vunpack.c.h.b16 %v366
    %v444 = vunpack.c.l.b16 %v367
    %v445 = vunpack.c.h.b16 %v367
    %v446 = vunpack.c.l.b16 %v368
    %v447 = vunpack.c.h.b16 %v368
    %v448 = vunpack.c.l.b16 %v369
    %v449 = vunpack.c.h.b16 %v369
    %v450 = vunpack.c.l.b16 %v370
    %v451 = vunpack.c.h.b16 %v370
    %v452 = vunpack.c.l.b16 %v371
    %v453 = vunpack.c.h.b16 %v371
    %v454 = vunpack.c.l.b16 %v372
    %v455 = vunpack.c.h.b16 %v372
    %v456 = vunpack.c.l.b16 %v373
    %v457 = vunpack.c.h.b16 %v373
    %v458 = vunpack.c.l.b16 %v374
    %v459 = vunpack.c.h.b16 %v374
    %v460 = vunpack.c.l.b16 %v375
    %v461 = vunpack.c.h.b16 %v375
    %v462 = vunpack.c.l.b16 %v376
    %v463 = vunpack.c.h.b16 %v376
    %v464 = vunpack.c.l.b16 %v377
    %v465 = vunpack.c.h.b16 %v377
    %v466 = vunpack.c.l.b16 %v378
    %v467 = vunpack.c.h.b16 %v378
    %v468 = vunpack.c.l.b16 %v379
    %v469 = vunpack.c.h.b16 %v379
    %v470 = vunpack.c.l.b16 %v380
    %v471 = vunpack.c.h.b16 %v380
    %v472 = vunpack.c.l.b16 %v381
    %v473 = vunpack.c.h.b16 %v381
    %v474 = vunpack.c.l.b16 %v382
    %v475 = vunpack.c.h.b16 %v382
    %v476 = vunpack.c.l.b16 %v383
    %v477 = vunpack.c.h.b16 %v383
    %v478 = vunpack.c.l.b16 %v384
    %v479 = vunpack.c.h.b16 %v384
    %v480 = vunpack.c.l.b16 %v385
    %v481 = vunpack.c.h.b16 %v385
    %v482 = vunpack.c.l.b16 %v386
    %v483 = vunpack.c.h.b16 %v386
    %v484 = vunpack.c.l.b16 %v387
    %v485 = vunpack.c.h.b16 %v387
    %v486 = vunpack.c.l.b16 %v388
    %v487 = vunpack.c.h.b16 %v388
    %v488 = vunpack.c.l.b16 %v389
    %v489 = vunpack.c.h.b16 %v389
    %v490 = vunpack.c.l.b16 %v390
    %v491 = vunpack.c.h.b16 %v390
    %v492 = vunpack.c.l.b16 %v391
    %v493 = vunpack.c.h.b16 %v391
    %v494 = vunpack.c.l.b16 %v392
    %v495 = vunpack.c.h.b16 %v392
    %v496 = vpack.c.b16 %v436, %v432
    %v497 = vpack.c.b16 %v437, %v433
    %v498 = vpack.c.b16 %v438, %v434
    %v499 = vpack.c.b16 %v439, %v435
    %v500 = vpack.c.b16 %v444, %v440
    %v501 = vpack.c.b16 %v445, %v441
    %v502 = vpack.c.b16 %v446, %v442
    %v503 = vpack.c.b16 %v447, %v443
    %v504 = vpack.c.b16 %v452, %v448
    %v505 = vpack.c.b16 %v453, %v449
    %v506 = vpack.c.b16 %v454, %v450
    %v507 = vpack.c.b16 %v455, %v451
    %v508 = vpack.c.b16 %v460, %v456
    %v509 = vpack.c.b16 %v461, %v457
    %v510 = vpack.c.b16 %v462, %v458
    %v511 = vpack.c.b16 %v463, %v459
    %v512 = vpack.c.b16 %v468, %v464
    %v513 = vpack.c.b16 %v469, %v465
    %v514 = vpack.c.b16 %v470, %v466
    %v515 = vpack.c.b16 %v471, %v467
    %v516 = vpack.c.b16 %v476, %v472
    %v517 = vpack.c.b16 %v477, %v473
    %v518 = vpack.c.b16 %v478, %v474
    %v519 = vpack.c.b16 %v479, %v475
    %v520 = vpack.c.b16 %v484, %v480
    %v521 = vpack.c.b16 %v485, %v481
    %v522 = vpack.c.b16 %v486, %v482
    %v523 = vpack.c.b16 %v487, %v483
    %v524 = vpack.c.b16 %v492, %v488
    %v525 = vpack.c.b16 %v493, %v489
    %v526 = vpack.c.b16 %v494, %v490
    %v527 = vpack.c.b16 %v495, %v491
    %560 = vmatprep.subr.bf16.mxu0 %v525
    %561 = vmatpush1.bf16.msra.mxu0 %v524
    %562 = vmatprep.subr.bf16.mxu0 %v521
    %563 = vmatpush1.bf16.msra.mxu0 %v520
    %564 = vmatprep.subr.bf16.mxu0 %v517
    %565 = vmatpush1.bf16.msra.mxu0 %v516
    %566 = vmatprep.subr.bf16.mxu0 %v513
    %567 = vmatpush1.bf16.msra.mxu0 %v512
    %568 = vmatprep.subr.bf16.mxu0 %v509
    %569 = vmatpush1.bf16.msra.mxu0 %v508
    %570 = vmatprep.subr.bf16.mxu0 %v505
    %571 = vmatpush1.bf16.msra.mxu0 %v504
    %572 = vmatprep.subr.bf16.mxu0 %v501
    %573 = vmatpush1.bf16.msra.mxu0 %v500
    %574 = vmatprep.subr.bf16.mxu0 %v497
    %575 = vmatpush1.bf16.msra.mxu0 %v496
    %576 = vmatprep.subr.bf16.mxu0 0
    %577 = vmatpush2.bf16.msra.mxu0 0
    %578 = vmatprep.subr.bf16.mxu0 0
    %579 = vmatpush2.bf16.msra.mxu0 0
    %580 = vmatprep.subr.bf16.mxu0 0
    %581 = vmatpush2.bf16.msra.mxu0 0
    %582 = vmatprep.subr.bf16.mxu0 0
    %583 = vmatpush2.bf16.msra.mxu0 0
    %584 = vmatprep.subr.bf16.mxu0 0
    %585 = vmatpush2.bf16.msra.mxu0 0
    %586 = vmatprep.subr.bf16.mxu0 0
    %587 = vmatpush2.bf16.msra.mxu0 0
    %588 = vmatprep.subr.bf16.mxu0 0
    %589 = vmatpush2.bf16.msra.mxu0 0
    %590 = vmatprep.subr.bf16.mxu0 0
    %591 = vmatpush2.bf16.msra.mxu0 0
    %592 = vmatprep.mubr.bf16.mxu0 0
    %593 = vmatmul.mubr.bf16.gmra.mxu0 %v399
    %v594 = vpop.f32.mrf.mxu0
    %v595 = vadd.f32 0.0, %v594
    %v596 = vpop.f32.mrf.mxu0
    %v597 = vadd.f32 0.0, %v596
    %v598 = vpop.f32.mrf.mxu0
    %v599 = vpop.f32.mrf.mxu0
    %600 = vdwg.mxu0
    %601 = vmatprep.subr.bf16.mxu0 %v527
    %602 = vmatpush1.bf16.msra.mxu0 %v526
    %603 = vmatprep.subr.bf16.mxu0 %v523
    %604 = vmatpush1.bf16.msra.mxu0 %v522
    %605 = vmatprep.subr.bf16.mxu0 %v519
    %606 = vmatpush1.bf16.msra.mxu0 %v518
    %607 = vmatprep.subr.bf16.mxu0 %v515
    %608 = vmatpush1.bf16.msra.mxu0 %v514
    %609 = vmatprep.subr.bf16.mxu0 %v511
    %610 = vmatpush1.bf16.msra.mxu0 %v510
    %611 = vmatprep.subr.bf16.mxu0 %v507
    %612 = vmatpush1.bf16.msra.mxu0 %v506
    %613 = vmatprep.subr.bf16.mxu0 %v503
    %614 = vmatpush1.bf16.msra.mxu0 %v502
    %615 = vmatprep.subr.bf16.mxu0 %v499
    %616 = vmatpush1.bf16.msra.mxu0 %v498
    %617 = vmatprep.subr.bf16.mxu0 0
    %618 = vmatpush2.bf16.msra.mxu0 0
    %619 = vmatprep.subr.bf16.mxu0 0
    %620 = vmatpush2.bf16.msra.mxu0 0
    %621 = vmatprep.subr.bf16.mxu0 0
    %622 = vmatpush2.bf16.msra.mxu0 0
    %623 = vmatprep.subr.bf16.mxu0 0
    %624 = vmatpush2.bf16.msra.mxu0 0
    %625 = vmatprep.subr.bf16.mxu0 0
    %626 = vmatpush2.bf16.msra.mxu0 0
    %627 = vmatprep.subr.bf16.mxu0 0
    %628 = vmatpush2.bf16.msra.mxu0 0
    %629 = vmatprep.subr.bf16.mxu0 0
    %630 = vmatpush2.bf16.msra.mxu0 0
    %631 = vmatprep.subr.bf16.mxu0 0
    %632 = vmatpush2.bf16.msra.mxu0 0
    %633 = vmatprep.mubr.bf16.mxu0 0
    %634 = vmatmul.mubr.bf16.gmra.mxu0 %v399
    %v635 = vpop.f32.mrf.mxu0
    %v636 = vadd.f32 0.0, %v635
    %v637 = vpop.f32.mrf.mxu0
    %v638 = vadd.f32 0.0, %v637
    %v639 = vpop.f32.mrf.mxu0
    %v640 = vpop.f32.mrf.mxu0
    %641 = vdwg.mxu0
    %v642 = vadd.f32 %v395, %v595
    %v643 = vadd.f32 %v396, %v597
    %v644 = vadd.f32 %v397, %v636
    %v645 = vadd.f32 %v398, %v638
    %v646 = vxor.u32 %v642, 2147483648
    %v647 = vmul.f32 %v646, 1.442695
    %v648 = vpow.pop %v647
    %v649 = vadd.f32 %v648, 1.0
    %v650 = vrcp.pop %v649
    %v651 = vmul.f32 1.0, %v650
    %v652 = vxor.u32 %v643, 2147483648
    %v653 = vmul.f32 %v652, 1.442695
    %v654 = vpow.pop %v653
    %v655 = vadd.f32 %v654, 1.0
    %v656 = vrcp.pop %v655
    %v657 = vmul.f32 1.0, %v656
    %v658 = vtanh.pop %v644
    %v659 = vxor.u32 %v645, 2147483648
    %v660 = vmul.f32 %v659, 1.442695
    %v661 = vpow.pop %v660
    %v662 = vadd.f32 %v661, 1.0
    %v663 = vrcp.pop %v662
    %v664 = vmul.f32 1.0, %v663
    %v665 = vmul.f32 %v657, %v394
    %v666 = vmul.f32 %v651, %v658
    %v667 = vadd.f32 %v665, %v666
    %v668 = vtanh.pop %v667
    %v669 = vmul.f32 %v664, %v668
    %v670 = vld [vmem:[#allocation2] sm:$0xc]
    %v671 = vld [vmem:[#allocation2 + $0x8] sm:$0xc]
    %v672 = vld [vmem:[#allocation2 + $0x10] sm:$0xc]
    %v673 = vld [vmem:[#allocation2 + $0x18] sm:$0xc]
    %v674 = vpack.c.bf16 %v669, %v669
    %675 = vmatprep.subr.bf16.mxu0 %v525
    %676 = vmatpush1.bf16.msra.mxu0 %v524
    %677 = vmatprep.subr.bf16.mxu0 %v521
    %678 = vmatpush1.bf16.msra.mxu0 %v520
    %679 = vmatprep.subr.bf16.mxu0 %v517
    %680 = vmatpush1.bf16.msra.mxu0 %v516
    %681 = vmatprep.subr.bf16.mxu0 %v513
    %682 = vmatpush1.bf16.msra.mxu0 %v512
    %683 = vmatprep.subr.bf16.mxu0 %v509
    %684 = vmatpush1.bf16.msra.mxu0 %v508
    %685 = vmatprep.subr.bf16.mxu0 %v505
    %686 = vmatpush1.bf16.msra.mxu0 %v504
    %687 = vmatprep.subr.bf16.mxu0 %v501
    %688 = vmatpush1.bf16.msra.mxu0 %v500
    %689 = vmatprep.subr.bf16.mxu0 %v497
    %690 = vmatpush1.bf16.msra.mxu0 %v496
    %691 = vmatprep.subr.bf16.mxu0 0
    %692 = vmatpush2.bf16.msra.mxu0 0
    %693 = vmatprep.subr.bf16.mxu0 0
    %694 = vmatpush2.bf16.msra.mxu0 0
    %695 = vmatprep.subr.bf16.mxu0 0
    %696 = vmatpush2.bf16.msra.mxu0 0
    %697 = vmatprep.subr.bf16.mxu0 0
    %698 = vmatpush2.bf16.msra.mxu0 0
    %699 = vmatprep.subr.bf16.mxu0 0
    %700 = vmatpush2.bf16.msra.mxu0 0
    %701 = vmatprep.subr.bf16.mxu0 0
    %702 = vmatpush2.bf16.msra.mxu0 0
    %703 = vmatprep.subr.bf16.mxu0 0
    %704 = vmatpush2.bf16.msra.mxu0 0
    %705 = vmatprep.subr.bf16.mxu0 0
    %706 = vmatpush2.bf16.msra.mxu0 0
    %707 = vmatprep.mubr.bf16.mxu0 0
    %708 = vmatmul.mubr.bf16.gmra.mxu0 %v674
    %v709 = vpop.f32.mrf.mxu0
    %v710 = vadd.f32 0.0, %v709
    %v711 = vpop.f32.mrf.mxu0
    %v712 = vadd.f32 0.0, %v711
    %v713 = vpop.f32.mrf.mxu0
    %v714 = vpop.f32.mrf.mxu0
    %715 = vdwg.mxu0
    %716 = vmatprep.subr.bf16.mxu0 %v527
    %717 = vmatpush1.bf16.msra.mxu0 %v526
    %718 = vmatprep.subr.bf16.mxu0 %v523
    %719 = vmatpush1.bf16.msra.mxu0 %v522
    %720 = vmatprep.subr.bf16.mxu0 %v519
    %721 = vmatpush1.bf16.msra.mxu0 %v518
    %722 = vmatprep.subr.bf16.mxu0 %v515
    %723 = vmatpush1.bf16.msra.mxu0 %v514
    %724 = vmatprep.subr.bf16.mxu0 %v511
    %725 = vmatpush1.bf16.msra.mxu0 %v510
    %726 = vmatprep.subr.bf16.mxu0 %v507
    %727 = vmatpush1.bf16.msra.mxu0 %v506
    %728 = vmatprep.subr.bf16.mxu0 %v503
    %729 = vmatpush1.bf16.msra.mxu0 %v502
    %730 = vmatprep.subr.bf16.mxu0 %v499
    %731 = vmatpush1.bf16.msra.mxu0 %v498
    %732 = vmatprep.subr.bf16.mxu0 0
    %733 = vmatpush2.bf16.msra.mxu0 0
    %734 = vmatprep.subr.bf16.mxu0 0
    %735 = vmatpush2.bf16.msra.mxu0 0
    %736 = vmatprep.subr.bf16.mxu0 0
    %737 = vmatpush2.bf16.msra.mxu0 0
    %738 = vmatprep.subr.bf16.mxu0 0
    %739 = vmatpush2.bf16.msra.mxu0 0
    %740 = vmatprep.subr.bf16.mxu0 0
    %741 = vmatpush2.bf16.msra.mxu0 0
    %742 = vmatprep.subr.bf16.mxu0 0
    %743 = vmatpush2.bf16.msra.mxu0 0
    %744 = vmatprep.subr.bf16.mxu0 0
    %745 = vmatpush2.bf16.msra.mxu0 0
    %746 = vmatprep.subr.bf16.mxu0 0
    %747 = vmatpush2.bf16.msra.mxu0 0
    %748 = vmatprep.mubr.bf16.mxu0 0
    %749 = vmatmul.mubr.bf16.gmra.mxu0 %v674
    %v750 = vpop.f32.mrf.mxu0
    %v751 = vadd.f32 0.0, %v750
    %v752 = vpop.f32.mrf.mxu0
    %v753 = vadd.f32 0.0, %v752
    %v754 = vpop.f32.mrf.mxu0
    %v755 = vpop.f32.mrf.mxu0
    %756 = vdwg.mxu0
    %v761 = vrot.slane %v710, 6
    %v762 = vrot.slane %v712, 6
    %v763 = vrot.slane %v751, 6
    %v764 = vrot.slane %v753, 6
    %v769 = vadd.f32 %v670, %v761
    %v770 = vadd.f32 %v671, %v762
    %v771 = vadd.f32 %v672, %v763
    %v772 = vadd.f32 %v673, %v764
    %v773 = vxor.u32 %v769, 2147483648
    %v774 = vmul.f32 %v773, 1.442695
    %v775 = vpow.pop %v774
    %v776 = vadd.f32 %v775, 1.0
    %v777 = vrcp.pop %v776
    %v778 = vmul.f32 1.0, %v777
    %v779 = vxor.u32 %v770, 2147483648
    %v780 = vmul.f32 %v779, 1.442695
    %v781 = vpow.pop %v780
    %v782 = vadd.f32 %v781, 1.0
    %v783 = vrcp.pop %v782
    %v784 = vmul.f32 1.0, %v783
    %v785 = vtanh.pop %v771
    %v786 = vxor.u32 %v772, 2147483648
    %v787 = vmul.f32 %v786, 1.442695
    %v788 = vpow.pop %v787
    %v789 = vadd.f32 %v788, 1.0
    %v790 = vrcp.pop %v789
    %v791 = vmul.f32 1.0, %v790
    %v793 = vrot.slane %v667, 6
    %v795 = vmul.f32 %v784, %v793
    %v796 = vmul.f32 %v778, %v785
    %v797 = vadd.f32 %v795, %v796
    %v798 = vtanh.pop %v797
    %v799 = vmul.f32 %v791, %v798
    %v800 = vld [vmem:[#allocation2] sm:$0x30]
    %v801 = vld [vmem:[#allocation2 + $0x8] sm:$0x30]
    %v802 = vld [vmem:[#allocation2 + $0x10] sm:$0x30]
    %v803 = vld [vmem:[#allocation2 + $0x18] sm:$0x30]
    %v804 = vpack.c.bf16 %v799, %v799
    %v806 = vrot.slane %v804, 1
    %808 = vmatprep.subr.bf16.mxu0 %v525
    %809 = vmatpush1.bf16.msra.mxu0 %v524
    %810 = vmatprep.subr.bf16.mxu0 %v521
    %811 = vmatpush1.bf16.msra.mxu0 %v520
    %812 = vmatprep.subr.bf16.mxu0 %v517
    %813 = vmatpush1.bf16.msra.mxu0 %v516
    %814 = vmatprep.subr.bf16.mxu0 %v513
    %815 = vmatpush1.bf16.msra.mxu0 %v512
    %816 = vmatprep.subr.bf16.mxu0 %v509
    %817 = vmatpush1.bf16.msra.mxu0 %v508
    %818 = vmatprep.subr.bf16.mxu0 %v505
    %819 = vmatpush1.bf16.msra.mxu0 %v504
    %820 = vmatprep.subr.bf16.mxu0 %v501
    %821 = vmatpush1.bf16.msra.mxu0 %v500
    %822 = vmatprep.subr.bf16.mxu0 %v497
    %823 = vmatpush1.bf16.msra.mxu0 %v496
    %824 = vmatprep.subr.bf16.mxu0 0
    %825 = vmatpush2.bf16.msra.mxu0 0
    %826 = vmatprep.subr.bf16.mxu0 0
    %827 = vmatpush2.bf16.msra.mxu0 0
    %828 = vmatprep.subr.bf16.mxu0 0
    %829 = vmatpush2.bf16.msra.mxu0 0
    %830 = vmatprep.subr.bf16.mxu0 0
    %831 = vmatpush2.bf16.msra.mxu0 0
    %832 = vmatprep.subr.bf16.mxu0 0
    %833 = vmatpush2.bf16.msra.mxu0 0
    %834 = vmatprep.subr.bf16.mxu0 0
    %835 = vmatpush2.bf16.msra.mxu0 0
    %836 = vmatprep.subr.bf16.mxu0 0
    %837 = vmatpush2.bf16.msra.mxu0 0
    %838 = vmatprep.subr.bf16.mxu0 0
    %839 = vmatpush2.bf16.msra.mxu0 0
    %840 = vmatprep.mubr.bf16.mxu0 0
    %841 = vmatmul.mubr.bf16.gmra.mxu0 %v806
    %v842 = vpop.f32.mrf.mxu0
    %v843 = vadd.f32 0.0, %v842
    %v844 = vpop.f32.mrf.mxu0
    %v845 = vadd.f32 0.0, %v844
    %v846 = vpop.f32.mrf.mxu0
    %v847 = vpop.f32.mrf.mxu0
    %848 = vdwg.mxu0
    %849 = vmatprep.subr.bf16.mxu0 %v527
    %850 = vmatpush1.bf16.msra.mxu0 %v526
    %851 = vmatprep.subr.bf16.mxu0 %v523
    %852 = vmatpush1.bf16.msra.mxu0 %v522
    %853 = vmatprep.subr.bf16.mxu0 %v519
    %854 = vmatpush1.bf16.msra.mxu0 %v518
    %855 = vmatprep.subr.bf16.mxu0 %v515
    %856 = vmatpush1.bf16.msra.mxu0 %v514
    %857 = vmatprep.subr.bf16.mxu0 %v511
    %858 = vmatpush1.bf16.msra.mxu0 %v510
    %859 = vmatprep.subr.bf16.mxu0 %v507
    %860 = vmatpush1.bf16.msra.mxu0 %v506
    %861 = vmatprep.subr.bf16.mxu0 %v503
    %862 = vmatpush1.bf16.msra.mxu0 %v502
    %863 = vmatprep.subr.bf16.mxu0 %v499
    %864 = vmatpush1.bf16.msra.mxu0 %v498
    %865 = vmatprep.subr.bf16.mxu0 0
    %866 = vmatpush2.bf16.msra.mxu0 0
    %867 = vmatprep.subr.bf16.mxu0 0
    %868 = vmatpush2.bf16.msra.mxu0 0
    %869 = vmatprep.subr.bf16.mxu0 0
    %870 = vmatpush2.bf16.msra.mxu0 0
    %871 = vmatprep.subr.bf16.mxu0 0
    %872 = vmatpush2.bf16.msra.mxu0 0
    %873 = vmatprep.subr.bf16.mxu0 0
    %874 = vmatpush2.bf16.msra.mxu0 0
    %875 = vmatprep.subr.bf16.mxu0 0
    %876 = vmatpush2.bf16.msra.mxu0 0
    %877 = vmatprep.subr.bf16.mxu0 0
    %878 = vmatpush2.bf16.msra.mxu0 0
    %879 = vmatprep.subr.bf16.mxu0 0
    %880 = vmatpush2.bf16.msra.mxu0 0
    %881 = vmatprep.mubr.bf16.mxu0 0
    %882 = vmatmul.mubr.bf16.gmra.mxu0 %v806
    %v883 = vpop.f32.mrf.mxu0
    %v884 = vadd.f32 0.0, %v883
    %v885 = vpop.f32.mrf.mxu0
    %v886 = vadd.f32 0.0, %v885
    %v887 = vpop.f32.mrf.mxu0
    %v888 = vpop.f32.mrf.mxu0
    %889 = vdwg.mxu0
    %v894 = vrot.slane %v843, 4
    %v895 = vrot.slane %v845, 4
    %v896 = vrot.slane %v884, 4
    %v897 = vrot.slane %v886, 4
    %v902 = vadd.f32 %v800, %v894
    %v903 = vadd.f32 %v801, %v895
    %v904 = vadd.f32 %v802, %v896
    %v905 = vadd.f32 %v803, %v897
    %v906 = vxor.u32 %v902, 2147483648
    %v907 = vmul.f32 %v906, 1.442695
    %v908 = vpow.pop %v907
    %v909 = vadd.f32 %v908, 1.0
    %v910 = vrcp.pop %v909
    %v911 = vmul.f32 1.0, %v910
    %v912 = vxor.u32 %v903, 2147483648
    %v913 = vmul.f32 %v912, 1.442695
    %v914 = vpow.pop %v913
    %v915 = vadd.f32 %v914, 1.0
    %v916 = vrcp.pop %v915
    %v917 = vmul.f32 1.0, %v916
    %v918 = vtanh.pop %v904
    %v919 = vxor.u32 %v905, 2147483648
    %v920 = vmul.f32 %v919, 1.442695
    %v921 = vpow.pop %v920
    %v922 = vadd.f32 %v921, 1.0
    %v923 = vrcp.pop %v922
    %v924 = vmul.f32 1.0, %v923
    %v926 = vrot.slane %v797, 6
    %v928 = vmul.f32 %v917, %v926
    %v929 = vmul.f32 %v911, %v918
    %v930 = vadd.f32 %v928, %v929
    %v931 = vtanh.pop %v930
    %v932 = vmul.f32 %v924, %v931
    %v933 = vld [vmem:[#allocation2] sm:$0xc0]
    %v934 = vld [vmem:[#allocation2 + $0x8] sm:$0xc0]
    %v935 = vld [vmem:[#allocation2 + $0x10] sm:$0xc0]
    %v936 = vld [vmem:[#allocation2 + $0x18] sm:$0xc0]
    %v937 = vpack.c.bf16 %v932, %v932
    %v939 = vrot.slane %v937, 2
    %941 = vmatprep.subr.bf16.mxu0 %v525
    %942 = vmatpush1.bf16.msra.mxu0 %v524
    %943 = vmatprep.subr.bf16.mxu0 %v521
    %944 = vmatpush1.bf16.msra.mxu0 %v520
    %945 = vmatprep.subr.bf16.mxu0 %v517
    %946 = vmatpush1.bf16.msra.mxu0 %v516
    %947 = vmatprep.subr.bf16.mxu0 %v513
    %948 = vmatpush1.bf16.msra.mxu0 %v512
    %949 = vmatprep.subr.bf16.mxu0 %v509
    %950 = vmatpush1.bf16.msra.mxu0 %v508
    %951 = vmatprep.subr.bf16.mxu0 %v505
    %952 = vmatpush1.bf16.msra.mxu0 %v504
    %953 = vmatprep.subr.bf16.mxu0 %v501
    %954 = vmatpush1.bf16.msra.mxu0 %v500
    %955 = vmatprep.subr.bf16.mxu0 %v497
    %956 = vmatpush1.bf16.msra.mxu0 %v496
    %957 = vmatprep.subr.bf16.mxu0 0
    %958 = vmatpush2.bf16.msra.mxu0 0
    %959 = vmatprep.subr.bf16.mxu0 0
    %960 = vmatpush2.bf16.msra.mxu0 0
    %961 = vmatprep.subr.bf16.mxu0 0
    %962 = vmatpush2.bf16.msra.mxu0 0
    %963 = vmatprep.subr.bf16.mxu0 0
    %964 = vmatpush2.bf16.msra.mxu0 0
    %965 = vmatprep.subr.bf16.mxu0 0
    %966 = vmatpush2.bf16.msra.mxu0 0
    %967 = vmatprep.subr.bf16.mxu0 0
    %968 = vmatpush2.bf16.msra.mxu0 0
    %969 = vmatprep.subr.bf16.mxu0 0
    %970 = vmatpush2.bf16.msra.mxu0 0
    %971 = vmatprep.subr.bf16.mxu0 0
    %972 = vmatpush2.bf16.msra.mxu0 0
    %973 = vmatprep.mubr.bf16.mxu0 0
    %974 = vmatmul.mubr.bf16.gmra.mxu0 %v939
    %v975 = vpop.f32.mrf.mxu0
    %v976 = vadd.f32 0.0, %v975
    %v977 = vpop.f32.mrf.mxu0
    %v978 = vadd.f32 0.0, %v977
    %v979 = vpop.f32.mrf.mxu0
    %v980 = vpop.f32.mrf.mxu0
    %981 = vdwg.mxu0
    %982 = vmatprep.subr.bf16.mxu0 %v527
    %983 = vmatpush1.bf16.msra.mxu0 %v526
    %984 = vmatprep.subr.bf16.mxu0 %v523
    %985 = vmatpush1.bf16.msra.mxu0 %v522
    %986 = vmatprep.subr.bf16.mxu0 %v519
    %987 = vmatpush1.bf16.msra.mxu0 %v518
    %988 = vmatprep.subr.bf16.mxu0 %v515
    %989 = vmatpush1.bf16.msra.mxu0 %v514
    %990 = vmatprep.subr.bf16.mxu0 %v511
    %991 = vmatpush1.bf16.msra.mxu0 %v510
    %992 = vmatprep.subr.bf16.mxu0 %v507
    %993 = vmatpush1.bf16.msra.mxu0 %v506
    %994 = vmatprep.subr.bf16.mxu0 %v503
    %995 = vmatpush1.bf16.msra.mxu0 %v502
    %996 = vmatprep.subr.bf16.mxu0 %v499
    %997 = vmatpush1.bf16.msra.mxu0 %v498
    %998 = vmatprep.subr.bf16.mxu0 0
    %999 = vmatpush2.bf16.msra.mxu0 0
    %1000 = vmatprep.subr.bf16.mxu0 0
    %1001 = vmatpush2.bf16.msra.mxu0 0
    %1002 = vmatprep.subr.bf16.mxu0 0
    %1003 = vmatpush2.bf16.msra.mxu0 0
    %1004 = vmatprep.subr.bf16.mxu0 0
    %1005 = vmatpush2.bf16.msra.mxu0 0
    %1006 = vmatprep.subr.bf16.mxu0 0
    %1007 = vmatpush2.bf16.msra.mxu0 0
    %1008 = vmatprep.subr.bf16.mxu0 0
    %1009 = vmatpush2.bf16.msra.mxu0 0
    %1010 = vmatprep.subr.bf16.mxu0 0
    %1011 = vmatpush2.bf16.msra.mxu0 0
    %1012 = vmatprep.subr.bf16.mxu0 0
    %1013 = vmatpush2.bf16.msra.mxu0 0
    %1014 = vmatprep.mubr.bf16.mxu0 0
    %1015 = vmatmul.mubr.bf16.gmra.mxu0 %v939
    %v1016 = vpop.f32.mrf.mxu0
    %v1017 = vadd.f32 0.0, %v1016
    %v1018 = vpop.f32.mrf.mxu0
    %v1019 = vadd.f32 0.0, %v1018
    %v1020 = vpop.f32.mrf.mxu0
    %v1021 = vpop.f32.mrf.mxu0
    %1022 = vdwg.mxu0
    %v1027 = vrot.slane %v976, 2
    %v1028 = vrot.slane %v978, 2
    %v1029 = vrot.slane %v1017, 2
    %v1030 = vrot.slane %v1019, 2
    %v1035 = vadd.f32 %v933, %v1027
    %v1036 = vadd.f32 %v934, %v1028
    %v1037 = vadd.f32 %v935, %v1029
    %v1038 = vadd.f32 %v936, %v1030
    %v1039 = vxor.u32 %v1035, 2147483648
    %v1040 = vmul.f32 %v1039, 1.442695
    %v1041 = vpow.pop %v1040
    %v1042 = vadd.f32 %v1041, 1.0
    %v1043 = vrcp.pop %v1042
    %v1044 = vmul.f32 1.0, %v1043
    %v1045 = vxor.u32 %v1036, 2147483648
    %v1046 = vmul.f32 %v1045, 1.442695
    %v1047 = vpow.pop %v1046
    %v1048 = vadd.f32 %v1047, 1.0
    %v1049 = vrcp.pop %v1048
    %v1050 = vmul.f32 1.0, %v1049
    %v1051 = vtanh.pop %v1037
    %v1052 = vxor.u32 %v1038, 2147483648
    %v1053 = vmul.f32 %v1052, 1.442695
    %v1054 = vpow.pop %v1053
    %v1055 = vadd.f32 %v1054, 1.0
    %v1056 = vrcp.pop %v1055
    %v1057 = vmul.f32 1.0, %v1056
    %v1059 = vrot.slane %v930, 6
    %v1061 = vmul.f32 %v1050, %v1059
    %v1062 = vmul.f32 %v1044, %v1051
    %v1063 = vadd.f32 %v1061, %v1062
    %v1064 = vtanh.pop %v1063
    %v1065 = vmul.f32 %v1057, %v1064
    %v1066 = vld [vmem:[#allocation2 + $0x20] sm:$0x3]
    %v1067 = vld [vmem:[#allocation2 + $0x28] sm:$0x3]
    %v1068 = vld [vmem:[#allocation2 + $0x30] sm:$0x3]
    %v1069 = vld [vmem:[#allocation2 + $0x38] sm:$0x3]
    %v1070 = vpack.c.bf16 %v1065, %v1065
    %v1072 = vrot.slane %v1070, 3
    %1074 = vmatprep.subr.bf16.mxu0 %v525
    %1075 = vmatpush1.bf16.msra.mxu0 %v524
    %1076 = vmatprep.subr.bf16.mxu0 %v521
    %1077 = vmatpush1.bf16.msra.mxu0 %v520
    %1078 = vmatprep.subr.bf16.mxu0 %v517
    %1079 = vmatpush1.bf16.msra.mxu0 %v516
    %1080 = vmatprep.subr.bf16.mxu0 %v513
    %1081 = vmatpush1.bf16.msra.mxu0 %v512
    %1082 = vmatprep.subr.bf16.mxu0 %v509
    %1083 = vmatpush1.bf16.msra.mxu0 %v508
    %1084 = vmatprep.subr.bf16.mxu0 %v505
    %1085 = vmatpush1.bf16.msra.mxu0 %v504
    %1086 = vmatprep.subr.bf16.mxu0 %v501
    %1087 = vmatpush1.bf16.msra.mxu0 %v500
    %1088 = vmatprep.subr.bf16.mxu0 %v497
    %1089 = vmatpush1.bf16.msra.mxu0 %v496
    %1090 = vmatprep.subr.bf16.mxu0 0
    %1091 = vmatpush2.bf16.msra.mxu0 0
    %1092 = vmatprep.subr.bf16.mxu0 0
    %1093 = vmatpush2.bf16.msra.mxu0 0
    %1094 = vmatprep.subr.bf16.mxu0 0
    %1095 = vmatpush2.bf16.msra.mxu0 0
    %1096 = vmatprep.subr.bf16.mxu0 0
    %1097 = vmatpush2.bf16.msra.mxu0 0
    %1098 = vmatprep.subr.bf16.mxu0 0
    %1099 = vmatpush2.bf16.msra.mxu0 0
    %1100 = vmatprep.subr.bf16.mxu0 0
    %1101 = vmatpush2.bf16.msra.mxu0 0
    %1102 = vmatprep.subr.bf16.mxu0 0
    %1103 = vmatpush2.bf16.msra.mxu0 0
    %1104 = vmatprep.subr.bf16.mxu0 0
    %1105 = vmatpush2.bf16.msra.mxu0 0
    %1106 = vmatprep.mubr.bf16.mxu0 0
    %1107 = vmatmul.mubr.bf16.gmra.mxu0 %v1072
    %v1108 = vpop.f32.mrf.mxu0
    %v1109 = vadd.f32 0.0, %v1108
    %v1110 = vpop.f32.mrf.mxu0
    %v1111 = vadd.f32 0.0, %v1110
    %v1112 = vpop.f32.mrf.mxu0
    %v1113 = vpop.f32.mrf.mxu0
    %1114 = vdwg.mxu0
    %1115 = vmatprep.subr.bf16.mxu0 %v527
    %1116 = vmatpush1.bf16.msra.mxu0 %v526
    %1117 = vmatprep.subr.bf16.mxu0 %v523
    %1118 = vmatpush1.bf16.msra.mxu0 %v522
    %1119 = vmatprep.subr.bf16.mxu0 %v519
    %1120 = vmatpush1.bf16.msra.mxu0 %v518
    %1121 = vmatprep.subr.bf16.mxu0 %v515
    %1122 = vmatpush1.bf16.msra.mxu0 %v514
    %1123 = vmatprep.subr.bf16.mxu0 %v511
    %1124 = vmatpush1.bf16.msra.mxu0 %v510
    %1125 = vmatprep.subr.bf16.mxu0 %v507
    %1126 = vmatpush1.bf16.msra.mxu0 %v506
    %1127 = vmatprep.subr.bf16.mxu0 %v503
    %1128 = vmatpush1.bf16.msra.mxu0 %v502
    %1129 = vmatprep.subr.bf16.mxu0 %v499
    %1130 = vmatpush1.bf16.msra.mxu0 %v498
    %1131 = vmatprep.subr.bf16.mxu0 0
    %1132 = vmatpush2.bf16.msra.mxu0 0
    %1133 = vmatprep.subr.bf16.mxu0 0
    %1134 = vmatpush2.bf16.msra.mxu0 0
    %1135 = vmatprep.subr.bf16.mxu0 0
    %1136 = vmatpush2.bf16.msra.mxu0 0
    %1137 = vmatprep.subr.bf16.mxu0 0
    %1138 = vmatpush2.bf16.msra.mxu0 0
    %1139 = vmatprep.subr.bf16.mxu0 0
    %1140 = vmatpush2.bf16.msra.mxu0 0
    %1141 = vmatprep.subr.bf16.mxu0 0
    %1142 = vmatpush2.bf16.msra.mxu0 0
    %1143 = vmatprep.subr.bf16.mxu0 0
    %1144 = vmatpush2.bf16.msra.mxu0 0
    %1145 = vmatprep.subr.bf16.mxu0 0
    %1146 = vmatpush2.bf16.msra.mxu0 0
    %1147 = vmatprep.mubr.bf16.mxu0 0
    %1148 = vmatmul.mubr.bf16.gmra.mxu0 %v1072
    %v1149 = vpop.f32.mrf.mxu0
    %v1150 = vadd.f32 0.0, %v1149
    %v1151 = vpop.f32.mrf.mxu0
    %v1152 = vadd.f32 0.0, %v1151
    %v1153 = vpop.f32.mrf.mxu0
    %v1154 = vpop.f32.mrf.mxu0
    %1155 = vdwg.mxu0
    %v1156 = vadd.f32 %v1066, %v1109
    %v1157 = vadd.f32 %v1067, %v1111
    %v1158 = vadd.f32 %v1068, %v1150
    %v1159 = vadd.f32 %v1069, %v1152
    %v1160 = vxor.u32 %v1156, 2147483648
    %v1161 = vmul.f32 %v1160, 1.442695
    %v1162 = vpow.pop %v1161
    %v1163 = vadd.f32 %v1162, 1.0
    %v1164 = vrcp.pop %v1163
    %v1165 = vmul.f32 1.0, %v1164
    %v1166 = vxor.u32 %v1157, 2147483648
    %v1167 = vmul.f32 %v1166, 1.442695
    %v1168 = vpow.pop %v1167
    %v1169 = vadd.f32 %v1168, 1.0
    %v1170 = vrcp.pop %v1169
    %v1171 = vmul.f32 1.0, %v1170
    %v1172 = vtanh.pop %v1158
    %v1173 = vxor.u32 %v1159, 2147483648
    %v1174 = vmul.f32 %v1173, 1.442695
    %v1175 = vpow.pop %v1174
    %v1176 = vadd.f32 %v1175, 1.0
    %v1177 = vrcp.pop %v1176
    %v1178 = vmul.f32 1.0, %v1177
    %v1180 = vrot.slane %v1063, 6
    %v1182 = vmul.f32 %v1171, %v1180
    %v1183 = vmul.f32 %v1165, %v1172
    %v1184 = vadd.f32 %v1182, %v1183
    %v1185 = vtanh.pop %v1184
    %v1186 = vmul.f32 %v1178, %v1185
    %v1187 = vld [vmem:[#allocation2 + $0x20] sm:$0xc]
    %v1188 = vld [vmem:[#allocation2 + $0x28] sm:$0xc]
    %v1189 = vld [vmem:[#allocation2 + $0x30] sm:$0xc]
    %v1190 = vld [vmem:[#allocation2 + $0x38] sm:$0xc]
    %v1191 = vpack.c.bf16 %v1186, %v1186
    %1192 = vmatprep.subr.bf16.mxu0 %v525
    %1193 = vmatpush1.bf16.msra.mxu0 %v524
    %1194 = vmatprep.subr.bf16.mxu0 %v521
    %1195 = vmatpush1.bf16.msra.mxu0 %v520
    %1196 = vmatprep.subr.bf16.mxu0 %v517
    %1197 = vmatpush1.bf16.msra.mxu0 %v516
    %1198 = vmatprep.subr.bf16.mxu0 %v513
    %1199 = vmatpush1.bf16.msra.mxu0 %v512
    %1200 = vmatprep.subr.bf16.mxu0 %v509
    %1201 = vmatpush1.bf16.msra.mxu0 %v508
    %1202 = vmatprep.subr.bf16.mxu0 %v505
    %1203 = vmatpush1.bf16.msra.mxu0 %v504
    %1204 = vmatprep.subr.bf16.mxu0 %v501
    %1205 = vmatpush1.bf16.msra.mxu0 %v500
    %1206 = vmatprep.subr.bf16.mxu0 %v497
    %1207 = vmatpush1.bf16.msra.mxu0 %v496
    %1208 = vmatprep.subr.bf16.mxu0 0
    %1209 = vmatpush2.bf16.msra.mxu0 0
    %1210 = vmatprep.subr.bf16.mxu0 0
    %1211 = vmatpush2.bf16.msra.mxu0 0
    %1212 = vmatprep.subr.bf16.mxu0 0
    %1213 = vmatpush2.bf16.msra.mxu0 0
    %1214 = vmatprep.subr.bf16.mxu0 0
    %1215 = vmatpush2.bf16.msra.mxu0 0
    %1216 = vmatprep.subr.bf16.mxu0 0
    %1217 = vmatpush2.bf16.msra.mxu0 0
    %1218 = vmatprep.subr.bf16.mxu0 0
    %1219 = vmatpush2.bf16.msra.mxu0 0
    %1220 = vmatprep.subr.bf16.mxu0 0
    %1221 = vmatpush2.bf16.msra.mxu0 0
    %1222 = vmatprep.subr.bf16.mxu0 0
    %1223 = vmatpush2.bf16.msra.mxu0 0
    %1224 = vmatprep.mubr.bf16.mxu0 0
    %1225 = vmatmul.mubr.bf16.gmra.mxu0 %v1191
    %v1226 = vpop.f32.mrf.mxu0
    %v1227 = vadd.f32 0.0, %v1226
    %v1228 = vpop.f32.mrf.mxu0
    %v1229 = vadd.f32 0.0, %v1228
    %v1230 = vpop.f32.mrf.mxu0
    %v1231 = vpop.f32.mrf.mxu0
    %1232 = vdwg.mxu0
    %1233 = vmatprep.subr.bf16.mxu0 %v527
    %1234 = vmatpush1.bf16.msra.mxu0 %v526
    %1235 = vmatprep.subr.bf16.mxu0 %v523
    %1236 = vmatpush1.bf16.msra.mxu0 %v522
    %1237 = vmatprep.subr.bf16.mxu0 %v519
    %1238 = vmatpush1.bf16.msra.mxu0 %v518
    %1239 = vmatprep.subr.bf16.mxu0 %v515
    %1240 = vmatpush1.bf16.msra.mxu0 %v514
    %1241 = vmatprep.subr.bf16.mxu0 %v511
    %1242 = vmatpush1.bf16.msra.mxu0 %v510
    %1243 = vmatprep.subr.bf16.mxu0 %v507
    %1244 = vmatpush1.bf16.msra.mxu0 %v506
    %1245 = vmatprep.subr.bf16.mxu0 %v503
    %1246 = vmatpush1.bf16.msra.mxu0 %v502
    %1247 = vmatprep.subr.bf16.mxu0 %v499
    %1248 = vmatpush1.bf16.msra.mxu0 %v498
    %1249 = vmatprep.subr.bf16.mxu0 0
    %1250 = vmatpush2.bf16.msra.mxu0 0
    %1251 = vmatprep.subr.bf16.mxu0 0
    %1252 = vmatpush2.bf16.msra.mxu0 0
    %1253 = vmatprep.subr.bf16.mxu0 0
    %1254 = vmatpush2.bf16.msra.mxu0 0
    %1255 = vmatprep.subr.bf16.mxu0 0
    %1256 = vmatpush2.bf16.msra.mxu0 0
    %1257 = vmatprep.subr.bf16.mxu0 0
    %1258 = vmatpush2.bf16.msra.mxu0 0
    %1259 = vmatprep.subr.bf16.mxu0 0
    %1260 = vmatpush2.bf16.msra.mxu0 0
    %1261 = vmatprep.subr.bf16.mxu0 0
    %1262 = vmatpush2.bf16.msra.mxu0 0
    %1263 = vmatprep.subr.bf16.mxu0 0
    %1264 = vmatpush2.bf16.msra.mxu0 0
    %1265 = vmatprep.mubr.bf16.mxu0 0
    %1266 = vmatmul.mubr.bf16.gmra.mxu0 %v1191
    %v1267 = vpop.f32.mrf.mxu0
    %v1268 = vadd.f32 0.0, %v1267
    %v1269 = vpop.f32.mrf.mxu0
    %v1270 = vadd.f32 0.0, %v1269
    %v1271 = vpop.f32.mrf.mxu0
    %v1272 = vpop.f32.mrf.mxu0
    %1273 = vdwg.mxu0
    %v1278 = vrot.slane %v1227, 6
    %v1279 = vrot.slane %v1229, 6
    %v1280 = vrot.slane %v1268, 6
    %v1281 = vrot.slane %v1270, 6
    %v1286 = vadd.f32 %v1187, %v1278
    %v1287 = vadd.f32 %v1188, %v1279
    %v1288 = vadd.f32 %v1189, %v1280
    %v1289 = vadd.f32 %v1190, %v1281
    %v1290 = vxor.u32 %v1286, 2147483648
    %v1291 = vmul.f32 %v1290, 1.442695
    %v1292 = vpow.pop %v1291
    %v1293 = vadd.f32 %v1292, 1.0
    %v1294 = vrcp.pop %v1293
    %v1295 = vmul.f32 1.0, %v1294
    %v1296 = vxor.u32 %v1287, 2147483648
    %v1297 = vmul.f32 %v1296, 1.442695
    %v1298 = vpow.pop %v1297
    %v1299 = vadd.f32 %v1298, 1.0
    %v1300 = vrcp.pop %v1299
    %v1301 = vmul.f32 1.0, %v1300
    %v1302 = vtanh.pop %v1288
    %v1303 = vxor.u32 %v1289, 2147483648
    %v1304 = vmul.f32 %v1303, 1.442695
    %v1305 = vpow.pop %v1304
    %v1306 = vadd.f32 %v1305, 1.0
    %v1307 = vrcp.pop %v1306
    %v1308 = vmul.f32 1.0, %v1307
    %v1310 = vrot.slane %v1184, 6
    %v1312 = vmul.f32 %v1301, %v1310
    %v1313 = vmul.f32 %v1295, %v1302
    %v1314 = vadd.f32 %v1312, %v1313
    %v1315 = vtanh.pop %v1314
    %v1316 = vmul.f32 %v1308, %v1315
    %v1317 = vld [vmem:[#allocation2 + $0x20] sm:$0x30]
    %v1318 = vld [vmem:[#allocation2 + $0x28] sm:$0x30]
    %v1319 = vld [vmem:[#allocation2 + $0x30] sm:$0x30]
    %v1320 = vld [vmem:[#allocation2 + $0x38] sm:$0x30]
    %v1321 = vpack.c.bf16 %v1316, %v1316
    %v1323 = vrot.slane %v1321, 1
    %1325 = vmatprep.subr.bf16.mxu0 %v525
    %1326 = vmatpush1.bf16.msra.mxu0 %v524
    %1327 = vmatprep.subr.bf16.mxu0 %v521
    %1328 = vmatpush1.bf16.msra.mxu0 %v520
    %1329 = vmatprep.subr.bf16.mxu0 %v517
    %1330 = vmatpush1.bf16.msra.mxu0 %v516
    %1331 = vmatprep.subr.bf16.mxu0 %v513
    %1332 = vmatpush1.bf16.msra.mxu0 %v512
    %1333 = vmatprep.subr.bf16.mxu0 %v509
    %1334 = vmatpush1.bf16.msra.mxu0 %v508
    %1335 = vmatprep.subr.bf16.mxu0 %v505
    %1336 = vmatpush1.bf16.msra.mxu0 %v504
    %1337 = vmatprep.subr.bf16.mxu0 %v501
    %1338 = vmatpush1.bf16.msra.mxu0 %v500
    %1339 = vmatprep.subr.bf16.mxu0 %v497
    %1340 = vmatpush1.bf16.msra.mxu0 %v496
    %1341 = vmatprep.subr.bf16.mxu0 0
    %1342 = vmatpush2.bf16.msra.mxu0 0
    %1343 = vmatprep.subr.bf16.mxu0 0
    %1344 = vmatpush2.bf16.msra.mxu0 0
    %1345 = vmatprep.subr.bf16.mxu0 0
    %1346 = vmatpush2.bf16.msra.mxu0 0
    %1347 = vmatprep.subr.bf16.mxu0 0
    %1348 = vmatpush2.bf16.msra.mxu0 0
    %1349 = vmatprep.subr.bf16.mxu0 0
    %1350 = vmatpush2.bf16.msra.mxu0 0
    %1351 = vmatprep.subr.bf16.mxu0 0
    %1352 = vmatpush2.bf16.msra.mxu0 0
    %1353 = vmatprep.subr.bf16.mxu0 0
    %1354 = vmatpush2.bf16.msra.mxu0 0
    %1355 = vmatprep.subr.bf16.mxu0 0
    %1356 = vmatpush2.bf16.msra.mxu0 0
    %1357 = vmatprep.mubr.bf16.mxu0 0
    %1358 = vmatmul.mubr.bf16.gmra.mxu0 %v1323
    %v1359 = vpop.f32.mrf.mxu0
    %v1360 = vadd.f32 0.0, %v1359
    %v1361 = vpop.f32.mrf.mxu0
    %v1362 = vadd.f32 0.0, %v1361
    %v1363 = vpop.f32.mrf.mxu0
    %v1364 = vpop.f32.mrf.mxu0
    %1365 = vdwg.mxu0
    %1366 = vmatprep.subr.bf16.mxu0 %v527
    %1367 = vmatpush1.bf16.msra.mxu0 %v526
    %1368 = vmatprep.subr.bf16.mxu0 %v523
    %1369 = vmatpush1.bf16.msra.mxu0 %v522
    %1370 = vmatprep.subr.bf16.mxu0 %v519
    %1371 = vmatpush1.bf16.msra.mxu0 %v518
    %1372 = vmatprep.subr.bf16.mxu0 %v515
    %1373 = vmatpush1.bf16.msra.mxu0 %v514
    %1374 = vmatprep.subr.bf16.mxu0 %v511
    %1375 = vmatpush1.bf16.msra.mxu0 %v510
    %1376 = vmatprep.subr.bf16.mxu0 %v507
    %1377 = vmatpush1.bf16.msra.mxu0 %v506
    %1378 = vmatprep.subr.bf16.mxu0 %v503
    %1379 = vmatpush1.bf16.msra.mxu0 %v502
    %1380 = vmatprep.subr.bf16.mxu0 %v499
    %1381 = vmatpush1.bf16.msra.mxu0 %v498
    %1382 = vmatprep.subr.bf16.mxu0 0
    %1383 = vmatpush2.bf16.msra.mxu0 0
    %1384 = vmatprep.subr.bf16.mxu0 0
    %1385 = vmatpush2.bf16.msra.mxu0 0
    %1386 = vmatprep.subr.bf16.mxu0 0
    %1387 = vmatpush2.bf16.msra.mxu0 0
    %1388 = vmatprep.subr.bf16.mxu0 0
    %1389 = vmatpush2.bf16.msra.mxu0 0
    %1390 = vmatprep.subr.bf16.mxu0 0
    %1391 = vmatpush2.bf16.msra.mxu0 0
    %1392 = vmatprep.subr.bf16.mxu0 0
    %1393 = vmatpush2.bf16.msra.mxu0 0
    %1394 = vmatprep.subr.bf16.mxu0 0
    %1395 = vmatpush2.bf16.msra.mxu0 0
    %1396 = vmatprep.subr.bf16.mxu0 0
    %1397 = vmatpush2.bf16.msra.mxu0 0
    %1398 = vmatprep.mubr.bf16.mxu0 0
    %1399 = vmatmul.mubr.bf16.gmra.mxu0 %v1323
    %v1400 = vpop.f32.mrf.mxu0
    %v1401 = vadd.f32 0.0, %v1400
    %v1402 = vpop.f32.mrf.mxu0
    %v1403 = vadd.f32 0.0, %v1402
    %v1404 = vpop.f32.mrf.mxu0
    %v1405 = vpop.f32.mrf.mxu0
    %1406 = vdwg.mxu0
    %v1411 = vrot.slane %v1360, 4
    %v1412 = vrot.slane %v1362, 4
    %v1413 = vrot.slane %v1401, 4
    %v1414 = vrot.slane %v1403, 4
    %v1419 = vadd.f32 %v1317, %v1411
    %v1420 = vadd.f32 %v1318, %v1412
    %v1421 = vadd.f32 %v1319, %v1413
    %v1422 = vadd.f32 %v1320, %v1414
    %v1423 = vxor.u32 %v1419, 2147483648
    %v1424 = vmul.f32 %v1423, 1.442695
    %v1425 = vpow.pop %v1424
    %v1426 = vadd.f32 %v1425, 1.0
    %v1427 = vrcp.pop %v1426
    %v1428 = vmul.f32 1.0, %v1427
    %v1429 = vxor.u32 %v1420, 2147483648
    %v1430 = vmul.f32 %v1429, 1.442695
    %v1431 = vpow.pop %v1430
    %v1432 = vadd.f32 %v1431, 1.0
    %v1433 = vrcp.pop %v1432
    %v1434 = vmul.f32 1.0, %v1433
    %v1435 = vtanh.pop %v1421
    %v1436 = vxor.u32 %v1422, 2147483648
    %v1437 = vmul.f32 %v1436, 1.442695
    %v1438 = vpow.pop %v1437
    %v1439 = vadd.f32 %v1438, 1.0
    %v1440 = vrcp.pop %v1439
    %v1441 = vmul.f32 1.0, %v1440
    %v1443 = vrot.slane %v1314, 6
    %v1445 = vmul.f32 %v1434, %v1443
    %v1446 = vmul.f32 %v1428, %v1435
    %v1447 = vadd.f32 %v1445, %v1446
    %v1448 = vtanh.pop %v1447
    %v1449 = vmul.f32 %v1441, %v1448
    %v1450 = vld [vmem:[#allocation2 + $0x20] sm:$0xc0]
    %v1451 = vld [vmem:[#allocation2 + $0x28] sm:$0xc0]
    %v1452 = vld [vmem:[#allocation2 + $0x30] sm:$0xc0]
    %v1453 = vld [vmem:[#allocation2 + $0x38] sm:$0xc0]
    %v1454 = vpack.c.bf16 %v1449, %v1449
    %v1456 = vrot.slane %v1454, 2
    %1458 = vmatprep.subr.bf16.mxu0 %v525
    %1459 = vmatpush1.bf16.msra.mxu0 %v524
    %1460 = vmatprep.subr.bf16.mxu0 %v521
    %1461 = vmatpush1.bf16.msra.mxu0 %v520
    %1462 = vmatprep.subr.bf16.mxu0 %v517
    %1463 = vmatpush1.bf16.msra.mxu0 %v516
    %1464 = vmatprep.subr.bf16.mxu0 %v513
    %1465 = vmatpush1.bf16.msra.mxu0 %v512
    %1466 = vmatprep.subr.bf16.mxu0 %v509
    %1467 = vmatpush1.bf16.msra.mxu0 %v508
    %1468 = vmatprep.subr.bf16.mxu0 %v505
    %1469 = vmatpush1.bf16.msra.mxu0 %v504
    %1470 = vmatprep.subr.bf16.mxu0 %v501
    %1471 = vmatpush1.bf16.msra.mxu0 %v500
    %1472 = vmatprep.subr.bf16.mxu0 %v497
    %1473 = vmatpush1.bf16.msra.mxu0 %v496
    %1474 = vmatprep.subr.bf16.mxu0 0
    %1475 = vmatpush2.bf16.msra.mxu0 0
    %1476 = vmatprep.subr.bf16.mxu0 0
    %1477 = vmatpush2.bf16.msra.mxu0 0
    %1478 = vmatprep.subr.bf16.mxu0 0
    %1479 = vmatpush2.bf16.msra.mxu0 0
    %1480 = vmatprep.subr.bf16.mxu0 0
    %1481 = vmatpush2.bf16.msra.mxu0 0
    %1482 = vmatprep.subr.bf16.mxu0 0
    %1483 = vmatpush2.bf16.msra.mxu0 0
    %1484 = vmatprep.subr.bf16.mxu0 0
    %1485 = vmatpush2.bf16.msra.mxu0 0
    %1486 = vmatprep.subr.bf16.mxu0 0
    %1487 = vmatpush2.bf16.msra.mxu0 0
    %1488 = vmatprep.subr.bf16.mxu0 0
    %1489 = vmatpush2.bf16.msra.mxu0 0
    %1490 = vmatprep.mubr.bf16.mxu0 0
    %1491 = vmatmul.mubr.bf16.gmra.mxu0 %v1456
    %v1492 = vpop.f32.mrf.mxu0
    %v1493 = vadd.f32 0.0, %v1492
    %v1494 = vpop.f32.mrf.mxu0
    %v1495 = vadd.f32 0.0, %v1494
    %v1496 = vpop.f32.mrf.mxu0
    %v1497 = vpop.f32.mrf.mxu0
    %1498 = vdwg.mxu0
    %1499 = vmatprep.subr.bf16.mxu0 %v527
    %1500 = vmatpush1.bf16.msra.mxu0 %v526
    %1501 = vmatprep.subr.bf16.mxu0 %v523
    %1502 = vmatpush1.bf16.msra.mxu0 %v522
    %1503 = vmatprep.subr.bf16.mxu0 %v519
    %1504 = vmatpush1.bf16.msra.mxu0 %v518
    %1505 = vmatprep.subr.bf16.mxu0 %v515
    %1506 = vmatpush1.bf16.msra.mxu0 %v514
    %1507 = vmatprep.subr.bf16.mxu0 %v511
    %1508 = vmatpush1.bf16.msra.mxu0 %v510
    %1509 = vmatprep.subr.bf16.mxu0 %v507
    %1510 = vmatpush1.bf16.msra.mxu0 %v506
    %1511 = vmatprep.subr.bf16.mxu0 %v503
    %1512 = vmatpush1.bf16.msra.mxu0 %v502
    %1513 = vmatprep.subr.bf16.mxu0 %v499
    %1514 = vmatpush1.bf16.msra.mxu0 %v498
    %1515 = vmatprep.subr.bf16.mxu0 0
    %1516 = vmatpush2.bf16.msra.mxu0 0
    %1517 = vmatprep.subr.bf16.mxu0 0
    %1518 = vmatpush2.bf16.msra.mxu0 0
    %1519 = vmatprep.subr.bf16.mxu0 0
    %1520 = vmatpush2.bf16.msra.mxu0 0
    %1521 = vmatprep.subr.bf16.mxu0 0
    %1522 = vmatpush2.bf16.msra.mxu0 0
    %1523 = vmatprep.subr.bf16.mxu0 0
    %1524 = vmatpush2.bf16.msra.mxu0 0
    %1525 = vmatprep.subr.bf16.mxu0 0
    %1526 = vmatpush2.bf16.msra.mxu0 0
    %1527 = vmatprep.subr.bf16.mxu0 0
    %1528 = vmatpush2.bf16.msra.mxu0 0
    %1529 = vmatprep.subr.bf16.mxu0 0
    %1530 = vmatpush2.bf16.msra.mxu0 0
    %1531 = vmatprep.mubr.bf16.mxu0 0
    %1532 = vmatmul.mubr.bf16.gmra.mxu0 %v1456
    %v1533 = vpop.f32.mrf.mxu0
    %v1534 = vadd.f32 0.0, %v1533
    %v1535 = vpop.f32.mrf.mxu0
    %v1536 = vadd.f32 0.0, %v1535
    %v1537 = vpop.f32.mrf.mxu0
    %v1538 = vpop.f32.mrf.mxu0
    %1539 = vdwg.mxu0
    %v1544 = vrot.slane %v1493, 2
    %v1545 = vrot.slane %v1495, 2
    %v1546 = vrot.slane %v1534, 2
    %v1547 = vrot.slane %v1536, 2
    %v1552 = vadd.f32 %v1450, %v1544
    %v1553 = vadd.f32 %v1451, %v1545
    %v1554 = vadd.f32 %v1452, %v1546
    %v1555 = vadd.f32 %v1453, %v1547
    %v1556 = vxor.u32 %v1552, 2147483648
    %v1557 = vmul.f32 %v1556, 1.442695
    %v1558 = vpow.pop %v1557
    %v1559 = vadd.f32 %v1558, 1.0
    %v1560 = vrcp.pop %v1559
    %v1561 = vmul.f32 1.0, %v1560
    %v1562 = vxor.u32 %v1553, 2147483648
    %v1563 = vmul.f32 %v1562, 1.442695
    %v1564 = vpow.pop %v1563
    %v1565 = vadd.f32 %v1564, 1.0
    %v1566 = vrcp.pop %v1565
    %v1567 = vmul.f32 1.0, %v1566
    %v1568 = vtanh.pop %v1554
    %v1569 = vxor.u32 %v1555, 2147483648
    %v1570 = vmul.f32 %v1569, 1.442695
    %v1571 = vpow.pop %v1570
    %v1572 = vadd.f32 %v1571, 1.0
    %v1573 = vrcp.pop %v1572
    %v1574 = vmul.f32 1.0, %v1573
    %v1576 = vrot.slane %v1447, 6
    %v1578 = vmul.f32 %v1567, %v1576
    %v1579 = vmul.f32 %v1561, %v1568
    %v1580 = vadd.f32 %v1578, %v1579
    %v1581 = vtanh.pop %v1580
    %v1582 = vmul.f32 %v1574, %v1581
    %1583 = vst [vmem:[#allocation3 - $0x6] sm:$0xc0] %v1582
    %1584 = vst [vmem:[#allocation4 - $0x6] sm:$0xc0] %v1580
    // Predicated region
    $region34: #{lstm_model_forward.3} parent=1 // pred_check
      %p1585 = pneg %p39
    $region35: #{lstm_model_forward.3} parent=1 // pred_check_branch
      %1587 = sbr.rel (%p1585) target = $region37
    $region36: #{lstm_model_forward.3} parent=1 // pred_region
      %v1588 = vpack.c.bf16 %v1582, %v1582
      %v1589 = vld [vmem:[%s4] sm:$0xf]
      %v1590 = vld [vmem:[%s4 + $0x4] sm:$0xf]
      %v1591 = vld [vmem:[%s4 + $0x8] sm:$0xf]
      %v1592 = vld [vmem:[%s4 + $0xc] sm:$0xf]
      %v1593 = vld [vmem:[%s4 + $0x10] sm:$0xf]
      %v1594 = vld [vmem:[%s4 + $0x14] sm:$0xf]
      %v1595 = vld [vmem:[%s4 + $0x18] sm:$0xf]
      %v1596 = vld [vmem:[%s4 + $0x1c] sm:$0xf]
      %v1597 = vld [vmem:[%s4 + $0x20] sm:$0xf]
      %v1598 = vld [vmem:[%s4 + $0x24] sm:$0xf]
      %v1599 = vld [vmem:[%s4 + $0x28] sm:$0xf]
      %v1600 = vld [vmem:[%s4 + $0x2c] sm:$0xf]
      %v1601 = vld [vmem:[%s4 + $0x30] sm:$0xf]
      %v1602 = vld [vmem:[%s4 + $0x34] sm:$0xf]
      %v1603 = vld [vmem:[%s4 + $0x38] sm:$0xf]
      %v1604 = vld [vmem:[%s4 + $0x3c] sm:$0xf]
      %v1605 = vld [vmem:[%s5] sm:$0x1]
      %v1607 = vlaneseq
      %v1608 = vshrl.u32 %v1607, 7
      %v1609 = vsub.s32 0, %v1608
      %v1610 = vrot.slane %v1605, %v1609
      %v1613 = vrot.slane %v1588, 3
      %v1631 = vunpack.c.l.b16 %v1589
      %v1632 = vunpack.c.l.b16 %v1590
      %v1633 = vunpack.c.l.b16 %v1591
      %v1634 = vunpack.c.l.b16 %v1592
      %v1635 = vunpack.c.l.b16 %v1593
      %v1636 = vunpack.c.l.b16 %v1594
      %v1637 = vunpack.c.l.b16 %v1595
      %v1638 = vunpack.c.l.b16 %v1596
      %v1639 = vunpack.c.l.b16 %v1597
      %v1640 = vunpack.c.l.b16 %v1598
      %v1641 = vunpack.c.l.b16 %v1599
      %v1642 = vunpack.c.l.b16 %v1600
      %v1643 = vunpack.c.l.b16 %v1601
      %v1644 = vunpack.c.l.b16 %v1602
      %v1645 = vunpack.c.l.b16 %v1603
      %v1646 = vunpack.c.l.b16 %v1604
      %v1647 = vpack.c.b16 %v1632, %v1631
      %v1648 = vpack.c.b16 %v1634, %v1633
      %v1649 = vpack.c.b16 %v1636, %v1635
      %v1650 = vpack.c.b16 %v1638, %v1637
      %v1651 = vpack.c.b16 %v1640, %v1639
      %v1652 = vpack.c.b16 %v1642, %v1641
      %v1653 = vpack.c.b16 %v1644, %v1643
      %v1654 = vpack.c.b16 %v1646, %v1645
      %1663 = vmatprep.subr.bf16.mxu0 0
      %1664 = vmatpush1.bf16.msra.mxu0 %v1654
      %1665 = vmatprep.subr.bf16.mxu0 0
      %1666 = vmatpush1.bf16.msra.mxu0 %v1653
      %1667 = vmatprep.subr.bf16.mxu0 0
      %1668 = vmatpush1.bf16.msra.mxu0 %v1652
      %1669 = vmatprep.subr.bf16.mxu0 0
      %1670 = vmatpush1.bf16.msra.mxu0 %v1651
      %1671 = vmatprep.subr.bf16.mxu0 0
      %1672 = vmatpush1.bf16.msra.mxu0 %v1650
      %1673 = vmatprep.subr.bf16.mxu0 0
      %1674 = vmatpush1.bf16.msra.mxu0 %v1649
      %1675 = vmatprep.subr.bf16.mxu0 0
      %1676 = vmatpush1.bf16.msra.mxu0 %v1648
      %1677 = vmatprep.subr.bf16.mxu0 0
      %1678 = vmatpush1.bf16.msra.mxu0 %v1647
      %1679 = vmatprep.subr.bf16.mxu0 0
      %1680 = vmatpush2.bf16.msra.mxu0 0
      %1681 = vmatprep.subr.bf16.mxu0 0
      %1682 = vmatpush2.bf16.msra.mxu0 0
      %1683 = vmatprep.subr.bf16.mxu0 0
      %1684 = vmatpush2.bf16.msra.mxu0 0
      %1685 = vmatprep.subr.bf16.mxu0 0
      %1686 = vmatpush2.bf16.msra.mxu0 0
      %1687 = vmatprep.subr.bf16.mxu0 0
      %1688 = vmatpush2.bf16.msra.mxu0 0
      %1689 = vmatprep.subr.bf16.mxu0 0
      %1690 = vmatpush2.bf16.msra.mxu0 0
      %1691 = vmatprep.subr.bf16.mxu0 0
      %1692 = vmatpush2.bf16.msra.mxu0 0
      %1693 = vmatprep.subr.bf16.mxu0 0
      %1694 = vmatpush2.bf16.msra.mxu0 0
      %1695 = vmatprep.mubr.bf16.mxu0 0
      %1696 = vmatmul.mubr.bf16.gmra.mxu0 %v1613
      %v1697 = vpop.f32.mrf.mxu0
      %v1698 = vadd.f32 %v1610, %v1697
      %v1699 = vpop.f32.mrf.mxu0
      %v1700 = vpop.f32.mrf.mxu0
      %v1701 = vpop.f32.mrf.mxu0
      %1702 = vdwg.mxu0
      %vm1703 = vcmask 25600
      %1704 = vst.msk [vmem:[#allocation8] sm:$0x3] %vm1703, %v1698
    $region37: #{lstm_model_forward.3} parent=1 // pred_fallthru
      _
    // Predicated region
    $region38: #{lstm_model_forward.3} parent=1 // pred_check
      _
    $region39: #{lstm_model_forward.3} parent=1 // pred_check_branch
      %1706 = sbr.rel (0) target = $region41
    $region40: #{lstm_model_forward.3} parent=1 // pred_region
      %s1708 = ssub.s32 32, 32
      %1709 = vsyncadd [#allocation7], %s1708
      %s1711 = sshll.u32 [#allocation8], 4
      %s1712 = int_to_ptr.vmem [resolvable:$true] %s1711
      %1714 = dma.vmem_to_hbm [thread:$0]  %s1712, 32, %s6, [#allocation7]
    $region41: #{lstm_model_forward.3} parent=1 // pred_fallthru
      _
    // Predicated region
    $region42: #{lstm_model_forward.3} parent=1 // pred_check
      _
    $region43: #{lstm_model_forward.3} parent=1 // pred_check_branch
      %1716 = sbr.rel (0) target = $region45
    $region44: #{lstm_model_forward.3} parent=1 // pred_region
      %1717 = dma.done [#allocation7], 32
    $region45: #{lstm_model_forward.3} parent=1 // pred_fallthru
      _
    %1718 = vsyncpa [#allocation6], 1
    %1719 = vsyncpa [#allocation7], 1

</llo_original>
